<compile_context>
chip_gen: v6e
topology: v6e:2x2x1
jax: 0.10.0
libtpu: 0.0.40
codegen_flags: <defaults>
</compile_context>

<pallas_src>
import functools

import jax
import jax.numpy as jnp
from jax.experimental import pallas as pl
from jax.experimental.pallas import tpu as pltpu


# ---------------------------------------------------------------------------
# helpers
# ---------------------------------------------------------------------------
def _tile(dim, target):
    """Use `target` if it divides `dim`, else fall back to the full extent
    (keeps the (8,128) block rules satisfied for small / odd shapes)."""
    return target if dim % target == 0 else dim


def _heads_per_block(n_heads, head_dim):
    """Smallest head group whose lane width (G*Dh) is a multiple of 128."""
    for g in range(1, n_heads + 1):
        if n_heads % g == 0 and (g * head_dim) % 128 == 0:
            return g
    return n_heads  # tiny shapes: all heads in one block


# ---------------------------------------------------------------------------
# tiled linear (+ optional fused ReLU)
# ---------------------------------------------------------------------------
def _linear_kernel(x_ref, w_ref, b_ref, o_ref, acc_ref, *, activation):
    @pl.when(pl.program_id(2) == 0)
    def _():
        acc_ref[...] = jnp.zeros_like(acc_ref)

    acc_ref[...] += jnp.dot(x_ref[...], w_ref[...],
                            preferred_element_type=jnp.float32)

    @pl.when(pl.program_id(2) == pl.num_programs(2) - 1)
    def _():
        out = acc_ref[...] + b_ref[...].astype(jnp.float32)
        if activation == "relu":
            out = jnp.maximum(out, 0.0)
        o_ref[...] = out.astype(o_ref.dtype)


def pallas_linear(x2d, w_t, b_row, *, activation=None, out_dtype=None,
                  tm=256, tn=256, tk=512):
    """x2d: (M, K); w_t: (K, N) pre-transposed; b_row: (1, N) f32."""
    M, K = x2d.shape
    K2, N = w_t.shape
    assert K == K2 and b_row.shape == (1, N)
    out_dtype = out_dtype or x2d.dtype
    tm, tn, tk = _tile(M, tm), _tile(N, tn), _tile(K, tk)
    grid = (M // tm, N // tn, K // tk)
    bytes_per = jnp.dtype(x2d.dtype).itemsize
    return pl.pallas_call(
        functools.partial(_linear_kernel, activation=activation),
        out_shape=jax.ShapeDtypeStruct((M, N), out_dtype),
        grid=grid,
        in_specs=[
            pl.BlockSpec((tm, tk), lambda i, j, k: (i, k)),
            pl.BlockSpec((tk, tn), lambda i, j, k: (k, j)),
            pl.BlockSpec((1, tn), lambda i, j, k: (0, j)),
        ],
        out_specs=pl.BlockSpec((tm, tn), lambda i, j, k: (i, j)),
        scratch_shapes=[pltpu.VMEM((tm, tn), jnp.float32)],
        compiler_params=pltpu.CompilerParams(
            dimension_semantics=("parallel", "parallel", "arbitrary")),
        cost_estimate=pl.CostEstimate(
            flops=2 * M * N * K, transcendentals=0,
            bytes_accessed=(M * K + K * N + M * N) * bytes_per),
    )(x2d, w_t, b_row)


# ---------------------------------------------------------------------------
# attention (one batch x head-group per grid point; heads via BlockSpec)
# ---------------------------------------------------------------------------
def _attention_kernel(q_ref, r_ref, k_ref, v_ref, o_ref, *, heads, head_dim):
    q = q_ref[0]  # (L, G*Dh); 1/scale already folded into the Q projection
    r = r_ref[0]
    k = k_ref[0]
    v = v_ref[0]
    outs = []
    for h in range(heads):
        sl = slice(h * head_dim, (h + 1) * head_dim)
        qh, kh, vh, rh = q[:, sl], k[:, sl], v[:, sl], r[:, sl]
        # QK^T in NT form (contract last dims) -- no explicit transpose / XLU.
        energy = jax.lax.dot_general(
            qh, kh, (((1,), (1,)), ((), ())),
            preferred_element_type=jnp.float32)               # (L, L) f32
        m = jnp.max(energy, axis=-1, keepdims=True)
        e = jnp.exp(energy - m)
        p = e * pl.reciprocal(jnp.sum(e, axis=-1, keepdims=True), approx=True)
        ctx = jnp.dot(p.astype(vh.dtype), vh,
                      preferred_element_type=jnp.float32)     # (L, Dh) f32
        outs.append(ctx * rh.astype(jnp.float32))
    # single lane-dense store of the whole (L, G*Dh) slab
    o_ref[0] = jnp.concatenate(outs, axis=-1).astype(o_ref.dtype)


def multi_head_attention(q_src, r_src, k_proj, v_proj, *, n_heads, head_dim,
                         q_col, r_col):
    """q_src / r_src may be the same fused (B, L, 2E) projection; q_col / r_col
    are the column offsets of the Q / R sub-matrices inside them."""
    B, L, E = k_proj.shape
    G = _heads_per_block(n_heads, head_dim)
    gd = G * head_dim
    n_groups = n_heads // G
    assert q_col % gd == 0 and r_col % gd == 0

    def spec(col):
        off = col // gd
        return pl.BlockSpec((1, L, gd), lambda b, g, off=off: (b, 0, off + g))

    bytes_per = jnp.dtype(k_proj.dtype).itemsize
    return pl.pallas_call(
        functools.partial(_attention_kernel, heads=G, head_dim=head_dim),
        out_shape=jax.ShapeDtypeStruct((B, L, E), k_proj.dtype),
        grid=(B, n_groups),
        in_specs=[spec(q_col), spec(r_col), spec(0), spec(0)],
        out_specs=spec(0),
        compiler_params=pltpu.CompilerParams(
            dimension_semantics=("parallel", "parallel")),
        cost_estimate=pl.CostEstimate(
            flops=4 * B * n_heads * L * L * head_dim,
            transcendentals=B * n_heads * L * L,
            bytes_accessed=5 * B * L * E * bytes_per),
    )(q_src, r_src, k_proj, v_proj)


# ---------------------------------------------------------------------------
# fused residual add + LayerNorm
# ---------------------------------------------------------------------------
def _add_layernorm_kernel(x_ref, res_ref, g_ref, b_ref, o_ref, *, eps):
    x = x_ref[...].astype(jnp.float32) + res_ref[...].astype(jnp.float32)
    mean = jnp.mean(x, axis=-1, keepdims=True)
    xc = x - mean
    var = jnp.mean(xc * xc, axis=-1, keepdims=True)
    y = xc * jax.lax.rsqrt(var + eps)
    y = y * g_ref[...].astype(jnp.float32) + b_ref[...].astype(jnp.float32)
    o_ref[...] = y.astype(o_ref.dtype)


def add_layernorm(x2d, res2d, gamma_row, beta_row, *, eps=1e-5,
                  out_dtype=None, tm=256):
    M, E = x2d.shape
    out_dtype = out_dtype or x2d.dtype
    tm = _tile(M, tm)
    row = pl.BlockSpec((tm, E), lambda i: (i, 0))
    vec = pl.BlockSpec((1, E), lambda i: (0, 0))
    return pl.pallas_call(
        functools.partial(_add_layernorm_kernel, eps=eps),
        out_shape=jax.ShapeDtypeStruct((M, E), out_dtype),
        grid=(M // tm,),
        in_specs=[row, row, vec, vec],
        out_specs=row,
        compiler_params=pltpu.CompilerParams(dimension_semantics=("parallel",)),
    )(x2d, res2d, gamma_row, beta_row)


# ---------------------------------------------------------------------------
# parameters
# ---------------------------------------------------------------------------
def init_params(key, embedding_dim, ffn_mul=4):
    """Deterministic synthetic parameters in torch layout (W (out,in), b (out,))."""
    E, F = embedding_dim, ffn_mul * embedding_dim
    shapes = {"wq": (E, E), "wk": (E, E), "wv": (E, E), "wr": (E, E),
              "wo": (E, E), "w1": (F, E), "w2": (E, F)}
    params = {}
    keys = jax.random.split(key, 2 * len(shapes))
    for i, (name, shp) in enumerate(shapes.items()):
        bound = 1.0 / (shp[1] ** 0.5)
        params[name] = jax.random.uniform(keys[2 * i], shp, jnp.float32,
                                          -bound, bound)
        params["b" + name[1:]] = jax.random.uniform(keys[2 * i + 1], (shp[0],),
                                                    jnp.float32, -bound, bound)
    params["ln1_g"] = jnp.ones((E,), jnp.float32)
    params["ln1_b"] = jnp.zeros((E,), jnp.float32)
    params["ln2_g"] = jnp.ones((E,), jnp.float32)
    params["ln2_b"] = jnp.zeros((E,), jnp.float32)
    return params


def prepare_params(params, embedding_dim, compute_dtype=jnp.float32):
    """One-time prep: pre-transpose weights to (in,out), fuse Q/R along the
    output dim, fold the 1/scale of the energies into Wq/bq, cast matmul
    weights to the MXU compute dtype (biases / LayerNorm params stay f32)."""
    E = embedding_dim
    inv_scale = 2.0 / float(E)          # torch scale = E ** 1 / 2 == E / 2

    def wt(w):                          # (out,in) -> (in,out), compute dtype
        return jnp.asarray(w.T, compute_dtype)

    def brow(b):                        # (out,) -> (1,out), f32
        return jnp.asarray(b, jnp.float32).reshape(1, -1)

    return {
        "w_qr": jnp.concatenate([wt(params["wq"] * inv_scale),
                                 wt(params["wr"])], axis=1),
        "b_qr": jnp.concatenate([brow(params["bq"] * inv_scale),
                                 brow(params["br"])], axis=1),
        "w_k": wt(params["wk"]), "b_k": brow(params["bk"]),
        "w_v": wt(params["wv"]), "b_v": brow(params["bv"]),
        "w_o": wt(params["wo"]), "b_o": brow(params["bo"]),
        "w_1": wt(params["w1"]), "b_1": brow(params["b1"]),
        "w_2": wt(params["w2"]), "b_2": brow(params["b2"]),
        "ln1_g": brow(params["ln1_g"]), "ln1_b": brow(params["ln1_b"]),
        "ln2_g": brow(params["ln2_g"]), "ln2_b": brow(params["ln2_b"]),
    }


# ---------------------------------------------------------------------------
# TransformerBlock forward
# ---------------------------------------------------------------------------
def transformer_block_forward(prep, value, key_, query, n_heads, mask=None):
    """value/key/query: (B, L, E).  Returns (B, L, E) in query.dtype."""
    assert mask is None  # TODO(synk): masked attention not implemented.
    B, L, E = query.shape
    Dh = E // n_heads
    M = B * L
    cd = prep["w_k"].dtype              # MXU compute dtype (f32 or bf16)

    xq = query.reshape(M, E).astype(cd)
    xk = key_.reshape(M, E).astype(cd)
    xv = value.reshape(M, E).astype(cd)

    # fused Q/R projection (shared `query` input, concatenated weights) + K, V
    qr = pallas_linear(xq, prep["w_qr"], prep["b_qr"]).reshape(B, L, 2 * E)
    kp = pallas_linear(xk, prep["w_k"], prep["b_k"]).reshape(B, L, E)
    vp = pallas_linear(xv, prep["w_v"], prep["b_v"]).reshape(B, L, E)

    # heads are addressed through BlockSpec index_maps -> no split/merge
    # transposes ever materialize in HBM.
    G = _heads_per_block(n_heads, Dh)
    if (G * Dh) % 128 == 0:
        attn = multi_head_attention(qr, qr, kp, vp, n_heads=n_heads,
                                    head_dim=Dh, q_col=0, r_col=E)
    else:  # tiny/odd shapes: fall back to slicing the fused projection
        attn = multi_head_attention(qr[..., :E], qr[..., E:], kp, vp,
                                    n_heads=n_heads, head_dim=Dh,
                                    q_col=0, r_col=0)

    att_out = pallas_linear(attn.reshape(M, E), prep["w_o"], prep["b_o"])

    # residual + LayerNorm 1 (dropout == identity in eval mode)
    h1 = add_layernorm(att_out, query.reshape(M, E),
                       prep["ln1_g"], prep["ln1_b"], out_dtype=cd)

    # feed-forward: Linear(E,4E) with fused ReLU, then Linear(4E,E)
    ff = pallas_linear(h1, prep["w_1"], prep["b_1"], activation="relu")
    ff = pallas_linear(ff, prep["w_2"], prep["b_2"])

    # residual + LayerNorm 2 (dropout == identity)
    out = add_layernorm(ff, h1, prep["ln2_g"], prep["ln2_b"],
                        out_dtype=query.dtype)
    return out.reshape(B, L, E)


# ---------------------------------------------------------------------------
# pure-JAX reference (intended torch semantics, f32)
# ---------------------------------------------------------------------------
def reference_forward(params, value, key_, query, n_heads):
    B, L, E = query.shape
    Dh = E // n_heads
    scale = float(E) ** 1 / 2           # == E / 2 (precedence bug kept)

    def lin(x, w, b):
        return x @ w.T + b

    def split(x):
        return x.reshape(B, L, n_heads, Dh).transpose(0, 2, 1, 3)

    Q = split(lin(query, params["wq"], params["bq"]))
    K = split(lin(key_, params["wk"], params["bk"]))
    V = split(lin(value, params["wv"], params["bv"]))
    R = split(lin(query, params["wr"], params["br"]))
    energy = jnp.einsum("bhid,bhjd->bhij", Q, K)
    attn = jax.nn.softmax(energy / scale, axis=-1)
    ctx = jnp.einsum("bhjd,bhij->bhid", V, attn) * R
    ctx = ctx.transpose(0, 2, 1, 3).reshape(B, L, E)
    att_out = lin(ctx, params["wo"], params["bo"])

    def ln(x, g, b, eps=1e-5):
        m = x.mean(-1, keepdims=True)
        v = ((x - m) ** 2).mean(-1, keepdims=True)
        return (x - m) * jax.lax.rsqrt(v + eps) * g + b

    h1 = ln(att_out + query, params["ln1_g"], params["ln1_b"])
    ff = jnp.maximum(lin(h1, params["w1"], params["b1"]), 0.0)
    ff = lin(ff, params["w2"], params["b2"])
    return ln(ff + h1, params["ln2_g"], params["ln2_b"])


if __name__ == "__main__":
    B, L, E, H = 2, 8, 128, 2           # batch, seq, embedding_dim, n_heads
    root = jax.random.PRNGKey(0)
    kparam, kval, kkey, kqry = jax.random.split(root, 4)

    params = init_params(kparam, E)
    value = jax.random.normal(kval, (B, L, E), jnp.float32)
    key_ = jax.random.normal(kkey, (B, L, E), jnp.float32)
    query = jax.random.normal(kqry, (B, L, E), jnp.float32)

    ref = reference_forward(params, value, key_, query, H)
    fwd = jax.jit(functools.partial(transformer_block_forward, n_heads=H))

    # f32 compute path: checked against the pure-JAX reference
    # (tolerance allows the approx EUP reciprocal in the softmax).
    prep_f32 = prepare_params(params, E, compute_dtype=jnp.float32)
    out_f32 = jax.block_until_ready(fwd(prep_f32, value, key_, query))
    assert out_f32.shape == (B, L, E)
    assert jnp.allclose(out_f32, ref, atol=5e-2, rtol=5e-2), (
        float(jnp.max(jnp.abs(out_f32 - ref))))

    # bf16 MXU compute path (f32 accumulation): sanity-bounded vs f32 reference
    prep_bf16 = prepare_params(params, E, compute_dtype=jnp.bfloat16)
    out_bf16 = jax.block_until_ready(fwd(prep_bf16, value, key_, query))
    assert out_bf16.shape == (B, L, E) and out_bf16.dtype == jnp.float32
    assert bool(jnp.all(jnp.isfinite(out_bf16)))
    assert float(jnp.max(jnp.abs(out_bf16 - ref))) < 0.5

    print("KERNEL_OK")
</pallas_src>

<mosaic_0001>
module attributes {stable_mosaic.version = 11 : i64} {
  func.func @_linear_kernel(%arg0: i32, %arg1: i32, %arg2: i32, %arg3: memref<16x128xf32, #tpu.memory_space<vmem>>, %arg4: memref<128x128xf32, #tpu.memory_space<vmem>>, %arg5: memref<1x128xf32, #tpu.memory_space<vmem>>, %arg6: memref<16x128xf32, #tpu.memory_space<vmem>>, %arg7: memref<16x128xf32, #tpu.memory_space<vmem>>) attributes {dimension_semantics = [#tpu.dimension_semantics<parallel>, #tpu.dimension_semantics<parallel>, #tpu.dimension_semantics<arbitrary>], iteration_bounds = array<i64: 1, 1, 1>, scalar_prefetch = 0 : i64, scratch_operands = 1 : i64, tpu.core_type = #tpu.core_type<tc>, window_params = [{transform_indices = @transform_0, window_bounds = array<i64: 16, 128>}, {transform_indices = @transform_1, window_bounds = array<i64: 128, 128>}, {transform_indices = @transform_2, window_bounds = array<i64: 1, 128>}, {transform_indices = @transform_3, window_bounds = array<i64: 16, 128>}]} {
    %c0_i32 = arith.constant 0 : i32
    %0 = arith.cmpi eq, %arg2, %c0_i32 : i32
    %1 = arith.extui %0 : i1 to i32
    %c0_i32_0 = arith.constant 0 : i32
    %2 = arith.cmpi ne, %1, %c0_i32_0 : i32
    scf.if %2 {
      %cst_10 = arith.constant 0.000000e+00 : f32
      %12 = vector.broadcast %cst_10 : f32 to vector<16x128xf32>
      %c0_11 = arith.constant 0 : index
      %c0_12 = arith.constant 0 : index
      %13 = vector.load %arg7[%c0_11, %c0_12] : memref<16x128xf32, #tpu.memory_space<vmem>>, vector<16x128xf32>
      tpu.vector_store %arg7[%c0_11, %c0_12], %12 {strides = array<i32>} : memref<16x128xf32, #tpu.memory_space<vmem>>, vector<16x128xf32>,
    } else {
    }
    %c0 = arith.constant 0 : index
    %c0_1 = arith.constant 0 : index
    %3 = vector.load %arg7[%c0, %c0_1] : memref<16x128xf32, #tpu.memory_space<vmem>>, vector<16x128xf32>
    %c0_2 = arith.constant 0 : index
    %c0_3 = arith.constant 0 : index
    %4 = vector.load %arg3[%c0_2, %c0_3] : memref<16x128xf32, #tpu.memory_space<vmem>>, vector<16x128xf32>
    %c0_4 = arith.constant 0 : index
    %c0_5 = arith.constant 0 : index
    %5 = vector.load %arg4[%c0_4, %c0_5] : memref<128x128xf32, #tpu.memory_space<vmem>>, vector<128x128xf32>
    %cst = arith.constant dense<0.000000e+00> : vector<16x128xf32>
    %6 = tpu.matmul %4, %5, %cst {dimension_numbers = #tpu.dot_dimension_numbers<[1], [0], [0], [1], [0, 0, 1, 1], [], []>} : vector<16x128xf32>, vector<128x128xf32>, vector<16x128xf32> -> vector<16x128xf32>
    %7 = arith.addf %3, %6 : vector<16x128xf32>
    %c0_6 = arith.constant 0 : index
    %c0_7 = arith.constant 0 : index
    %8 = vector.load %arg7[%c0_6, %c0_7] : memref<16x128xf32, #tpu.memory_space<vmem>>, vector<16x128xf32>
    tpu.vector_store %arg7[%c0_6, %c0_7], %7 {strides = array<i32>} : memref<16x128xf32, #tpu.memory_space<vmem>>, vector<16x128xf32>,
    %c0_i32_8 = arith.constant 0 : i32
    %9 = arith.cmpi eq, %arg2, %c0_i32_8 : i32
    %10 = arith.extui %9 : i1 to i32
    %c0_i32_9 = arith.constant 0 : i32
    %11 = arith.cmpi ne, %10, %c0_i32_9 : i32
    scf.if %11 {
      %c0_10 = arith.constant 0 : index
      %c0_11 = arith.constant 0 : index
      %12 = vector.load %arg7[%c0_10, %c0_11] : memref<16x128xf32, #tpu.memory_space<vmem>>, vector<16x128xf32>
      %c0_12 = arith.constant 0 : index
      %c0_13 = arith.constant 0 : index
      %13 = vector.load %arg5[%c0_12, %c0_13] : memref<1x128xf32, #tpu.memory_space<vmem>>, vector<1x128xf32>
      %14 = vector.broadcast %13 : vector<1x128xf32> to vector<16x128xf32>
      %15 = arith.addf %12, %14 : vector<16x128xf32>
      %c0_14 = arith.constant 0 : index
      %c0_15 = arith.constant 0 : index
      %16 = vector.load %arg6[%c0_14, %c0_15] : memref<16x128xf32, #tpu.memory_space<vmem>>, vector<16x128xf32>
      tpu.vector_store %arg6[%c0_14, %c0_15], %15 {strides = array<i32>} : memref<16x128xf32, #tpu.memory_space<vmem>>, vector<16x128xf32>,
    } else {
    }
    return
  }
  func.func @transform_0(%arg0: i32, %arg1: i32, %arg2: i32) -> (i32, i32) {
    %c0_i32 = arith.constant 0 : i32
    return %arg0, %arg2 : i32, i32
  }
  func.func @transform_1(%arg0: i32, %arg1: i32, %arg2: i32) -> (i32, i32) {
    %c0_i32 = arith.constant 0 : i32
    return %arg2, %arg1 : i32, i32
  }
  func.func @transform_2(%arg0: i32, %arg1: i32, %arg2: i32) -> (i32, i32) {
    %c0_i32 = arith.constant 0 : i32
    %c0_i32_0 = arith.constant 0 : i32
    return %c0_i32, %arg1 : i32, i32
  }
  func.func @transform_3(%arg0: i32, %arg1: i32, %arg2: i32) -> (i32, i32) {
    %c0_i32 = arith.constant 0 : i32
    return %arg0, %arg1 : i32, i32
  }
}

module attributes {stable_mosaic.version = 11 : i64} {
  func.func @_attention_kernel(%arg0: i32, %arg1: i32, %arg2: memref<1x8x128xf32, #tpu.memory_space<vmem>>, %arg3: memref<1x8x128xf32, #tpu.memory_space<vmem>>, %arg4: memref<1x8x128xf32, #tpu.memory_space<vmem>>, %arg5: memref<1x8x128xf32, #tpu.memory_space<vmem>>, %arg6: memref<1x8x128xf32, #tpu.memory_space<vmem>>) attributes {dimension_semantics = [#tpu.dimension_semantics<parallel>, #tpu.dimension_semantics<parallel>], iteration_bounds = array<i64: 2, 1>, scalar_prefetch = 0 : i64, scratch_operands = 0 : i64, tpu.core_type = #tpu.core_type<tc>, window_params = [{transform_indices = @transform_0, window_bounds = array<i64: 1, 8, 128>}, {transform_indices = @transform_1, window_bounds = array<i64: 1, 8, 128>}, {transform_indices = @transform_2, window_bounds = array<i64: 1, 8, 128>}, {transform_indices = @transform_3, window_bounds = array<i64: 1, 8, 128>}, {transform_indices = @transform_4, window_bounds = array<i64: 1, 8, 128>}]} {
    %c0 = arith.constant 0 : index
    %c0_0 = arith.constant 0 : index
    %c0_1 = arith.constant 0 : index
    %0 = vector.load %arg2[%c0, %c0_0, %c0_1] : memref<1x8x128xf32, #tpu.memory_space<vmem>>, vector<1x8x128xf32>
    %1 = vector.shape_cast %0 : vector<1x8x128xf32> to vector<8x128xf32>
    %c0_2 = arith.constant 0 : index
    %c0_3 = arith.constant 0 : index
    %c0_4 = arith.constant 0 : index
    %2 = vector.load %arg3[%c0_2, %c0_3, %c0_4] : memref<1x8x128xf32, #tpu.memory_space<vmem>>, vector<1x8x128xf32>
    %3 = vector.shape_cast %2 : vector<1x8x128xf32> to vector<8x128xf32>
    %c0_5 = arith.constant 0 : index
    %c0_6 = arith.constant 0 : index
    %c0_7 = arith.constant 0 : index
    %4 = vector.load %arg4[%c0_5, %c0_6, %c0_7] : memref<1x8x128xf32, #tpu.memory_space<vmem>>, vector<1x8x128xf32>
    %5 = vector.shape_cast %4 : vector<1x8x128xf32> to vector<8x128xf32>
    %c0_8 = arith.constant 0 : index
    %c0_9 = arith.constant 0 : index
    %c0_10 = arith.constant 0 : index
    %6 = vector.load %arg5[%c0_8, %c0_9, %c0_10] : memref<1x8x128xf32, #tpu.memory_space<vmem>>, vector<1x8x128xf32>
    %7 = vector.shape_cast %6 : vector<1x8x128xf32> to vector<8x128xf32>
    %8 = vector.extract_strided_slice %1 {offsets = [0, 0], sizes = [8, 64], strides = [1, 1]} : vector<8x128xf32> to vector<8x64xf32>
    %9 = vector.extract_strided_slice %5 {offsets = [0, 0], sizes = [8, 64], strides = [1, 1]} : vector<8x128xf32> to vector<8x64xf32>
    %10 = vector.extract_strided_slice %7 {offsets = [0, 0], sizes = [8, 64], strides = [1, 1]} : vector<8x128xf32> to vector<8x64xf32>
    %11 = vector.extract_strided_slice %3 {offsets = [0, 0], sizes = [8, 64], strides = [1, 1]} : vector<8x128xf32> to vector<8x64xf32>
    %cst = arith.constant dense<0.000000e+00> : vector<8x8xf32>
    %12 = tpu.matmul %8, %9, %cst {dimension_numbers = #tpu.dot_dimension_numbers<[1], [1], [0], [0], [0, 0, 1, 0], [], []>} : vector<8x64xf32>, vector<8x64xf32>, vector<8x8xf32> -> vector<8x8xf32>
    %cst_11 = arith.constant dense<0xFF800000> : vector<8xf32>
    %13 = vector.multi_reduction <maximumf>, %12, %cst_11 [1] : vector<8x8xf32> to vector<8xf32>
    %14 = vector.shape_cast %13 : vector<8xf32> to vector<8x1xf32>
    %15 = vector.broadcast %14 : vector<8x1xf32> to vector<8x8xf32>
    %16 = arith.subf %12, %15 : vector<8x8xf32>
    %17 = math.exp %16 : vector<8x8xf32>
    %cst_12 = arith.constant dense<0.000000e+00> : vector<8xf32>
    %18 = vector.multi_reduction <add>, %17, %cst_12 [1] : vector<8x8xf32> to vector<8xf32>
    %19 = vector.shape_cast %18 : vector<8xf32> to vector<8x1xf32>
    %20 = tpu.reciprocal %19 {approx = true} : vector<8x1xf32> -> vector<8x1xf32>
    %21 = vector.broadcast %20 : vector<8x1xf32> to vector<8x8xf32>
    %22 = arith.mulf %17, %21 : vector<8x8xf32>
    %cst_13 = arith.constant dense<0.000000e+00> : vector<8x64xf32>
    %23 = tpu.matmul %22, %10, %cst_13 {dimension_numbers = #tpu.dot_dimension_numbers<[1], [0], [0], [1], [0, 0, 1, 1], [], []>} : vector<8x8xf32>, vector<8x64xf32>, vector<8x64xf32> -> vector<8x64xf32>
    %24 = arith.mulf %23, %11 : vector<8x64xf32>
    %25 = vector.extract_strided_slice %1 {offsets = [0, 64], sizes = [8, 64], strides = [1, 1]} : vector<8x128xf32> to vector<8x64xf32>
    %26 = vector.extract_strided_slice %5 {offsets = [0, 64], sizes = [8, 64], strides = [1, 1]} : vector<8x128xf32> to vector<8x64xf32>
    %27 = vector.extract_strided_slice %7 {offsets = [0, 64], sizes = [8, 64], strides = [1, 1]} : vector<8x128xf32> to vector<8x64xf32>
    %28 = vector.extract_strided_slice %3 {offsets = [0, 64], sizes = [8, 64], strides = [1, 1]} : vector<8x128xf32> to vector<8x64xf32>
    %cst_14 = arith.constant dense<0.000000e+00> : vector<8x8xf32>
    %29 = tpu.matmul %25, %26, %cst_14 {dimension_numbers = #tpu.dot_dimension_numbers<[1], [1], [0], [0], [0, 0, 1, 0], [], []>} : vector<8x64xf32>, vector<8x64xf32>, vector<8x8xf32> -> vector<8x8xf32>
    %cst_15 = arith.constant dense<0xFF800000> : vector<8xf32>
    %30 = vector.multi_reduction <maximumf>, %29, %cst_15 [1] : vector<8x8xf32> to vector<8xf32>
    %31 = vector.shape_cast %30 : vector<8xf32> to vector<8x1xf32>
    %32 = vector.broadcast %31 : vector<8x1xf32> to vector<8x8xf32>
    %33 = arith.subf %29, %32 : vector<8x8xf32>
    %34 = math.exp %33 : vector<8x8xf32>
    %cst_16 = arith.constant dense<0.000000e+00> : vector<8xf32>
    %35 = vector.multi_reduction <add>, %34, %cst_16 [1] : vector<8x8xf32> to vector<8xf32>
    %36 = vector.shape_cast %35 : vector<8xf32> to vector<8x1xf32>
    %37 = tpu.reciprocal %36 {approx = true} : vector<8x1xf32> -> vector<8x1xf32>
    %38 = vector.broadcast %37 : vector<8x1xf32> to vector<8x8xf32>
    %39 = arith.mulf %34, %38 : vector<8x8xf32>
    %cst_17 = arith.constant dense<0.000000e+00> : vector<8x64xf32>
    %40 = tpu.matmul %39, %27, %cst_17 {dimension_numbers = #tpu.dot_dimension_numbers<[1], [0], [0], [1], [0, 0, 1, 1], [], []>} : vector<8x8xf32>, vector<8x64xf32>, vector<8x64xf32> -> vector<8x64xf32>
    %41 = arith.mulf %40, %28 : vector<8x64xf32>
    %42 = tpu.concatenate %24, %41 in 1 : vector<8x64xf32>, vector<8x64xf32> -> vector<8x128xf32>
    %c0_18 = arith.constant 0 : index
    %c0_19 = arith.constant 0 : index
    %c0_20 = arith.constant 0 : index
    %43 = vector.load %arg6[%c0_18, %c0_19, %c0_20] : memref<1x8x128xf32, #tpu.memory_space<vmem>>, vector<1x8x128xf32>
    %44 = vector.shape_cast %43 : vector<1x8x128xf32> to vector<8x128xf32>
    %45 = vector.shape_cast %42 : vector<8x128xf32> to vector<1x8x128xf32>
    tpu.vector_store %arg6[%c0_18, %c0_19, %c0_20], %45 {strides = array<i32>} : memref<1x8x128xf32, #tpu.memory_space<vmem>>, vector<1x8x128xf32>,
    return
  }
  func.func @transform_0(%arg0: i32, %arg1: i32) -> (i32, i32, i32) {
    %c0_i32 = arith.constant 0 : i32
    %0 = arith.addi %c0_i32, %arg1 : i32
    %c0_i32_0 = arith.constant 0 : i32
    %c0_i32_1 = arith.constant 0 : i32
    return %arg0, %c0_i32_0, %0 : i32, i32, i32
  }
  func.func @transform_1(%arg0: i32, %arg1: i32) -> (i32, i32, i32) {
    %c1_i32 = arith.constant 1 : i32
    %0 = arith.addi %c1_i32, %arg1 : i32
    %c0_i32 = arith.constant 0 : i32
    %c0_i32_0 = arith.constant 0 : i32
    return %arg0, %c0_i32, %0 : i32, i32, i32
  }
  func.func @transform_2(%arg0: i32, %arg1: i32) -> (i32, i32, i32) {
    %c0_i32 = arith.constant 0 : i32
    %0 = arith.addi %c0_i32, %arg1 : i32
    %c0_i32_0 = arith.constant 0 : i32
    %c0_i32_1 = arith.constant 0 : i32
    return %arg0, %c0_i32_0, %0 : i32, i32, i32
  }
  func.func @transform_3(%arg0: i32, %arg1: i32) -> (i32, i32, i32) {
    %c0_i32 = arith.constant 0 : i32
    %0 = arith.addi %c0_i32, %arg1 : i32
    %c0_i32_0 = arith.constant 0 : i32
    %c0_i32_1 = arith.constant 0 : i32
    return %arg0, %c0_i32_0, %0 : i32, i32, i32
  }
  func.func @transform_4(%arg0: i32, %arg1: i32) -> (i32, i32, i32) {
    %c0_i32 = arith.constant 0 : i32
    %0 = arith.addi %c0_i32, %arg1 : i32
    %c0_i32_0 = arith.constant 0 : i32
    %c0_i32_1 = arith.constant 0 : i32
    return %arg0, %c0_i32_0, %0 : i32, i32, i32
  }
}

module attributes {stable_mosaic.version = 11 : i64} {
  func.func @_linear_kernel(%arg0: i32, %arg1: i32, %arg2: i32, %arg3: memref<16x128xf32, #tpu.memory_space<vmem>>, %arg4: memref<128x128xf32, #tpu.memory_space<vmem>>, %arg5: memref<1x128xf32, #tpu.memory_space<vmem>>, %arg6: memref<16x128xf32, #tpu.memory_space<vmem>>, %arg7: memref<16x128xf32, #tpu.memory_space<vmem>>) attributes {dimension_semantics = [#tpu.dimension_semantics<parallel>, #tpu.dimension_semantics<parallel>, #tpu.dimension_semantics<arbitrary>], iteration_bounds = array<i64: 1, 1, 1>, scalar_prefetch = 0 : i64, scratch_operands = 1 : i64, tpu.core_type = #tpu.core_type<tc>, window_params = [{transform_indices = @transform_0, window_bounds = array<i64: 16, 128>}, {transform_indices = @transform_1, window_bounds = array<i64: 128, 128>}, {transform_indices = @transform_2, window_bounds = array<i64: 1, 128>}, {transform_indices = @transform_3, window_bounds = array<i64: 16, 128>}]} {
    %c0_i32 = arith.constant 0 : i32
    %0 = arith.cmpi eq, %arg2, %c0_i32 : i32
    %1 = arith.extui %0 : i1 to i32
    %c0_i32_0 = arith.constant 0 : i32
    %2 = arith.cmpi ne, %1, %c0_i32_0 : i32
    scf.if %2 {
      %cst_10 = arith.constant 0.000000e+00 : f32
      %12 = vector.broadcast %cst_10 : f32 to vector<16x128xf32>
      %c0_11 = arith.constant 0 : index
      %c0_12 = arith.constant 0 : index
      %13 = vector.load %arg7[%c0_11, %c0_12] : memref<16x128xf32, #tpu.memory_space<vmem>>, vector<16x128xf32>
      tpu.vector_store %arg7[%c0_11, %c0_12], %12 {strides = array<i32>} : memref<16x128xf32, #tpu.memory_space<vmem>>, vector<16x128xf32>,
    } else {
    }
    %c0 = arith.constant 0 : index
    %c0_1 = arith.constant 0 : index
    %3 = vector.load %arg7[%c0, %c0_1] : memref<16x128xf32, #tpu.memory_space<vmem>>, vector<16x128xf32>
    %c0_2 = arith.constant 0 : index
    %c0_3 = arith.constant 0 : index
    %4 = vector.load %arg3[%c0_2, %c0_3] : memref<16x128xf32, #tpu.memory_space<vmem>>, vector<16x128xf32>
    %c0_4 = arith.constant 0 : index
    %c0_5 = arith.constant 0 : index
    %5 = vector.load %arg4[%c0_4, %c0_5] : memref<128x128xf32, #tpu.memory_space<vmem>>, vector<128x128xf32>
    %cst = arith.constant dense<0.000000e+00> : vector<16x128xf32>
    %6 = tpu.matmul %4, %5, %cst {dimension_numbers = #tpu.dot_dimension_numbers<[1], [0], [0], [1], [0, 0, 1, 1], [], []>} : vector<16x128xf32>, vector<128x128xf32>, vector<16x128xf32> -> vector<16x128xf32>
    %7 = arith.addf %3, %6 : vector<16x128xf32>
    %c0_6 = arith.constant 0 : index
    %c0_7 = arith.constant 0 : index
    %8 = vector.load %arg7[%c0_6, %c0_7] : memref<16x128xf32, #tpu.memory_space<vmem>>, vector<16x128xf32>
    tpu.vector_store %arg7[%c0_6, %c0_7], %7 {strides = array<i32>} : memref<16x128xf32, #tpu.memory_space<vmem>>, vector<16x128xf32>,
    %c0_i32_8 = arith.constant 0 : i32
    %9 = arith.cmpi eq, %arg2, %c0_i32_8 : i32
    %10 = arith.extui %9 : i1 to i32
    %c0_i32_9 = arith.constant 0 : i32
    %11 = arith.cmpi ne, %10, %c0_i32_9 : i32
    scf.if %11 {
      %c0_10 = arith.constant 0 : index
      %c0_11 = arith.constant 0 : index
      %12 = vector.load %arg7[%c0_10, %c0_11] : memref<16x128xf32, #tpu.memory_space<vmem>>, vector<16x128xf32>
      %c0_12 = arith.constant 0 : index
      %c0_13 = arith.constant 0 : index
      %13 = vector.load %arg5[%c0_12, %c0_13] : memref<1x128xf32, #tpu.memory_space<vmem>>, vector<1x128xf32>
      %14 = vector.broadcast %13 : vector<1x128xf32> to vector<16x128xf32>
      %15 = arith.addf %12, %14 : vector<16x128xf32>
      %c0_14 = arith.constant 0 : index
      %c0_15 = arith.constant 0 : index
      %16 = vector.load %arg6[%c0_14, %c0_15] : memref<16x128xf32, #tpu.memory_space<vmem>>, vector<16x128xf32>
      tpu.vector_store %arg6[%c0_14, %c0_15], %15 {strides = array<i32>} : memref<16x128xf32, #tpu.memory_space<vmem>>, vector<16x128xf32>,
    } else {
    }
    return
  }
  func.func @transform_0(%arg0: i32, %arg1: i32, %arg2: i32) -> (i32, i32) {
    %c0_i32 = arith.constant 0 : i32
    return %arg0, %arg2 : i32, i32
  }
  func.func @transform_1(%arg0: i32, %arg1: i32, %arg2: i32) -> (i32, i32) {
    %c0_i32 = arith.constant 0 : i32
    return %arg2, %arg1 : i32, i32
  }
  func.func @transform_2(%arg0: i32, %arg1: i32, %arg2: i32) -> (i32, i32) {
    %c0_i32 = arith.constant 0 : i32
    %c0_i32_0 = arith.constant 0 : i32
    return %c0_i32, %arg1 : i32, i32
  }
  func.func @transform_3(%arg0: i32, %arg1: i32, %arg2: i32) -> (i32, i32) {
    %c0_i32 = arith.constant 0 : i32
    return %arg0, %arg1 : i32, i32
  }
}

module attributes {stable_mosaic.version = 11 : i64} {
  func.func @_linear_kernel(%arg0: i32, %arg1: i32, %arg2: i32, %arg3: memref<16x128xf32, #tpu.memory_space<vmem>>, %arg4: memref<128x256xf32, #tpu.memory_space<vmem>>, %arg5: memref<1x256xf32, #tpu.memory_space<vmem>>, %arg6: memref<16x256xf32, #tpu.memory_space<vmem>>, %arg7: memref<16x256xf32, #tpu.memory_space<vmem>>) attributes {dimension_semantics = [#tpu.dimension_semantics<parallel>, #tpu.dimension_semantics<parallel>, #tpu.dimension_semantics<arbitrary>], iteration_bounds = array<i64: 1, 1, 1>, scalar_prefetch = 0 : i64, scratch_operands = 1 : i64, tpu.core_type = #tpu.core_type<tc>, window_params = [{transform_indices = @transform_0, window_bounds = array<i64: 16, 128>}, {transform_indices = @transform_1, window_bounds = array<i64: 128, 256>}, {transform_indices = @transform_2, window_bounds = array<i64: 1, 256>}, {transform_indices = @transform_3, window_bounds = array<i64: 16, 256>}]} {
    %c0_i32 = arith.constant 0 : i32
    %0 = arith.cmpi eq, %arg2, %c0_i32 : i32
    %1 = arith.extui %0 : i1 to i32
    %c0_i32_0 = arith.constant 0 : i32
    %2 = arith.cmpi ne, %1, %c0_i32_0 : i32
    scf.if %2 {
      %cst_10 = arith.constant 0.000000e+00 : f32
      %12 = vector.broadcast %cst_10 : f32 to vector<16x256xf32>
      %c0_11 = arith.constant 0 : index
      %c0_12 = arith.constant 0 : index
      %13 = vector.load %arg7[%c0_11, %c0_12] : memref<16x256xf32, #tpu.memory_space<vmem>>, vector<16x256xf32>
      tpu.vector_store %arg7[%c0_11, %c0_12], %12 {strides = array<i32>} : memref<16x256xf32, #tpu.memory_space<vmem>>, vector<16x256xf32>,
    } else {
    }
    %c0 = arith.constant 0 : index
    %c0_1 = arith.constant 0 : index
    %3 = vector.load %arg7[%c0, %c0_1] : memref<16x256xf32, #tpu.memory_space<vmem>>, vector<16x256xf32>
    %c0_2 = arith.constant 0 : index
    %c0_3 = arith.constant 0 : index
    %4 = vector.load %arg3[%c0_2, %c0_3] : memref<16x128xf32, #tpu.memory_space<vmem>>, vector<16x128xf32>
    %c0_4 = arith.constant 0 : index
    %c0_5 = arith.constant 0 : index
    %5 = vector.load %arg4[%c0_4, %c0_5] : memref<128x256xf32, #tpu.memory_space<vmem>>, vector<128x256xf32>
    %cst = arith.constant dense<0.000000e+00> : vector<16x256xf32>
    %6 = tpu.matmul %4, %5, %cst {dimension_numbers = #tpu.dot_dimension_numbers<[1], [0], [0], [1], [0, 0, 1, 1], [], []>} : vector<16x128xf32>, vector<128x256xf32>, vector<16x256xf32> -> vector<16x256xf32>
    %7 = arith.addf %3, %6 : vector<16x256xf32>
    %c0_6 = arith.constant 0 : index
    %c0_7 = arith.constant 0 : index
    %8 = vector.load %arg7[%c0_6, %c0_7] : memref<16x256xf32, #tpu.memory_space<vmem>>, vector<16x256xf32>
    tpu.vector_store %arg7[%c0_6, %c0_7], %7 {strides = array<i32>} : memref<16x256xf32, #tpu.memory_space<vmem>>, vector<16x256xf32>,
    %c0_i32_8 = arith.constant 0 : i32
    %9 = arith.cmpi eq, %arg2, %c0_i32_8 : i32
    %10 = arith.extui %9 : i1 to i32
    %c0_i32_9 = arith.constant 0 : i32
    %11 = arith.cmpi ne, %10, %c0_i32_9 : i32
    scf.if %11 {
      %c0_10 = arith.constant 0 : index
      %c0_11 = arith.constant 0 : index
      %12 = vector.load %arg7[%c0_10, %c0_11] : memref<16x256xf32, #tpu.memory_space<vmem>>, vector<16x256xf32>
      %c0_12 = arith.constant 0 : index
      %c0_13 = arith.constant 0 : index
      %13 = vector.load %arg5[%c0_12, %c0_13] : memref<1x256xf32, #tpu.memory_space<vmem>>, vector<1x256xf32>
      %14 = vector.broadcast %13 : vector<1x256xf32> to vector<16x256xf32>
      %15 = arith.addf %12, %14 : vector<16x256xf32>
      %c0_14 = arith.constant 0 : index
      %c0_15 = arith.constant 0 : index
      %16 = vector.load %arg6[%c0_14, %c0_15] : memref<16x256xf32, #tpu.memory_space<vmem>>, vector<16x256xf32>
      tpu.vector_store %arg6[%c0_14, %c0_15], %15 {strides = array<i32>} : memref<16x256xf32, #tpu.memory_space<vmem>>, vector<16x256xf32>,
    } else {
    }
    return
  }
  func.func @transform_0(%arg0: i32, %arg1: i32, %arg2: i32) -> (i32, i32) {
    %c0_i32 = arith.constant 0 : i32
    return %arg0, %arg2 : i32, i32
  }
  func.func @transform_1(%arg0: i32, %arg1: i32, %arg2: i32) -> (i32, i32) {
    %c0_i32 = arith.constant 0 : i32
    return %arg2, %arg1 : i32, i32
  }
  func.func @transform_2(%arg0: i32, %arg1: i32, %arg2: i32) -> (i32, i32) {
    %c0_i32 = arith.constant 0 : i32
    %c0_i32_0 = arith.constant 0 : i32
    return %c0_i32, %arg1 : i32, i32
  }
  func.func @transform_3(%arg0: i32, %arg1: i32, %arg2: i32) -> (i32, i32) {
    %c0_i32 = arith.constant 0 : i32
    return %arg0, %arg1 : i32, i32
  }
}

module attributes {stable_mosaic.version = 11 : i64} {
  func.func @_add_layernorm_kernel(%arg0: i32, %arg1: memref<16x128xf32, #tpu.memory_space<vmem>>, %arg2: memref<16x128xf32, #tpu.memory_space<vmem>>, %arg3: memref<1x128xf32, #tpu.memory_space<vmem>>, %arg4: memref<1x128xf32, #tpu.memory_space<vmem>>, %arg5: memref<16x128xf32, #tpu.memory_space<vmem>>) attributes {dimension_semantics = [#tpu.dimension_semantics<parallel>], iteration_bounds = array<i64: 1>, scalar_prefetch = 0 : i64, scratch_operands = 0 : i64, tpu.core_type = #tpu.core_type<tc>, window_params = [{transform_indices = @transform_0, window_bounds = array<i64: 16, 128>}, {transform_indices = @transform_1, window_bounds = array<i64: 16, 128>}, {pipeline_mode = #tpu.pipeline_mode<synchronous>, transform_indices = @transform_2, window_bounds = array<i64: 1, 128>}, {pipeline_mode = #tpu.pipeline_mode<synchronous>, transform_indices = @transform_3, window_bounds = array<i64: 1, 128>}, {transform_indices = @transform_4, window_bounds = array<i64: 16, 128>}]} {
    %c0 = arith.constant 0 : index
    %c0_0 = arith.constant 0 : index
    %0 = vector.load %arg1[%c0, %c0_0] : memref<16x128xf32, #tpu.memory_space<vmem>>, vector<16x128xf32>
    %c0_1 = arith.constant 0 : index
    %c0_2 = arith.constant 0 : index
    %1 = vector.load %arg2[%c0_1, %c0_2] : memref<16x128xf32, #tpu.memory_space<vmem>>, vector<16x128xf32>
    %2 = arith.addf %0, %1 : vector<16x128xf32>
    %cst = arith.constant dense<0.000000e+00> : vector<16xf32>
    %3 = vector.multi_reduction <add>, %2, %cst [1] : vector<16x128xf32> to vector<16xf32>
    %4 = vector.shape_cast %3 : vector<16xf32> to vector<16x1xf32>
    %cst_3 = arith.constant 1.280000e+02 : f32
    %5 = vector.broadcast %cst_3 : f32 to vector<16x1xf32>
    %6 = arith.divf %4, %5 : vector<16x1xf32>
    %7 = vector.broadcast %6 : vector<16x1xf32> to vector<16x128xf32>
    %8 = arith.subf %2, %7 : vector<16x128xf32>
    %9 = arith.mulf %8, %8 : vector<16x128xf32>
    %cst_4 = arith.constant dense<0.000000e+00> : vector<16xf32>
    %10 = vector.multi_reduction <add>, %9, %cst_4 [1] : vector<16x128xf32> to vector<16xf32>
    %11 = vector.shape_cast %10 : vector<16xf32> to vector<16x1xf32>
    %cst_5 = arith.constant 1.280000e+02 : f32
    %12 = vector.broadcast %cst_5 : f32 to vector<16x1xf32>
    %13 = arith.divf %11, %12 : vector<16x1xf32>
    %cst_6 = arith.constant 9.99999974E-6 : f32
    %14 = vector.broadcast %cst_6 : f32 to vector<16x1xf32>
    %15 = arith.addf %13, %14 : vector<16x1xf32>
    %16 = math.rsqrt %15 : vector<16x1xf32>
    %17 = vector.broadcast %16 : vector<16x1xf32> to vector<16x128xf32>
    %18 = arith.mulf %8, %17 : vector<16x128xf32>
    %c0_7 = arith.constant 0 : index
    %c0_8 = arith.constant 0 : index
    %19 = vector.load %arg3[%c0_7, %c0_8] : memref<1x128xf32, #tpu.memory_space<vmem>>, vector<1x128xf32>
    %20 = vector.broadcast %19 : vector<1x128xf32> to vector<16x128xf32>
    %21 = arith.mulf %18, %20 : vector<16x128xf32>
    %c0_9 = arith.constant 0 : index
    %c0_10 = arith.constant 0 : index
    %22 = vector.load %arg4[%c0_9, %c0_10] : memref<1x128xf32, #tpu.memory_space<vmem>>, vector<1x128xf32>
    %23 = vector.broadcast %22 : vector<1x128xf32> to vector<16x128xf32>
    %24 = arith.addf %21, %23 : vector<16x128xf32>
    %c0_11 = arith.constant 0 : index
    %c0_12 = arith.constant 0 : index
    %25 = vector.load %arg5[%c0_11, %c0_12] : memref<16x128xf32, #tpu.memory_space<vmem>>, vector<16x128xf32>
    tpu.vector_store %arg5[%c0_11, %c0_12], %24 {strides = array<i32>} : memref<16x128xf32, #tpu.memory_space<vmem>>, vector<16x128xf32>,
    return
  }
  func.func @transform_0(%arg0: i32) -> (i32, i32) {
    %c0_i32 = arith.constant 0 : i32
    %c0_i32_0 = arith.constant 0 : i32
    return %arg0, %c0_i32 : i32, i32
  }
  func.func @transform_1(%arg0: i32) -> (i32, i32) {
    %c0_i32 = arith.constant 0 : i32
    %c0_i32_0 = arith.constant 0 : i32
    return %arg0, %c0_i32 : i32, i32
  }
  func.func @transform_2(%arg0: i32) -> (i32, i32) {
    %c0_i32 = arith.constant 0 : i32
    %c0_i32_0 = arith.constant 0 : i32
    %c0_i32_1 = arith.constant 0 : i32
    return %c0_i32, %c0_i32_0 : i32, i32
  }
  func.func @transform_3(%arg0: i32) -> (i32, i32) {
    %c0_i32 = arith.constant 0 : i32
    %c0_i32_0 = arith.constant 0 : i32
    %c0_i32_1 = arith.constant 0 : i32
    return %c0_i32, %c0_i32_0 : i32, i32
  }
  func.func @transform_4(%arg0: i32) -> (i32, i32) {
    %c0_i32 = arith.constant 0 : i32
    %c0_i32_0 = arith.constant 0 : i32
    return %arg0, %c0_i32 : i32, i32
  }
}

module attributes {stable_mosaic.version = 11 : i64} {
  func.func @_linear_kernel(%arg0: i32, %arg1: i32, %arg2: i32, %arg3: memref<16x512xf32, #tpu.memory_space<vmem>>, %arg4: memref<512x128xf32, #tpu.memory_space<vmem>>, %arg5: memref<1x128xf32, #tpu.memory_space<vmem>>, %arg6: memref<16x128xf32, #tpu.memory_space<vmem>>, %arg7: memref<16x128xf32, #tpu.memory_space<vmem>>) attributes {dimension_semantics = [#tpu.dimension_semantics<parallel>, #tpu.dimension_semantics<parallel>, #tpu.dimension_semantics<arbitrary>], iteration_bounds = array<i64: 1, 1, 1>, scalar_prefetch = 0 : i64, scratch_operands = 1 : i64, tpu.core_type = #tpu.core_type<tc>, window_params = [{transform_indices = @transform_0, window_bounds = array<i64: 16, 512>}, {transform_indices = @transform_1, window_bounds = array<i64: 512, 128>}, {transform_indices = @transform_2, window_bounds = array<i64: 1, 128>}, {transform_indices = @transform_3, window_bounds = array<i64: 16, 128>}]} {
    %c0_i32 = arith.constant 0 : i32
    %0 = arith.cmpi eq, %arg2, %c0_i32 : i32
    %1 = arith.extui %0 : i1 to i32
    %c0_i32_0 = arith.constant 0 : i32
    %2 = arith.cmpi ne, %1, %c0_i32_0 : i32
    scf.if %2 {
      %cst_10 = arith.constant 0.000000e+00 : f32
      %12 = vector.broadcast %cst_10 : f32 to vector<16x128xf32>
      %c0_11 = arith.constant 0 : index
      %c0_12 = arith.constant 0 : index
      %13 = vector.load %arg7[%c0_11, %c0_12] : memref<16x128xf32, #tpu.memory_space<vmem>>, vector<16x128xf32>
      tpu.vector_store %arg7[%c0_11, %c0_12], %12 {strides = array<i32>} : memref<16x128xf32, #tpu.memory_space<vmem>>, vector<16x128xf32>,
    } else {
    }
    %c0 = arith.constant 0 : index
    %c0_1 = arith.constant 0 : index
    %3 = vector.load %arg7[%c0, %c0_1] : memref<16x128xf32, #tpu.memory_space<vmem>>, vector<16x128xf32>
    %c0_2 = arith.constant 0 : index
    %c0_3 = arith.constant 0 : index
    %4 = vector.load %arg3[%c0_2, %c0_3] : memref<16x512xf32, #tpu.memory_space<vmem>>, vector<16x512xf32>
    %c0_4 = arith.constant 0 : index
    %c0_5 = arith.constant 0 : index
    %5 = vector.load %arg4[%c0_4, %c0_5] : memref<512x128xf32, #tpu.memory_space<vmem>>, vector<512x128xf32>
    %cst = arith.constant dense<0.000000e+00> : vector<16x128xf32>
    %6 = tpu.matmul %4, %5, %cst {dimension_numbers = #tpu.dot_dimension_numbers<[1], [0], [0], [1], [0, 0, 1, 1], [], []>} : vector<16x512xf32>, vector<512x128xf32>, vector<16x128xf32> -> vector<16x128xf32>
    %7 = arith.addf %3, %6 : vector<16x128xf32>
    %c0_6 = arith.constant 0 : index
    %c0_7 = arith.constant 0 : index
    %8 = vector.load %arg7[%c0_6, %c0_7] : memref<16x128xf32, #tpu.memory_space<vmem>>, vector<16x128xf32>
    tpu.vector_store %arg7[%c0_6, %c0_7], %7 {strides = array<i32>} : memref<16x128xf32, #tpu.memory_space<vmem>>, vector<16x128xf32>,
    %c0_i32_8 = arith.constant 0 : i32
    %9 = arith.cmpi eq, %arg2, %c0_i32_8 : i32
    %10 = arith.extui %9 : i1 to i32
    %c0_i32_9 = arith.constant 0 : i32
    %11 = arith.cmpi ne, %10, %c0_i32_9 : i32
    scf.if %11 {
      %c0_10 = arith.constant 0 : index
      %c0_11 = arith.constant 0 : index
      %12 = vector.load %arg7[%c0_10, %c0_11] : memref<16x128xf32, #tpu.memory_space<vmem>>, vector<16x128xf32>
      %c0_12 = arith.constant 0 : index
      %c0_13 = arith.constant 0 : index
      %13 = vector.load %arg5[%c0_12, %c0_13] : memref<1x128xf32, #tpu.memory_space<vmem>>, vector<1x128xf32>
      %14 = vector.broadcast %13 : vector<1x128xf32> to vector<16x128xf32>
      %15 = arith.addf %12, %14 : vector<16x128xf32>
      %c0_14 = arith.constant 0 : index
      %c0_15 = arith.constant 0 : index
      %16 = vector.load %arg6[%c0_14, %c0_15] : memref<16x128xf32, #tpu.memory_space<vmem>>, vector<16x128xf32>
      tpu.vector_store %arg6[%c0_14, %c0_15], %15 {strides = array<i32>} : memref<16x128xf32, #tpu.memory_space<vmem>>, vector<16x128xf32>,
    } else {
    }
    return
  }
  func.func @transform_0(%arg0: i32, %arg1: i32, %arg2: i32) -> (i32, i32) {
    %c0_i32 = arith.constant 0 : i32
    return %arg0, %arg2 : i32, i32
  }
  func.func @transform_1(%arg0: i32, %arg1: i32, %arg2: i32) -> (i32, i32) {
    %c0_i32 = arith.constant 0 : i32
    return %arg2, %arg1 : i32, i32
  }
  func.func @transform_2(%arg0: i32, %arg1: i32, %arg2: i32) -> (i32, i32) {
    %c0_i32 = arith.constant 0 : i32
    %c0_i32_0 = arith.constant 0 : i32
    return %c0_i32, %arg1 : i32, i32
  }
  func.func @transform_3(%arg0: i32, %arg1: i32, %arg2: i32) -> (i32, i32) {
    %c0_i32 = arith.constant 0 : i32
    return %arg0, %arg1 : i32, i32
  }
}

module attributes {stable_mosaic.version = 11 : i64} {
  func.func @_linear_kernel(%arg0: i32, %arg1: i32, %arg2: i32, %arg3: memref<16x128xf32, #tpu.memory_space<vmem>>, %arg4: memref<128x256xf32, #tpu.memory_space<vmem>>, %arg5: memref<1x256xf32, #tpu.memory_space<vmem>>, %arg6: memref<16x256xf32, #tpu.memory_space<vmem>>, %arg7: memref<16x256xf32, #tpu.memory_space<vmem>>) attributes {dimension_semantics = [#tpu.dimension_semantics<parallel>, #tpu.dimension_semantics<parallel>, #tpu.dimension_semantics<arbitrary>], iteration_bounds = array<i64: 1, 2, 1>, scalar_prefetch = 0 : i64, scratch_operands = 1 : i64, tpu.core_type = #tpu.core_type<tc>, window_params = [{transform_indices = @transform_0, window_bounds = array<i64: 16, 128>}, {transform_indices = @transform_1, window_bounds = array<i64: 128, 256>}, {transform_indices = @transform_2, window_bounds = array<i64: 1, 256>}, {transform_indices = @transform_3, window_bounds = array<i64: 16, 256>}]} {
    %c0_i32 = arith.constant 0 : i32
    %0 = arith.cmpi eq, %arg2, %c0_i32 : i32
    %1 = arith.extui %0 : i1 to i32
    %c0_i32_0 = arith.constant 0 : i32
    %2 = arith.cmpi ne, %1, %c0_i32_0 : i32
    scf.if %2 {
      %cst_10 = arith.constant 0.000000e+00 : f32
      %12 = vector.broadcast %cst_10 : f32 to vector<16x256xf32>
      %c0_11 = arith.constant 0 : index
      %c0_12 = arith.constant 0 : index
      %13 = vector.load %arg7[%c0_11, %c0_12] : memref<16x256xf32, #tpu.memory_space<vmem>>, vector<16x256xf32>
      tpu.vector_store %arg7[%c0_11, %c0_12], %12 {strides = array<i32>} : memref<16x256xf32, #tpu.memory_space<vmem>>, vector<16x256xf32>,
    } else {
    }
    %c0 = arith.constant 0 : index
    %c0_1 = arith.constant 0 : index
    %3 = vector.load %arg7[%c0, %c0_1] : memref<16x256xf32, #tpu.memory_space<vmem>>, vector<16x256xf32>
    %c0_2 = arith.constant 0 : index
    %c0_3 = arith.constant 0 : index
    %4 = vector.load %arg3[%c0_2, %c0_3] : memref<16x128xf32, #tpu.memory_space<vmem>>, vector<16x128xf32>
    %c0_4 = arith.constant 0 : index
    %c0_5 = arith.constant 0 : index
    %5 = vector.load %arg4[%c0_4, %c0_5] : memref<128x256xf32, #tpu.memory_space<vmem>>, vector<128x256xf32>
    %cst = arith.constant dense<0.000000e+00> : vector<16x256xf32>
    %6 = tpu.matmul %4, %5, %cst {dimension_numbers = #tpu.dot_dimension_numbers<[1], [0], [0], [1], [0, 0, 1, 1], [], []>} : vector<16x128xf32>, vector<128x256xf32>, vector<16x256xf32> -> vector<16x256xf32>
    %7 = arith.addf %3, %6 : vector<16x256xf32>
    %c0_6 = arith.constant 0 : index
    %c0_7 = arith.constant 0 : index
    %8 = vector.load %arg7[%c0_6, %c0_7] : memref<16x256xf32, #tpu.memory_space<vmem>>, vector<16x256xf32>
    tpu.vector_store %arg7[%c0_6, %c0_7], %7 {strides = array<i32>} : memref<16x256xf32, #tpu.memory_space<vmem>>, vector<16x256xf32>,
    %c0_i32_8 = arith.constant 0 : i32
    %9 = arith.cmpi eq, %arg2, %c0_i32_8 : i32
    %10 = arith.extui %9 : i1 to i32
    %c0_i32_9 = arith.constant 0 : i32
    %11 = arith.cmpi ne, %10, %c0_i32_9 : i32
    scf.if %11 {
      %c0_10 = arith.constant 0 : index
      %c0_11 = arith.constant 0 : index
      %12 = vector.load %arg7[%c0_10, %c0_11] : memref<16x256xf32, #tpu.memory_space<vmem>>, vector<16x256xf32>
      %c0_12 = arith.constant 0 : index
      %c0_13 = arith.constant 0 : index
      %13 = vector.load %arg5[%c0_12, %c0_13] : memref<1x256xf32, #tpu.memory_space<vmem>>, vector<1x256xf32>
      %14 = vector.broadcast %13 : vector<1x256xf32> to vector<16x256xf32>
      %15 = arith.addf %12, %14 : vector<16x256xf32>
      %cst_14 = arith.constant 0.000000e+00 : f32
      %16 = vector.broadcast %cst_14 : f32 to vector<16x256xf32>
      %17 = arith.maximumf %15, %16 : vector<16x256xf32>
      %c0_15 = arith.constant 0 : index
      %c0_16 = arith.constant 0 : index
      %18 = vector.load %arg6[%c0_15, %c0_16] : memref<16x256xf32, #tpu.memory_space<vmem>>, vector<16x256xf32>
      tpu.vector_store %arg6[%c0_15, %c0_16], %17 {strides = array<i32>} : memref<16x256xf32, #tpu.memory_space<vmem>>, vector<16x256xf32>,
    } else {
    }
    return
  }
  func.func @transform_0(%arg0: i32, %arg1: i32, %arg2: i32) -> (i32, i32) {
    %c0_i32 = arith.constant 0 : i32
    return %arg0, %arg2 : i32, i32
  }
  func.func @transform_1(%arg0: i32, %arg1: i32, %arg2: i32) -> (i32, i32) {
    %c0_i32 = arith.constant 0 : i32
    return %arg2, %arg1 : i32, i32
  }
  func.func @transform_2(%arg0: i32, %arg1: i32, %arg2: i32) -> (i32, i32) {
    %c0_i32 = arith.constant 0 : i32
    %c0_i32_0 = arith.constant 0 : i32
    return %c0_i32, %arg1 : i32, i32
  }
  func.func @transform_3(%arg0: i32, %arg1: i32, %arg2: i32) -> (i32, i32) {
    %c0_i32 = arith.constant 0 : i32
    return %arg0, %arg1 : i32, i32
  }
}

module attributes {stable_mosaic.version = 11 : i64} {
  func.func @_add_layernorm_kernel(%arg0: i32, %arg1: memref<16x128xf32, #tpu.memory_space<vmem>>, %arg2: memref<16x128xf32, #tpu.memory_space<vmem>>, %arg3: memref<1x128xf32, #tpu.memory_space<vmem>>, %arg4: memref<1x128xf32, #tpu.memory_space<vmem>>, %arg5: memref<16x128xf32, #tpu.memory_space<vmem>>) attributes {dimension_semantics = [#tpu.dimension_semantics<parallel>], iteration_bounds = array<i64: 1>, scalar_prefetch = 0 : i64, scratch_operands = 0 : i64, tpu.core_type = #tpu.core_type<tc>, window_params = [{transform_indices = @transform_0, window_bounds = array<i64: 16, 128>}, {transform_indices = @transform_1, window_bounds = array<i64: 16, 128>}, {pipeline_mode = #tpu.pipeline_mode<synchronous>, transform_indices = @transform_2, window_bounds = array<i64: 1, 128>}, {pipeline_mode = #tpu.pipeline_mode<synchronous>, transform_indices = @transform_3, window_bounds = array<i64: 1, 128>}, {transform_indices = @transform_4, window_bounds = array<i64: 16, 128>}]} {
    %c0 = arith.constant 0 : index
    %c0_0 = arith.constant 0 : index
    %0 = vector.load %arg1[%c0, %c0_0] : memref<16x128xf32, #tpu.memory_space<vmem>>, vector<16x128xf32>
    %c0_1 = arith.constant 0 : index
    %c0_2 = arith.constant 0 : index
    %1 = vector.load %arg2[%c0_1, %c0_2] : memref<16x128xf32, #tpu.memory_space<vmem>>, vector<16x128xf32>
    %2 = arith.addf %0, %1 : vector<16x128xf32>
    %cst = arith.constant dense<0.000000e+00> : vector<16xf32>
    %3 = vector.multi_reduction <add>, %2, %cst [1] : vector<16x128xf32> to vector<16xf32>
    %4 = vector.shape_cast %3 : vector<16xf32> to vector<16x1xf32>
    %cst_3 = arith.constant 1.280000e+02 : f32
    %5 = vector.broadcast %cst_3 : f32 to vector<16x1xf32>
    %6 = arith.divf %4, %5 : vector<16x1xf32>
    %7 = vector.broadcast %6 : vector<16x1xf32> to vector<16x128xf32>
    %8 = arith.subf %2, %7 : vector<16x128xf32>
    %9 = arith.mulf %8, %8 : vector<16x128xf32>
    %cst_4 = arith.constant dense<0.000000e+00> : vector<16xf32>
    %10 = vector.multi_reduction <add>, %9, %cst_4 [1] : vector<16x128xf32> to vector<16xf32>
    %11 = vector.shape_cast %10 : vector<16xf32> to vector<16x1xf32>
    %cst_5 = arith.constant 1.280000e+02 : f32
    %12 = vector.broadcast %cst_5 : f32 to vector<16x1xf32>
    %13 = arith.divf %11, %12 : vector<16x1xf32>
    %cst_6 = arith.constant 9.99999974E-6 : f32
    %14 = vector.broadcast %cst_6 : f32 to vector<16x1xf32>
    %15 = arith.addf %13, %14 : vector<16x1xf32>
    %16 = math.rsqrt %15 : vector<16x1xf32>
    %17 = vector.broadcast %16 : vector<16x1xf32> to vector<16x128xf32>
    %18 = arith.mulf %8, %17 : vector<16x128xf32>
    %c0_7 = arith.constant 0 : index
    %c0_8 = arith.constant 0 : index
    %19 = vector.load %arg3[%c0_7, %c0_8] : memref<1x128xf32, #tpu.memory_space<vmem>>, vector<1x128xf32>
    %20 = vector.broadcast %19 : vector<1x128xf32> to vector<16x128xf32>
    %21 = arith.mulf %18, %20 : vector<16x128xf32>
    %c0_9 = arith.constant 0 : index
    %c0_10 = arith.constant 0 : index
    %22 = vector.load %arg4[%c0_9, %c0_10] : memref<1x128xf32, #tpu.memory_space<vmem>>, vector<1x128xf32>
    %23 = vector.broadcast %22 : vector<1x128xf32> to vector<16x128xf32>
    %24 = arith.addf %21, %23 : vector<16x128xf32>
    %c0_11 = arith.constant 0 : index
    %c0_12 = arith.constant 0 : index
    %25 = vector.load %arg5[%c0_11, %c0_12] : memref<16x128xf32, #tpu.memory_space<vmem>>, vector<16x128xf32>
    tpu.vector_store %arg5[%c0_11, %c0_12], %24 {strides = array<i32>} : memref<16x128xf32, #tpu.memory_space<vmem>>, vector<16x128xf32>,
    return
  }
  func.func @transform_0(%arg0: i32) -> (i32, i32) {
    %c0_i32 = arith.constant 0 : i32
    %c0_i32_0 = arith.constant 0 : i32
    return %arg0, %c0_i32 : i32, i32
  }
  func.func @transform_1(%arg0: i32) -> (i32, i32) {
    %c0_i32 = arith.constant 0 : i32
    %c0_i32_0 = arith.constant 0 : i32
    return %arg0, %c0_i32 : i32, i32
  }
  func.func @transform_2(%arg0: i32) -> (i32, i32) {
    %c0_i32 = arith.constant 0 : i32
    %c0_i32_0 = arith.constant 0 : i32
    %c0_i32_1 = arith.constant 0 : i32
    return %c0_i32, %c0_i32_0 : i32, i32
  }
  func.func @transform_3(%arg0: i32) -> (i32, i32) {
    %c0_i32 = arith.constant 0 : i32
    %c0_i32_0 = arith.constant 0 : i32
    %c0_i32_1 = arith.constant 0 : i32
    return %c0_i32, %c0_i32_0 : i32, i32
  }
  func.func @transform_4(%arg0: i32) -> (i32, i32) {
    %c0_i32 = arith.constant 0 : i32
    %c0_i32_0 = arith.constant 0 : i32
    return %arg0, %c0_i32 : i32, i32
  }
}

</mosaic_0001>

<llo_original>
// kernel: transformer_block_forward.13
$region0: #{transformer_block_forward.13}
  #allocation0 [shape = 'u32[]', space=smem, size = 0x4, offset = 0x4, fixed_abs, tag = 'smem constant byte address 0x4 - core index']
  #allocation1 [shape = 'u32[144,128]{1,0:T(1,128)}', space=vmem, size = 0x12000, scoped, tag = 'internal scratch']
  #allocation2 [shape = 'f32[16,128]{1,0:T(8,128)}', space=vmem, size = 0x2000, scoped, tag = 'scratch operand']
  %s0 = inlined_call_operand.vmem [shape: f32[16,128], index: 0, kind: input, shape index: {}]
  %s1 = inlined_call_operand.vmem [shape: f32[128,128], index: 1, kind: input, shape index: {}]
  %s2 = inlined_call_operand.hbm [shape: f32[1,128], index: 2, kind: input, shape index: {}]
  %s3 = inlined_call_operand.vmem [shape: f32[16,128], index: 3, kind: output, shape index: {}]
  %s4 = sld [smem:[#allocation0]]
  $region34: #{transformer_block_forward.13} parent=0
    _
  %s6 = ssub.s32 1, %s4
  %s7 = scalar_select 0, %s6, %s4
  $region1: #{transformer_block_forward.13} parent=0
    #allocation3 [shape = 'u8[512]{0}', space=vmem, size = 0x400, scoped, tag = 'input window, operand 2, single buffered']
    #allocation4 [shape = 's32[1]{0}', space=sflag, size = 0x4, scoped, tag = 'scoped memory for transformer_block_forward.13']
    %8 = vsyncpa [#allocation4], 0
    // Predicated region
    $region2: #{transformer_block_forward.13} parent=1 // pred_check
      _
    $region3: #{transformer_block_forward.13} parent=1 // pred_check_branch
      %10 = sbr.rel (0) target = $region5
    $region4: #{transformer_block_forward.13} parent=1 // pred_region
      _
    $region5: #{transformer_block_forward.13} parent=1 // pred_fallthru
      _
    // Predicated region
    $region6: #{transformer_block_forward.13} parent=1 // pred_check
      _
    $region7: #{transformer_block_forward.13} parent=1 // pred_check_branch
      %12 = sbr.rel (0) target = $region9
    $region8: #{transformer_block_forward.13} parent=1 // pred_region
      _
    $region9: #{transformer_block_forward.13} parent=1 // pred_fallthru
      _
    // Predicated region
    $region10: #{transformer_block_forward.13} parent=1 // pred_check
      _
    $region11: #{transformer_block_forward.13} parent=1 // pred_check_branch
      %14 = sbr.rel (0) target = $region13
    $region12: #{transformer_block_forward.13} parent=1 // pred_region
      %s16 = ssub.s32 16, 16
      %17 = vsyncadd [#allocation4], %s16
      %s19 = sshll.u32 [#allocation3], 4
      %s20 = int_to_ptr.vmem [resolvable:$true] %s19
      %22 = dma.hbm_to_vmem [thread:$0]  %s2, 16, %s20, [#allocation4]
    $region13: #{transformer_block_forward.13} parent=1 // pred_fallthru
      _
    // Predicated region
    $region14: #{transformer_block_forward.13} parent=1 // pred_check
      _
    $region15: #{transformer_block_forward.13} parent=1 // pred_check_branch
      %24 = sbr.rel (0) target = $region17
    $region16: #{transformer_block_forward.13} parent=1 // pred_region
      %25 = dma.done [#allocation4], 16
    $region17: #{transformer_block_forward.13} parent=1 // pred_fallthru
      _
    %p26 = scmp.eq.s32.totalorder 0, 0
    // Predicated region
    $region18: #{transformer_block_forward.13} parent=1 // pred_check
      %p27 = pneg %p26
    $region19: #{transformer_block_forward.13} parent=1 // pred_check_branch
      %29 = sbr.rel (%p27) target = $region21
    $region20: #{transformer_block_forward.13} parent=1 // pred_region
      %30 = vst [vmem:[#allocation2] sm:$0xff] 0.0
      %31 = vst [vmem:[#allocation2 + $0x8] sm:$0xff] 0.0
    $region21: #{transformer_block_forward.13} parent=1 // pred_fallthru
      _
    %v32 = vld [vmem:[#allocation2] sm:$0xff]
    %v33 = vld [vmem:[#allocation2 + $0x8] sm:$0xff]
    %v34 = vld [vmem:[%s0] sm:$0xff]
    %v35 = vld [vmem:[%s0 + $0x8] sm:$0xff]
    %v36 = vld [vmem:[%s1] sm:$0xff]
    %v37 = vld [vmem:[%s1 + $0x8] sm:$0xff]
    %v38 = vld [vmem:[%s1 + $0x10] sm:$0xff]
    %v39 = vld [vmem:[%s1 + $0x18] sm:$0xff]
    %v40 = vld [vmem:[%s1 + $0x20] sm:$0xff]
    %v41 = vld [vmem:[%s1 + $0x28] sm:$0xff]
    %v42 = vld [vmem:[%s1 + $0x30] sm:$0xff]
    %v43 = vld [vmem:[%s1 + $0x38] sm:$0xff]
    %v44 = vld [vmem:[%s1 + $0x40] sm:$0xff]
    %v45 = vld [vmem:[%s1 + $0x48] sm:$0xff]
    %v46 = vld [vmem:[%s1 + $0x50] sm:$0xff]
    %v47 = vld [vmem:[%s1 + $0x58] sm:$0xff]
    %v48 = vld [vmem:[%s1 + $0x60] sm:$0xff]
    %v49 = vld [vmem:[%s1 + $0x68] sm:$0xff]
    %v50 = vld [vmem:[%s1 + $0x70] sm:$0xff]
    %v51 = vld [vmem:[%s1 + $0x78] sm:$0xff]
    %52 = vmatprep.subr.mxu0 0.0
    %53 = vmatpush1.msra.mxu0 %v51
    %54 = vmatprep.subr.mxu0 0.0
    %55 = vmatpush1.msra.mxu0 %v50
    %56 = vmatprep.subr.mxu0 0.0
    %57 = vmatpush1.msra.mxu0 %v49
    %58 = vmatprep.subr.mxu0 0.0
    %59 = vmatpush1.msra.mxu0 %v48
    %60 = vmatprep.subr.mxu0 0.0
    %61 = vmatpush1.msra.mxu0 %v47
    %62 = vmatprep.subr.mxu0 0.0
    %63 = vmatpush1.msra.mxu0 %v46
    %64 = vmatprep.subr.mxu0 0.0
    %65 = vmatpush1.msra.mxu0 %v45
    %66 = vmatprep.subr.mxu0 0.0
    %67 = vmatpush1.msra.mxu0 %v44
    %68 = vmatprep.subr.mxu0 0.0
    %69 = vmatpush1.msra.mxu0 %v43
    %70 = vmatprep.subr.mxu0 0.0
    %71 = vmatpush1.msra.mxu0 %v42
    %72 = vmatprep.subr.mxu0 0.0
    %73 = vmatpush1.msra.mxu0 %v41
    %74 = vmatprep.subr.mxu0 0.0
    %75 = vmatpush1.msra.mxu0 %v40
    %76 = vmatprep.subr.mxu0 0.0
    %77 = vmatpush1.msra.mxu0 %v39
    %78 = vmatprep.subr.mxu0 0.0
    %79 = vmatpush1.msra.mxu0 %v38
    %80 = vmatprep.subr.mxu0 0.0
    %81 = vmatpush1.msra.mxu0 %v37
    %82 = vmatprep.subr.mxu0 0.0
    %83 = vmatpush1.msra.mxu0 %v36
    %84 = vmatprep.subr.mxu0 0.0
    %85 = vmatpush2.msra.mxu0 0.0
    %86 = vmatprep.subr.mxu0 0.0
    %87 = vmatpush2.msra.mxu0 0.0
    %88 = vmatprep.subr.mxu0 0.0
    %89 = vmatpush2.msra.mxu0 0.0
    %90 = vmatprep.subr.mxu0 0.0
    %91 = vmatpush2.msra.mxu0 0.0
    %92 = vmatprep.subr.mxu0 0.0
    %93 = vmatpush2.msra.mxu0 0.0
    %94 = vmatprep.subr.mxu0 0.0
    %95 = vmatpush2.msra.mxu0 0.0
    %96 = vmatprep.subr.mxu0 0.0
    %97 = vmatpush2.msra.mxu0 0.0
    %98 = vmatprep.subr.mxu0 0.0
    %99 = vmatpush2.msra.mxu0 0.0
    %100 = vmatprep.subr.mxu0 0.0
    %101 = vmatpush2.msra.mxu0 0.0
    %102 = vmatprep.subr.mxu0 0.0
    %103 = vmatpush2.msra.mxu0 0.0
    %104 = vmatprep.subr.mxu0 0.0
    %105 = vmatpush2.msra.mxu0 0.0
    %106 = vmatprep.subr.mxu0 0.0
    %107 = vmatpush2.msra.mxu0 0.0
    %108 = vmatprep.subr.mxu0 0.0
    %109 = vmatpush2.msra.mxu0 0.0
    %110 = vmatprep.subr.mxu0 0.0
    %111 = vmatpush2.msra.mxu0 0.0
    %112 = vmatprep.subr.mxu0 0.0
    %113 = vmatpush2.msra.mxu0 0.0
    %114 = vmatprep.subr.mxu0 0.0
    %115 = vmatpush2.msra.mxu0 0.0
    %116 = vmatprep.mubr.f32.mxu0 0.0
    %117 = vmatmul.mubr.f32.gmra.mxu0 %v34
    %v118 = vpop.f32.mrf.mxu0
    %v119 = vadd.f32 0.0, %v118
    %v120 = vpop.f32.mrf.mxu0
    %121 = vmatprep.mubr.f32.mxu0 0.0
    %122 = vmatmul.mubr.f32.gmra.mxu0 %v35
    %v123 = vpop.f32.mrf.mxu0
    %v124 = vadd.f32 0.0, %v123
    %v125 = vpop.f32.mrf.mxu0
    %126 = vdwg.mxu0
    %v127 = vadd.f32 %v32, %v119
    %v128 = vadd.f32 %v33, %v124
    %129 = vst [vmem:[#allocation2] sm:$0xff] %v127
    %130 = vst [vmem:[#allocation2 + $0x8] sm:$0xff] %v128
    // Predicated region
    $region22: #{transformer_block_forward.13} parent=1 // pred_check
      %p131 = pneg %p26
    $region23: #{transformer_block_forward.13} parent=1 // pred_check_branch
      %133 = sbr.rel (%p131) target = $region25
    $region24: #{transformer_block_forward.13} parent=1 // pred_region
      %v134 = vld [vmem:[#allocation2] sm:$0xff]
      %v135 = vld [vmem:[#allocation2 + $0x8] sm:$0xff]
      %v136 = vld [vmem:[#allocation3] sm:$0x1]
      %v138 = vlaneseq
      %v139 = vshrl.u32 %v138, 7
      %v140 = vsub.s32 0, %v139
      %v141 = vrot.slane %v136, %v140
      %v143 = vadd.f32 %v134, %v141
      %v144 = vadd.f32 %v135, %v141
      %145 = vst [vmem:[%s3] sm:$0xff] %v143
      %146 = vst [vmem:[%s3 + $0x8] sm:$0xff] %v144
    $region25: #{transformer_block_forward.13} parent=1 // pred_fallthru
      _
    // Predicated region
    $region26: #{transformer_block_forward.13} parent=1 // pred_check
      _
    $region27: #{transformer_block_forward.13} parent=1 // pred_check_branch
      %148 = sbr.rel (0) target = $region29
    $region28: #{transformer_block_forward.13} parent=1 // pred_region
      _
    $region29: #{transformer_block_forward.13} parent=1 // pred_fallthru
      _
    // Predicated region
    $region30: #{transformer_block_forward.13} parent=1 // pred_check
      _
    $region31: #{transformer_block_forward.13} parent=1 // pred_check_branch
      %150 = sbr.rel (0) target = $region33
    $region32: #{transformer_block_forward.13} parent=1 // pred_region
      _
    $region33: #{transformer_block_forward.13} parent=1 // pred_fallthru
      _
    %151 = vsyncpa [#allocation4], 1

// kernel: transformer_block_forward.12
$region0: #{transformer_block_forward.12}
  #allocation0 [shape = 'u32[]', space=smem, size = 0x4, offset = 0x4, fixed_abs, tag = 'smem constant byte address 0x4 - core index']
  #allocation1 [shape = 'u32[144,128]{1,0:T(1,128)}', space=vmem, size = 0x12000, scoped, tag = 'internal scratch']
  %s0 = inlined_call_operand.vmem [shape: f32[2,8,256], index: 0, kind: input, shape index: {}, may-alias: {0,1}]
  %s1 = inlined_call_operand.vmem [shape: f32[2,8,256], index: 1, kind: input, shape index: {}, may-alias: {0,1}]
  %s2 = inlined_call_operand.vmem [shape: f32[2,8,128], index: 2, kind: input, shape index: {}]
  %s3 = inlined_call_operand.vmem [shape: f32[2,8,128], index: 3, kind: input, shape index: {}]
  %s4 = inlined_call_operand.vmem [shape: f32[2,8,128], index: 4, kind: output, shape index: {}]
  %s5 = sld [smem:[#allocation0]]
  $region49: #{transformer_block_forward.12} parent=0
    _
  %s7 = ssub.s32 1, %s5
  %s8 = scalar_select 0, %s7, %s5
  loop: start=0, step=1, limit=4
  $region2: #{transformer_block_forward.12} parent=0 // loop_pre_header
    _
  $region3: #{transformer_block_forward.12} parent=0 // loop_header
    %s10 = sphi 0, %s14
    %p11 = scmp.ge.s32.totalorder %s10, 4
    %s17 = sphi 0, %s29
    %s18 = sphi 0, %s25
    %s19 = sphi 0, %s17
    %s20 = sphi 0, %s18
    %s21 = sphi 0, %s19
    %s22 = sphi 0, %s20
    %s34 = sphi 0, %s36
    %s37 = sphi 0, %s34
    %s38 = sphi 0, %s37
    %s54 = sphi 0, %s38
    %s64 = sphi 0, %s66
    %s67 = sphi 0, %s64
    %s68 = sphi 0, %s67
    %s84 = sphi 0, %s68
    %s92 = sphi 0, %s94
    %s95 = sphi 0, %s92
    %s96 = sphi 0, %s95
    %s112 = sphi 0, %s96
    %s120 = sphi 0, %s122
    %s123 = sphi 0, %s120
    %s124 = sphi 0, %s123
    %s140 = sphi 0, %s124
    %s148 = sphi 0, %s150
    %s151 = sphi 0, %s148
    %s152 = sphi 0, %s151
    %s168 = sphi 0, %s152
  $region4: #{transformer_block_forward.12} parent=0 // loop_header_branch
    %13 = sbr.rel (%p11) target = $region8
  $region5: #{transformer_block_forward.12} parent=0 // loop_body
    %s15 = ssub.s32 %s10, 1
    %s16 = ssub.s32 %s10, 2
    %s23 = sadd.s32 1, %s18
    %p24 = scmp.ge.s32.totalorder %s23, 1
    %s25 = scalar_select %p24, 0, %s23
    %s26 = sadd.s32 1, %s17
    %s27 = scalar_select %p24, %s26, %s17
    %p28 = scmp.ge.s32.totalorder %s27, 2
    %s29 = scalar_select %p28, 0, %s27
    %s30 = ssub.s32 %s17, %s29
    %s31 = ssub.s32 %s18, %s25
    %s32 = sor.u32 %s30, %s31
    %p33 = scmp.eq.s32.totalorder %s32, 0
    %s35 = sadd.s32 %s34, 1
    %s36 = scalar_select %p33, %s34, %s35
    %p39 = pneg %p33
    %p40 = scmp.eq.s32.totalorder %s10, 1
    %p41 = por %p39, %p40
    %p42 = scmp.ne.s32.totalorder %s34, %s37
    %p43 = scmp.eq.s32.totalorder %s10, 0
    %p44 = por %p42, %p43
    %p45 = scmp.ne.s32.totalorder %s34, %s37
    %p46 = scmp.eq.s32.totalorder %s15, 1
    %p47 = por %p45, %p46
    %p48 = scmp.ne.s32.totalorder %s37, %s38
    %p49 = scmp.eq.s32.totalorder %s15, 0
    %p50 = por %p48, %p49
    %p51 = scmp.ne.s32.totalorder %s37, %s38
    %p52 = scmp.eq.s32.totalorder %s16, 1
    %p53 = por %p51, %p52
    %p55 = scmp.ne.s32.totalorder %s38, %s54
    %p56 = scmp.eq.s32.totalorder %s16, 0
    %p57 = por %p55, %p56
    %s58 = sadd.s32 %s18, 1
    %s59 = sadd.s32 %s25, 1
    %s60 = ssub.s32 %s17, %s29
    %s61 = ssub.s32 %s58, %s59
    %s62 = sor.u32 %s60, %s61
    %p63 = scmp.eq.s32.totalorder %s62, 0
    %s65 = sadd.s32 %s64, 1
    %s66 = scalar_select %p63, %s64, %s65
    %p69 = pneg %p63
    %p70 = scmp.eq.s32.totalorder %s10, 1
    %p71 = por %p69, %p70
    %p72 = scmp.ne.s32.totalorder %s64, %s67
    %p73 = scmp.eq.s32.totalorder %s10, 0
    %p74 = por %p72, %p73
    %p75 = scmp.ne.s32.totalorder %s64, %s67
    %p76 = scmp.eq.s32.totalorder %s15, 1
    %p77 = por %p75, %p76
    %p78 = scmp.ne.s32.totalorder %s67, %s68
    %p79 = scmp.eq.s32.totalorder %s15, 0
    %p80 = por %p78, %p79
    %p81 = scmp.ne.s32.totalorder %s67, %s68
    %p82 = scmp.eq.s32.totalorder %s16, 1
    %p83 = por %p81, %p82
    %p85 = scmp.ne.s32.totalorder %s68, %s84
    %p86 = scmp.eq.s32.totalorder %s16, 0
    %p87 = por %p85, %p86
    %s88 = ssub.s32 %s17, %s29
    %s89 = ssub.s32 %s18, %s25
    %s90 = sor.u32 %s88, %s89
    %p91 = scmp.eq.s32.totalorder %s90, 0
    %s93 = sadd.s32 %s92, 1
    %s94 = scalar_select %p91, %s92, %s93
    %p97 = pneg %p91
    %p98 = scmp.eq.s32.totalorder %s10, 1
    %p99 = por %p97, %p98
    %p100 = scmp.ne.s32.totalorder %s92, %s95
    %p101 = scmp.eq.s32.totalorder %s10, 0
    %p102 = por %p100, %p101
    %p103 = scmp.ne.s32.totalorder %s92, %s95
    %p104 = scmp.eq.s32.totalorder %s15, 1
    %p105 = por %p103, %p104
    %p106 = scmp.ne.s32.totalorder %s95, %s96
    %p107 = scmp.eq.s32.totalorder %s15, 0
    %p108 = por %p106, %p107
    %p109 = scmp.ne.s32.totalorder %s95, %s96
    %p110 = scmp.eq.s32.totalorder %s16, 1
    %p111 = por %p109, %p110
    %p113 = scmp.ne.s32.totalorder %s96, %s112
    %p114 = scmp.eq.s32.totalorder %s16, 0
    %p115 = por %p113, %p114
    %s116 = ssub.s32 %s17, %s29
    %s117 = ssub.s32 %s18, %s25
    %s118 = sor.u32 %s116, %s117
    %p119 = scmp.eq.s32.totalorder %s118, 0
    %s121 = sadd.s32 %s120, 1
    %s122 = scalar_select %p119, %s120, %s121
    %p125 = pneg %p119
    %p126 = scmp.eq.s32.totalorder %s10, 1
    %p127 = por %p125, %p126
    %p128 = scmp.ne.s32.totalorder %s120, %s123
    %p129 = scmp.eq.s32.totalorder %s10, 0
    %p130 = por %p128, %p129
    %p131 = scmp.ne.s32.totalorder %s120, %s123
    %p132 = scmp.eq.s32.totalorder %s15, 1
    %p133 = por %p131, %p132
    %p134 = scmp.ne.s32.totalorder %s123, %s124
    %p135 = scmp.eq.s32.totalorder %s15, 0
    %p136 = por %p134, %p135
    %p137 = scmp.ne.s32.totalorder %s123, %s124
    %p138 = scmp.eq.s32.totalorder %s16, 1
    %p139 = por %p137, %p138
    %p141 = scmp.ne.s32.totalorder %s124, %s140
    %p142 = scmp.eq.s32.totalorder %s16, 0
    %p143 = por %p141, %p142
    %s144 = ssub.s32 %s17, %s29
    %s145 = ssub.s32 %s18, %s25
    %s146 = sor.u32 %s144, %s145
    %p147 = scmp.eq.s32.totalorder %s146, 0
    %s149 = sadd.s32 %s148, 1
    %s150 = scalar_select %p147, %s148, %s149
    %p153 = pneg %p147
    %p154 = scmp.eq.s32.totalorder %s10, 1
    %p155 = por %p153, %p154
    %p156 = scmp.ne.s32.totalorder %s148, %s151
    %p157 = scmp.eq.s32.totalorder %s10, 0
    %p158 = por %p156, %p157
    %p159 = scmp.ne.s32.totalorder %s148, %s151
    %p160 = scmp.eq.s32.totalorder %s15, 1
    %p161 = por %p159, %p160
    %p162 = scmp.ne.s32.totalorder %s151, %s152
    %p163 = scmp.eq.s32.totalorder %s15, 0
    %p164 = por %p162, %p163
    %p165 = scmp.ne.s32.totalorder %s151, %s152
    %p166 = scmp.eq.s32.totalorder %s16, 1
    %p167 = por %p165, %p166
    %p169 = scmp.ne.s32.totalorder %s152, %s168
    %p170 = scmp.eq.s32.totalorder %s16, 0
    %p171 = por %p169, %p170
    %p172 = scmp.le.s32.totalorder 1, %s10
    %p173 = scmp.lt.s32.totalorder %s10, 3
    %p174 = pnand %p172, %p173
    %p175 = pneg %p174
    // Predicated region
    $region9: #{transformer_block_forward.12} parent=5 // pred_check
      _
    $region10: #{transformer_block_forward.12} parent=5 // pred_check_branch
      %177 = sbr.rel (%p174) target = $region12
    $region11: #{transformer_block_forward.12} parent=5 // pred_region
      %s178 = ssub.s32 %s10, 1
    $region12: #{transformer_block_forward.12} parent=5 // pred_fallthru
      _
    %p179 = scmp.lt.s32.totalorder %s10, 2
    // Predicated region
    $region13: #{transformer_block_forward.12} parent=5 // pred_check
      %p180 = pneg %p179
    $region14: #{transformer_block_forward.12} parent=5 // pred_check_branch
      %182 = sbr.rel (%p180) target = $region16
    $region15: #{transformer_block_forward.12} parent=5 // pred_region
      // Predicated region
      $region17: #{transformer_block_forward.12} parent=15 // pred_check
        %p183 = pneg %p44
      $region18: #{transformer_block_forward.12} parent=15 // pred_check_branch
        %185 = sbr.rel (%p183) target = $region20
      $region19: #{transformer_block_forward.12} parent=15 // pred_region
        %p186 = scmp.lt.s32.totalorder %s17, 1
        %s187 = scalar_select %p186, %s17, 1
        %p188 = scmp.lt.s32.totalorder %s18, 1
        %s189 = scalar_select %p188, %s18, 1
        %s190 = smul.addr %s187, 2
        %s191 = sadd.s32 %s189, %s190
        %s192 = smul.addr %s191, 8
        %s193 = scalar_lea.vmem %s0, %s192
      $region20: #{transformer_block_forward.12} parent=15 // pred_fallthru
        _
      // Predicated region
      $region21: #{transformer_block_forward.12} parent=15 // pred_check
        %p194 = pneg %p74
      $region22: #{transformer_block_forward.12} parent=15 // pred_check_branch
        %196 = sbr.rel (%p194) target = $region24
      $region23: #{transformer_block_forward.12} parent=15 // pred_region
        %s197 = sadd.s32 %s18, 1
        %p198 = scmp.lt.s32.totalorder %s17, 1
        %s199 = scalar_select %p198, %s17, 1
        %p200 = scmp.lt.s32.totalorder %s197, 1
        %s201 = scalar_select %p200, %s197, 1
        %s202 = smul.addr %s199, 2
        %s203 = sadd.s32 %s201, %s202
        %s204 = smul.addr %s203, 8
        %s205 = scalar_lea.vmem %s1, %s204
        %s206 = sadd.s32 %s18, 1
      $region24: #{transformer_block_forward.12} parent=15 // pred_fallthru
        _
      // Predicated region
      $region25: #{transformer_block_forward.12} parent=15 // pred_check
        %p207 = pneg %p102
      $region26: #{transformer_block_forward.12} parent=15 // pred_check_branch
        %209 = sbr.rel (%p207) target = $region28
      $region27: #{transformer_block_forward.12} parent=15 // pred_region
        %p210 = scmp.lt.s32.totalorder %s17, 1
        %s211 = scalar_select %p210, %s17, 1
        %p212 = scmp.lt.s32.totalorder %s18, 0
        %s213 = scalar_select %p212, %s18, 0
        %s214 = sadd.s32 %s213, %s211
        %s215 = smul.addr %s214, 8
        %s216 = scalar_lea.vmem %s2, %s215
      $region28: #{transformer_block_forward.12} parent=15 // pred_fallthru
        _
      // Predicated region
      $region29: #{transformer_block_forward.12} parent=15 // pred_check
        %p217 = pneg %p130
      $region30: #{transformer_block_forward.12} parent=15 // pred_check_branch
        %219 = sbr.rel (%p217) target = $region32
      $region31: #{transformer_block_forward.12} parent=15 // pred_region
        %p220 = scmp.lt.s32.totalorder %s17, 1
        %s221 = scalar_select %p220, %s17, 1
        %p222 = scmp.lt.s32.totalorder %s18, 0
        %s223 = scalar_select %p222, %s18, 0
        %s224 = sadd.s32 %s223, %s221
        %s225 = smul.addr %s224, 8
        %s226 = scalar_lea.vmem %s3, %s225
      $region32: #{transformer_block_forward.12} parent=15 // pred_fallthru
        _
    $region16: #{transformer_block_forward.12} parent=5 // pred_fallthru
      _
    %p227 = scmp.le.s32.totalorder 1, %s10
    %p228 = scmp.lt.s32.totalorder %s10, 3
    %p229 = pnand %p227, %p228
    %p230 = pneg %p229
    // Predicated region
    $region33: #{transformer_block_forward.12} parent=5 // pred_check
      _
    $region34: #{transformer_block_forward.12} parent=5 // pred_check_branch
      %232 = sbr.rel (%p229) target = $region36
    $region35: #{transformer_block_forward.12} parent=5 // pred_region
      %s233 = ssub.s32 %s10, 1
      %p234 = scmp.lt.s32.totalorder %s19, 1
      %s235 = scalar_select %p234, %s19, 1
      %p236 = scmp.lt.s32.totalorder %s20, 1
      %s237 = scalar_select %p236, %s20, 1
      %s238 = smul.addr %s235, 2
      %s239 = sadd.s32 %s237, %s238
      %s240 = smul.addr %s239, 8
      %s241 = scalar_lea.vmem %s0, %s240
      %p242 = pneg %p50
      %p243 = pneg %p47
      %s244 = sadd.s32 %s20, 1
      %p245 = scmp.lt.s32.totalorder %s19, 1
      %s246 = scalar_select %p245, %s19, 1
      %p247 = scmp.lt.s32.totalorder %s244, 1
      %s248 = scalar_select %p247, %s244, 1
      %s249 = smul.addr %s246, 2
      %s250 = sadd.s32 %s248, %s249
      %s251 = smul.addr %s250, 8
      %s252 = scalar_lea.vmem %s1, %s251
      %p253 = pneg %p80
      %p254 = pneg %p77
      %p255 = scmp.lt.s32.totalorder %s19, 1
      %s256 = scalar_select %p255, %s19, 1
      %p257 = scmp.lt.s32.totalorder %s20, 0
      %s258 = scalar_select %p257, %s20, 0
      %s259 = sadd.s32 %s258, %s256
      %s260 = smul.addr %s259, 8
      %s261 = scalar_lea.vmem %s2, %s260
      %p262 = pneg %p108
      %p263 = pneg %p105
      %p264 = scmp.lt.s32.totalorder %s19, 1
      %s265 = scalar_select %p264, %s19, 1
      %p266 = scmp.lt.s32.totalorder %s20, 0
      %s267 = scalar_select %p266, %s20, 0
      %s268 = sadd.s32 %s267, %s265
      %s269 = smul.addr %s268, 8
      %s270 = scalar_lea.vmem %s3, %s269
      %p271 = pneg %p136
      %p272 = pneg %p133
      %p273 = pneg %p164
      %p274 = pneg %p161
      %p275 = scmp.lt.s32.totalorder %s19, 1
      %s276 = scalar_select %p275, %s19, 1
      %p277 = scmp.lt.s32.totalorder %s20, 0
      %s278 = scalar_select %p277, %s20, 0
      %s279 = sadd.s32 %s278, %s276
      %s280 = smul.addr %s279, 8
      %s281 = scalar_lea.vmem %s4, %s280
      %p282 = scmp.lt.s32.totalorder %s19, 1
      %s283 = scalar_select %p282, %s19, 1
      %p284 = scmp.lt.s32.totalorder %s20, 1
      %s285 = scalar_select %p284, %s20, 1
      %s286 = smul.addr %s283, 2
      %s287 = sadd.s32 %s285, %s286
      %s288 = smul.addr %s287, 8
      %s289 = scalar_lea.vmem %s0, %s288
      %s290 = sadd.s32 %s20, 1
      %p291 = scmp.lt.s32.totalorder %s19, 1
      %s292 = scalar_select %p291, %s19, 1
      %p293 = scmp.lt.s32.totalorder %s290, 1
      %s294 = scalar_select %p293, %s290, 1
      %s295 = smul.addr %s292, 2
      %s296 = sadd.s32 %s294, %s295
      %s297 = smul.addr %s296, 8
      %s298 = scalar_lea.vmem %s1, %s297
      %s299 = sadd.s32 %s20, 1
      %p300 = scmp.lt.s32.totalorder %s19, 1
      %s301 = scalar_select %p300, %s19, 1
      %p302 = scmp.lt.s32.totalorder %s20, 0
      %s303 = scalar_select %p302, %s20, 0
      %s304 = sadd.s32 %s303, %s301
      %s305 = smul.addr %s304, 8
      %s306 = scalar_lea.vmem %s2, %s305
      %p307 = scmp.lt.s32.totalorder %s19, 1
      %s308 = scalar_select %p307, %s19, 1
      %p309 = scmp.lt.s32.totalorder %s20, 0
      %s310 = scalar_select %p309, %s20, 0
      %s311 = sadd.s32 %s310, %s308
      %s312 = smul.addr %s311, 8
      %s313 = scalar_lea.vmem %s3, %s312
      %p314 = scmp.lt.s32.totalorder %s19, 1
      %s315 = scalar_select %p314, %s19, 1
      %p316 = scmp.lt.s32.totalorder %s20, 0
      %s317 = scalar_select %p316, %s20, 0
      %s318 = sadd.s32 %s317, %s315
      %s319 = smul.addr %s318, 8
      %s320 = scalar_lea.vmem %s4, %s319
      %v321 = vld [vmem:[%s289] sm:$0xff]
      %v322 = vld [vmem:[%s298] sm:$0xff]
      %v323 = vld [vmem:[%s306] sm:$0xff]
      %v324 = vld [vmem:[%s313] sm:$0xff]
      %vm325 = vcmask 523264
      %v327 = vsel %vm325, %v321, 0
      %v330 = vsel %vm325, %v323, 0
      %332 = vmatprep.subr.mxu0 0.0
      %333 = vmatpush1.xpose.msra.mxu0 0.0
      %334 = vmatprep.subr.mxu0 0.0
      %335 = vmatpush1.xpose.msra.mxu0 0.0
      %336 = vmatprep.subr.mxu0 0.0
      %337 = vmatpush1.xpose.msra.mxu0 0.0
      %338 = vmatprep.subr.mxu0 0.0
      %339 = vmatpush1.xpose.msra.mxu0 0.0
      %340 = vmatprep.subr.mxu0 0.0
      %341 = vmatpush1.xpose.msra.mxu0 0.0
      %342 = vmatprep.subr.mxu0 0.0
      %343 = vmatpush1.xpose.msra.mxu0 0.0
      %344 = vmatprep.subr.mxu0 0.0
      %345 = vmatpush1.xpose.msra.mxu0 0.0
      %346 = vmatprep.subr.mxu0 0.0
      %347 = vmatpush1.xpose.msra.mxu0 0.0
      %348 = vmatprep.subr.mxu0 0.0
      %349 = vmatpush1.xpose.msra.mxu0 0.0
      %350 = vmatprep.subr.mxu0 0.0
      %351 = vmatpush1.xpose.msra.mxu0 0.0
      %352 = vmatprep.subr.mxu0 0.0
      %353 = vmatpush1.xpose.msra.mxu0 0.0
      %354 = vmatprep.subr.mxu0 0.0
      %355 = vmatpush1.xpose.msra.mxu0 0.0
      %356 = vmatprep.subr.mxu0 0.0
      %357 = vmatpush1.xpose.msra.mxu0 0.0
      %358 = vmatprep.subr.mxu0 0.0
      %359 = vmatpush1.xpose.msra.mxu0 0.0
      %360 = vmatprep.subr.mxu0 0.0
      %361 = vmatpush1.xpose.msra.mxu0 0.0
      %362 = vmatprep.subr.mxu0 0.0
      %363 = vmatpush1.xpose.msra.mxu0 %v330
      %364 = vmatprep.subr.mxu0 0.0
      %365 = vmatpush2.xpose.msra.mxu0 0.0
      %366 = vmatprep.subr.mxu0 0.0
      %367 = vmatpush2.xpose.msra.mxu0 0.0
      %368 = vmatprep.subr.mxu0 0.0
      %369 = vmatpush2.xpose.msra.mxu0 0.0
      %370 = vmatprep.subr.mxu0 0.0
      %371 = vmatpush2.xpose.msra.mxu0 0.0
      %372 = vmatprep.subr.mxu0 0.0
      %373 = vmatpush2.xpose.msra.mxu0 0.0
      %374 = vmatprep.subr.mxu0 0.0
      %375 = vmatpush2.xpose.msra.mxu0 0.0
      %376 = vmatprep.subr.mxu0 0.0
      %377 = vmatpush2.xpose.msra.mxu0 0.0
      %378 = vmatprep.subr.mxu0 0.0
      %379 = vmatpush2.xpose.msra.mxu0 0.0
      %380 = vmatprep.subr.mxu0 0.0
      %381 = vmatpush2.xpose.msra.mxu0 0.0
      %382 = vmatprep.subr.mxu0 0.0
      %383 = vmatpush2.xpose.msra.mxu0 0.0
      %384 = vmatprep.subr.mxu0 0.0
      %385 = vmatpush2.xpose.msra.mxu0 0.0
      %386 = vmatprep.subr.mxu0 0.0
      %387 = vmatpush2.xpose.msra.mxu0 0.0
      %388 = vmatprep.subr.mxu0 0.0
      %389 = vmatpush2.xpose.msra.mxu0 0.0
      %390 = vmatprep.subr.mxu0 0.0
      %391 = vmatpush2.xpose.msra.mxu0 0.0
      %392 = vmatprep.subr.mxu0 0.0
      %393 = vmatpush2.xpose.msra.mxu0 0.0
      %394 = vmatprep.subr.mxu0 0.0
      %395 = vmatpush2.xpose.msra.mxu0 0.0
      %396 = vmatprep.mubr.f32.mxu0 0.0
      %397 = vmatmul.mubr.f32.gmra.mxu0 %v327
      %v398 = vpop.f32.mrf.mxu0
      %v399 = vadd.f32 0.0, %v398
      %v400 = vpop.f32.mrf.mxu0
      %401 = vdwg.mxu0
      %vm402 = vcmask 64512
      %v403 = vsel %vm402, %v399, -inf
      %404 = vmax.xlane.f32.xlu0 %v403
      %v405 = vpop.xlane.xlu0 %404
      %v406 = vsub.f32 %v399, %v405
      %v407 = vmul.f32 %v406, 1.442695
      %v408 = vpow.pop %v407
      %v409 = vsel %vm402, %v408, 0.0
      %410 = vadd.xlane.f32.xlu0 %v409
      %v411 = vpop.xlane.xlu0 %410
      %v412 = vrcp.pop %v411
      %v413 = vmul.f32 %v408, %v412
      %v415 = vsel %vm402, %v413, 0
      %417 = vmatprep.subr.mxu0 0.0
      %418 = vmatpush1.msra.mxu0 0.0
      %419 = vmatprep.subr.mxu0 0.0
      %420 = vmatpush1.msra.mxu0 0.0
      %421 = vmatprep.subr.mxu0 0.0
      %422 = vmatpush1.msra.mxu0 0.0
      %423 = vmatprep.subr.mxu0 0.0
      %424 = vmatpush1.msra.mxu0 0.0
      %425 = vmatprep.subr.mxu0 0.0
      %426 = vmatpush1.msra.mxu0 0.0
      %427 = vmatprep.subr.mxu0 0.0
      %428 = vmatpush1.msra.mxu0 0.0
      %429 = vmatprep.subr.mxu0 0.0
      %430 = vmatpush1.msra.mxu0 0.0
      %431 = vmatprep.subr.mxu0 0.0
      %432 = vmatpush1.msra.mxu0 0.0
      %433 = vmatprep.subr.mxu0 0.0
      %434 = vmatpush1.msra.mxu0 0.0
      %435 = vmatprep.subr.mxu0 0.0
      %436 = vmatpush1.msra.mxu0 0.0
      %437 = vmatprep.subr.mxu0 0.0
      %438 = vmatpush1.msra.mxu0 0.0
      %439 = vmatprep.subr.mxu0 0.0
      %440 = vmatpush1.msra.mxu0 0.0
      %441 = vmatprep.subr.mxu0 0.0
      %442 = vmatpush1.msra.mxu0 0.0
      %443 = vmatprep.subr.mxu0 0.0
      %444 = vmatpush1.msra.mxu0 0.0
      %445 = vmatprep.subr.mxu0 0.0
      %446 = vmatpush1.msra.mxu0 0.0
      %447 = vmatprep.subr.mxu0 0.0
      %448 = vmatpush1.msra.mxu0 %v324
      %449 = vmatprep.subr.mxu0 0.0
      %450 = vmatpush2.msra.mxu0 0.0
      %451 = vmatprep.subr.mxu0 0.0
      %452 = vmatpush2.msra.mxu0 0.0
      %453 = vmatprep.subr.mxu0 0.0
      %454 = vmatpush2.msra.mxu0 0.0
      %455 = vmatprep.subr.mxu0 0.0
      %456 = vmatpush2.msra.mxu0 0.0
      %457 = vmatprep.subr.mxu0 0.0
      %458 = vmatpush2.msra.mxu0 0.0
      %459 = vmatprep.subr.mxu0 0.0
      %460 = vmatpush2.msra.mxu0 0.0
      %461 = vmatprep.subr.mxu0 0.0
      %462 = vmatpush2.msra.mxu0 0.0
      %463 = vmatprep.subr.mxu0 0.0
      %464 = vmatpush2.msra.mxu0 0.0
      %465 = vmatprep.subr.mxu0 0.0
      %466 = vmatpush2.msra.mxu0 0.0
      %467 = vmatprep.subr.mxu0 0.0
      %468 = vmatpush2.msra.mxu0 0.0
      %469 = vmatprep.subr.mxu0 0.0
      %470 = vmatpush2.msra.mxu0 0.0
      %471 = vmatprep.subr.mxu0 0.0
      %472 = vmatpush2.msra.mxu0 0.0
      %473 = vmatprep.subr.mxu0 0.0
      %474 = vmatpush2.msra.mxu0 0.0
      %475 = vmatprep.subr.mxu0 0.0
      %476 = vmatpush2.msra.mxu0 0.0
      %477 = vmatprep.subr.mxu0 0.0
      %478 = vmatpush2.msra.mxu0 0.0
      %479 = vmatprep.subr.mxu0 0.0
      %480 = vmatpush2.msra.mxu0 0.0
      %481 = vmatprep.mubr.f32.mxu0 0.0
      %482 = vmatmul.mubr.f32.gmra.mxu0 %v415
      %v483 = vpop.f32.mrf.mxu0
      %v484 = vadd.f32 0.0, %v483
      %v485 = vpop.f32.mrf.mxu0
      %486 = vdwg.mxu0
      %v487 = vmul.f32 %v484, %v322
      %488 = vrot.lane.b32.xlu0 %v321, 64
      %v489 = vpop.permute.xlu0 %488
      %490 = vrot.lane.b32.xlu0 %v323, 64
      %v491 = vpop.permute.xlu0 %490
      %v492 = vsel %vm325, %v489, 0
      %v494 = vsel %vm325, %v491, 0
      %496 = vmatprep.subr.mxu0 0.0
      %497 = vmatpush1.xpose.msra.mxu0 0.0
      %498 = vmatprep.subr.mxu0 0.0
      %499 = vmatpush1.xpose.msra.mxu0 0.0
      %500 = vmatprep.subr.mxu0 0.0
      %501 = vmatpush1.xpose.msra.mxu0 0.0
      %502 = vmatprep.subr.mxu0 0.0
      %503 = vmatpush1.xpose.msra.mxu0 0.0
      %504 = vmatprep.subr.mxu0 0.0
      %505 = vmatpush1.xpose.msra.mxu0 0.0
      %506 = vmatprep.subr.mxu0 0.0
      %507 = vmatpush1.xpose.msra.mxu0 0.0
      %508 = vmatprep.subr.mxu0 0.0
      %509 = vmatpush1.xpose.msra.mxu0 0.0
      %510 = vmatprep.subr.mxu0 0.0
      %511 = vmatpush1.xpose.msra.mxu0 0.0
      %512 = vmatprep.subr.mxu0 0.0
      %513 = vmatpush1.xpose.msra.mxu0 0.0
      %514 = vmatprep.subr.mxu0 0.0
      %515 = vmatpush1.xpose.msra.mxu0 0.0
      %516 = vmatprep.subr.mxu0 0.0
      %517 = vmatpush1.xpose.msra.mxu0 0.0
      %518 = vmatprep.subr.mxu0 0.0
      %519 = vmatpush1.xpose.msra.mxu0 0.0
      %520 = vmatprep.subr.mxu0 0.0
      %521 = vmatpush1.xpose.msra.mxu0 0.0
      %522 = vmatprep.subr.mxu0 0.0
      %523 = vmatpush1.xpose.msra.mxu0 0.0
      %524 = vmatprep.subr.mxu0 0.0
      %525 = vmatpush1.xpose.msra.mxu0 0.0
      %526 = vmatprep.subr.mxu0 0.0
      %527 = vmatpush1.xpose.msra.mxu0 %v494
      %528 = vmatprep.subr.mxu0 0.0
      %529 = vmatpush2.xpose.msra.mxu0 0.0
      %530 = vmatprep.subr.mxu0 0.0
      %531 = vmatpush2.xpose.msra.mxu0 0.0
      %532 = vmatprep.subr.mxu0 0.0
      %533 = vmatpush2.xpose.msra.mxu0 0.0
      %534 = vmatprep.subr.mxu0 0.0
      %535 = vmatpush2.xpose.msra.mxu0 0.0
      %536 = vmatprep.subr.mxu0 0.0
      %537 = vmatpush2.xpose.msra.mxu0 0.0
      %538 = vmatprep.subr.mxu0 0.0
      %539 = vmatpush2.xpose.msra.mxu0 0.0
      %540 = vmatprep.subr.mxu0 0.0
      %541 = vmatpush2.xpose.msra.mxu0 0.0
      %542 = vmatprep.subr.mxu0 0.0
      %543 = vmatpush2.xpose.msra.mxu0 0.0
      %544 = vmatprep.subr.mxu0 0.0
      %545 = vmatpush2.xpose.msra.mxu0 0.0
      %546 = vmatprep.subr.mxu0 0.0
      %547 = vmatpush2.xpose.msra.mxu0 0.0
      %548 = vmatprep.subr.mxu0 0.0
      %549 = vmatpush2.xpose.msra.mxu0 0.0
      %550 = vmatprep.subr.mxu0 0.0
      %551 = vmatpush2.xpose.msra.mxu0 0.0
      %552 = vmatprep.subr.mxu0 0.0
      %553 = vmatpush2.xpose.msra.mxu0 0.0
      %554 = vmatprep.subr.mxu0 0.0
      %555 = vmatpush2.xpose.msra.mxu0 0.0
      %556 = vmatprep.subr.mxu0 0.0
      %557 = vmatpush2.xpose.msra.mxu0 0.0
      %558 = vmatprep.subr.mxu0 0.0
      %559 = vmatpush2.xpose.msra.mxu0 0.0
      %560 = vmatprep.mubr.f32.mxu0 0.0
      %561 = vmatmul.mubr.f32.gmra.mxu0 %v492
      %v562 = vpop.f32.mrf.mxu0
      %v563 = vadd.f32 0.0, %v562
      %v564 = vpop.f32.mrf.mxu0
      %565 = vdwg.mxu0
      %v566 = vsel %vm402, %v563, -inf
      %567 = vmax.xlane.f32.xlu0 %v566
      %v568 = vpop.xlane.xlu0 %567
      %v569 = vsub.f32 %v563, %v568
      %v570 = vmul.f32 %v569, 1.442695
      %v571 = vpow.pop %v570
      %v572 = vsel %vm402, %v571, 0.0
      %573 = vadd.xlane.f32.xlu0 %v572
      %v574 = vpop.xlane.xlu0 %573
      %v575 = vrcp.pop %v574
      %v576 = vmul.f32 %v571, %v575
      %578 = vrot.lane.b32.xlu0 %v324, 64
      %v579 = vpop.permute.xlu0 %578
      %v582 = vsel %vm402, %v576, 0
      %584 = vmatprep.subr.mxu0 0.0
      %585 = vmatpush1.msra.mxu0 0.0
      %586 = vmatprep.subr.mxu0 0.0
      %587 = vmatpush1.msra.mxu0 0.0
      %588 = vmatprep.subr.mxu0 0.0
      %589 = vmatpush1.msra.mxu0 0.0
      %590 = vmatprep.subr.mxu0 0.0
      %591 = vmatpush1.msra.mxu0 0.0
      %592 = vmatprep.subr.mxu0 0.0
      %593 = vmatpush1.msra.mxu0 0.0
      %594 = vmatprep.subr.mxu0 0.0
      %595 = vmatpush1.msra.mxu0 0.0
      %596 = vmatprep.subr.mxu0 0.0
      %597 = vmatpush1.msra.mxu0 0.0
      %598 = vmatprep.subr.mxu0 0.0
      %599 = vmatpush1.msra.mxu0 0.0
      %600 = vmatprep.subr.mxu0 0.0
      %601 = vmatpush1.msra.mxu0 0.0
      %602 = vmatprep.subr.mxu0 0.0
      %603 = vmatpush1.msra.mxu0 0.0
      %604 = vmatprep.subr.mxu0 0.0
      %605 = vmatpush1.msra.mxu0 0.0
      %606 = vmatprep.subr.mxu0 0.0
      %607 = vmatpush1.msra.mxu0 0.0
      %608 = vmatprep.subr.mxu0 0.0
      %609 = vmatpush1.msra.mxu0 0.0
      %610 = vmatprep.subr.mxu0 0.0
      %611 = vmatpush1.msra.mxu0 0.0
      %612 = vmatprep.subr.mxu0 0.0
      %613 = vmatpush1.msra.mxu0 0.0
      %614 = vmatprep.subr.mxu0 0.0
      %615 = vmatpush1.msra.mxu0 %v579
      %616 = vmatprep.subr.mxu0 0.0
      %617 = vmatpush2.msra.mxu0 0.0
      %618 = vmatprep.subr.mxu0 0.0
      %619 = vmatpush2.msra.mxu0 0.0
      %620 = vmatprep.subr.mxu0 0.0
      %621 = vmatpush2.msra.mxu0 0.0
      %622 = vmatprep.subr.mxu0 0.0
      %623 = vmatpush2.msra.mxu0 0.0
      %624 = vmatprep.subr.mxu0 0.0
      %625 = vmatpush2.msra.mxu0 0.0
      %626 = vmatprep.subr.mxu0 0.0
      %627 = vmatpush2.msra.mxu0 0.0
      %628 = vmatprep.subr.mxu0 0.0
      %629 = vmatpush2.msra.mxu0 0.0
      %630 = vmatprep.subr.mxu0 0.0
      %631 = vmatpush2.msra.mxu0 0.0
      %632 = vmatprep.subr.mxu0 0.0
      %633 = vmatpush2.msra.mxu0 0.0
      %634 = vmatprep.subr.mxu0 0.0
      %635 = vmatpush2.msra.mxu0 0.0
      %636 = vmatprep.subr.mxu0 0.0
      %637 = vmatpush2.msra.mxu0 0.0
      %638 = vmatprep.subr.mxu0 0.0
      %639 = vmatpush2.msra.mxu0 0.0
      %640 = vmatprep.subr.mxu0 0.0
      %641 = vmatpush2.msra.mxu0 0.0
      %642 = vmatprep.subr.mxu0 0.0
      %643 = vmatpush2.msra.mxu0 0.0
      %644 = vmatprep.subr.mxu0 0.0
      %645 = vmatpush2.msra.mxu0 0.0
      %646 = vmatprep.subr.mxu0 0.0
      %647 = vmatpush2.msra.mxu0 0.0
      %648 = vmatprep.mubr.f32.mxu0 0.0
      %649 = vmatmul.mubr.f32.gmra.mxu0 %v582
      %v650 = vpop.f32.mrf.mxu0
      %v651 = vadd.f32 0.0, %v650
      %v652 = vpop.f32.mrf.mxu0
      %653 = vdwg.mxu0
      %655 = vrot.lane.b32.xlu0 %v322, 64
      %v656 = vpop.permute.xlu0 %655
      %v658 = vmul.f32 %v651, %v656
      %660 = vrot.lane.b32.xlu0 %v658, 64
      %v661 = vpop.permute.xlu0 %660
      %v663 = vsel %vm325, %v487, %v661
      %664 = vst [vmem:[%s320] sm:$0xff] %v663
      %p665 = scmp.lt.s32.totalorder %s19, 1
      %s666 = scalar_select %p665, %s19, 1
      %p667 = scmp.lt.s32.totalorder %s20, 0
      %s668 = scalar_select %p667, %s20, 0
      %s669 = sadd.s32 %s668, %s666
      %s670 = smul.addr %s669, 8
      %s671 = scalar_lea.vmem %s4, %s670
      // Predicated region
      $region37: #{transformer_block_forward.12} parent=35 // pred_check
        %p672 = pneg %p161
      $region38: #{transformer_block_forward.12} parent=35 // pred_check_branch
        %674 = sbr.rel (%p672) target = $region40
      $region39: #{transformer_block_forward.12} parent=35 // pred_region
        _
      $region40: #{transformer_block_forward.12} parent=35 // pred_fallthru
        _
    $region36: #{transformer_block_forward.12} parent=5 // pred_fallthru
      _
    %p675 = scmp.le.s32.totalorder 2, %s10
    // Predicated region
    $region41: #{transformer_block_forward.12} parent=5 // pred_check
      %p676 = pneg %p675
    $region42: #{transformer_block_forward.12} parent=5 // pred_check_branch
      %678 = sbr.rel (%p676) target = $region44
    $region43: #{transformer_block_forward.12} parent=5 // pred_region
      %s679 = ssub.s32 %s10, 2
      // Predicated region
      $region45: #{transformer_block_forward.12} parent=43 // pred_check
        %p680 = pneg %p167
      $region46: #{transformer_block_forward.12} parent=43 // pred_check_branch
        %682 = sbr.rel (%p680) target = $region48
      $region47: #{transformer_block_forward.12} parent=43 // pred_region
        %p683 = scmp.lt.s32.totalorder %s21, 1
        %s684 = scalar_select %p683, %s21, 1
        %p685 = scmp.lt.s32.totalorder %s22, 0
        %s686 = scalar_select %p685, %s22, 0
        %s687 = sadd.s32 %s686, %s684
        %s688 = smul.addr %s687, 8
        %s689 = scalar_lea.vmem %s4, %s688
      $region48: #{transformer_block_forward.12} parent=43 // pred_fallthru
        _
    $region44: #{transformer_block_forward.12} parent=5 // pred_fallthru
      _
  $region6: #{transformer_block_forward.12} parent=0 // loop_footer
    %s14 = sadd.s32 1, %s10
  $region7: #{transformer_block_forward.12} parent=0 // loop_footer_branch
    %9 = sbr.rel target = $region3
  $region8: #{transformer_block_forward.12} parent=0 // loop_exit
    _

// kernel: transformer_block_forward.10
$region0: #{transformer_block_forward.10}
  #allocation0 [shape = 'u32[]', space=smem, size = 0x4, offset = 0x4, fixed_abs, tag = 'smem constant byte address 0x4 - core index']
  #allocation1 [shape = 'u32[144,128]{1,0:T(1,128)}', space=vmem, size = 0x12000, scoped, tag = 'internal scratch']
  #allocation2 [shape = 'f32[16,128]{1,0:T(8,128)}', space=vmem, size = 0x2000, scoped, tag = 'scratch operand']
  %s0 = inlined_call_operand.vmem [shape: f32[16,128], index: 0, kind: input, shape index: {}]
  %s1 = inlined_call_operand.hbm [shape: f32[128,128], index: 1, kind: input, shape index: {}]
  %s2 = inlined_call_operand.hbm [shape: f32[1,128], index: 2, kind: input, shape index: {}]
  %s3 = inlined_call_operand.vmem [shape: f32[16,128], index: 3, kind: output, shape index: {}]
  %s4 = sld [smem:[#allocation0]]
  $region38: #{transformer_block_forward.10} parent=0
    _
  %s6 = ssub.s32 1, %s4
  %s7 = scalar_select 0, %s6, %s4
  $region1: #{transformer_block_forward.10} parent=0
    #allocation3 [shape = 'u8[65536]{0}', space=vmem, size = 0x10000, scoped, tag = 'input window, operand 1, single buffered']
    #allocation4 [shape = 's32[1]{0}', space=sflag, size = 0x4, scoped, tag = 'scoped memory for transformer_block_forward.10']
    #allocation5 [shape = 'u8[512]{0}', space=vmem, size = 0x400, scoped, tag = 'input window, operand 2, single buffered']
    #allocation6 [shape = 's32[1]{0}', space=sflag, size = 0x4, scoped, tag = 'scoped memory for transformer_block_forward.10']
    %8 = vsyncpa [#allocation4], 0
    %9 = vsyncpa [#allocation6], 0
    // Predicated region
    $region2: #{transformer_block_forward.10} parent=1 // pred_check
      _
    $region3: #{transformer_block_forward.10} parent=1 // pred_check_branch
      %11 = sbr.rel (0) target = $region5
    $region4: #{transformer_block_forward.10} parent=1 // pred_region
      _
    $region5: #{transformer_block_forward.10} parent=1 // pred_fallthru
      _
    // Predicated region
    $region6: #{transformer_block_forward.10} parent=1 // pred_check
      _
    $region7: #{transformer_block_forward.10} parent=1 // pred_check_branch
      %13 = sbr.rel (0) target = $region9
    $region8: #{transformer_block_forward.10} parent=1 // pred_region
      %s15 = ssub.s32 2048, 2048
      %16 = vsyncadd [#allocation4], %s15
      %s17 = sshll.u32 [#allocation3], 4
      %s18 = int_to_ptr.vmem [resolvable:$true] %s17
      %23 = dma.hbm_to_vmem [thread:$0]  %s1, 2048, %s18, [#allocation4], 128, 128, 8
    $region9: #{transformer_block_forward.10} parent=1 // pred_fallthru
      _
    // Predicated region
    $region10: #{transformer_block_forward.10} parent=1 // pred_check
      _
    $region11: #{transformer_block_forward.10} parent=1 // pred_check_branch
      %25 = sbr.rel (0) target = $region13
    $region12: #{transformer_block_forward.10} parent=1 // pred_region
      %s27 = ssub.s32 16, 16
      %28 = vsyncadd [#allocation6], %s27
      %s30 = sshll.u32 [#allocation5], 4
      %s31 = int_to_ptr.vmem [resolvable:$true] %s30
      %33 = dma.hbm_to_vmem [thread:$0]  %s2, 16, %s31, [#allocation6]
    $region13: #{transformer_block_forward.10} parent=1 // pred_fallthru
      _
    // Predicated region
    $region14: #{transformer_block_forward.10} parent=1 // pred_check
      _
    $region15: #{transformer_block_forward.10} parent=1 // pred_check_branch
      %35 = sbr.rel (0) target = $region17
    $region16: #{transformer_block_forward.10} parent=1 // pred_region
      %36 = dma.done [#allocation4], 2048
    $region17: #{transformer_block_forward.10} parent=1 // pred_fallthru
      _
    // Predicated region
    $region18: #{transformer_block_forward.10} parent=1 // pred_check
      _
    $region19: #{transformer_block_forward.10} parent=1 // pred_check_branch
      %38 = sbr.rel (0) target = $region21
    $region20: #{transformer_block_forward.10} parent=1 // pred_region
      %39 = dma.done [#allocation6], 16
    $region21: #{transformer_block_forward.10} parent=1 // pred_fallthru
      _
    %p40 = scmp.eq.s32.totalorder 0, 0
    // Predicated region
    $region22: #{transformer_block_forward.10} parent=1 // pred_check
      %p41 = pneg %p40
    $region23: #{transformer_block_forward.10} parent=1 // pred_check_branch
      %43 = sbr.rel (%p41) target = $region25
    $region24: #{transformer_block_forward.10} parent=1 // pred_region
      %44 = vst [vmem:[#allocation2] sm:$0xff] 0.0
      %45 = vst [vmem:[#allocation2 + $0x8] sm:$0xff] 0.0
    $region25: #{transformer_block_forward.10} parent=1 // pred_fallthru
      _
    %v46 = vld [vmem:[#allocation2] sm:$0xff]
    %v47 = vld [vmem:[#allocation2 + $0x8] sm:$0xff]
    %v48 = vld [vmem:[%s0] sm:$0xff]
    %v49 = vld [vmem:[%s0 + $0x8] sm:$0xff]
    %v50 = vld [vmem:[#allocation3] sm:$0xff]
    %v51 = vld [vmem:[#allocation3 + $0x8] sm:$0xff]
    %v52 = vld [vmem:[#allocation3 + $0x10] sm:$0xff]
    %v53 = vld [vmem:[#allocation3 + $0x18] sm:$0xff]
    %v54 = vld [vmem:[#allocation3 + $0x20] sm:$0xff]
    %v55 = vld [vmem:[#allocation3 + $0x28] sm:$0xff]
    %v56 = vld [vmem:[#allocation3 + $0x30] sm:$0xff]
    %v57 = vld [vmem:[#allocation3 + $0x38] sm:$0xff]
    %v58 = vld [vmem:[#allocation3 + $0x40] sm:$0xff]
    %v59 = vld [vmem:[#allocation3 + $0x48] sm:$0xff]
    %v60 = vld [vmem:[#allocation3 + $0x50] sm:$0xff]
    %v61 = vld [vmem:[#allocation3 + $0x58] sm:$0xff]
    %v62 = vld [vmem:[#allocation3 + $0x60] sm:$0xff]
    %v63 = vld [vmem:[#allocation3 + $0x68] sm:$0xff]
    %v64 = vld [vmem:[#allocation3 + $0x70] sm:$0xff]
    %v65 = vld [vmem:[#allocation3 + $0x78] sm:$0xff]
    %66 = vmatprep.subr.mxu0 0.0
    %67 = vmatpush1.msra.mxu0 %v65
    %68 = vmatprep.subr.mxu0 0.0
    %69 = vmatpush1.msra.mxu0 %v64
    %70 = vmatprep.subr.mxu0 0.0
    %71 = vmatpush1.msra.mxu0 %v63
    %72 = vmatprep.subr.mxu0 0.0
    %73 = vmatpush1.msra.mxu0 %v62
    %74 = vmatprep.subr.mxu0 0.0
    %75 = vmatpush1.msra.mxu0 %v61
    %76 = vmatprep.subr.mxu0 0.0
    %77 = vmatpush1.msra.mxu0 %v60
    %78 = vmatprep.subr.mxu0 0.0
    %79 = vmatpush1.msra.mxu0 %v59
    %80 = vmatprep.subr.mxu0 0.0
    %81 = vmatpush1.msra.mxu0 %v58
    %82 = vmatprep.subr.mxu0 0.0
    %83 = vmatpush1.msra.mxu0 %v57
    %84 = vmatprep.subr.mxu0 0.0
    %85 = vmatpush1.msra.mxu0 %v56
    %86 = vmatprep.subr.mxu0 0.0
    %87 = vmatpush1.msra.mxu0 %v55
    %88 = vmatprep.subr.mxu0 0.0
    %89 = vmatpush1.msra.mxu0 %v54
    %90 = vmatprep.subr.mxu0 0.0
    %91 = vmatpush1.msra.mxu0 %v53
    %92 = vmatprep.subr.mxu0 0.0
    %93 = vmatpush1.msra.mxu0 %v52
    %94 = vmatprep.subr.mxu0 0.0
    %95 = vmatpush1.msra.mxu0 %v51
    %96 = vmatprep.subr.mxu0 0.0
    %97 = vmatpush1.msra.mxu0 %v50
    %98 = vmatprep.subr.mxu0 0.0
    %99 = vmatpush2.msra.mxu0 0.0
    %100 = vmatprep.subr.mxu0 0.0
    %101 = vmatpush2.msra.mxu0 0.0
    %102 = vmatprep.subr.mxu0 0.0
    %103 = vmatpush2.msra.mxu0 0.0
    %104 = vmatprep.subr.mxu0 0.0
    %105 = vmatpush2.msra.mxu0 0.0
    %106 = vmatprep.subr.mxu0 0.0
    %107 = vmatpush2.msra.mxu0 0.0
    %108 = vmatprep.subr.mxu0 0.0
    %109 = vmatpush2.msra.mxu0 0.0
    %110 = vmatprep.subr.mxu0 0.0
    %111 = vmatpush2.msra.mxu0 0.0
    %112 = vmatprep.subr.mxu0 0.0
    %113 = vmatpush2.msra.mxu0 0.0
    %114 = vmatprep.subr.mxu0 0.0
    %115 = vmatpush2.msra.mxu0 0.0
    %116 = vmatprep.subr.mxu0 0.0
    %117 = vmatpush2.msra.mxu0 0.0
    %118 = vmatprep.subr.mxu0 0.0
    %119 = vmatpush2.msra.mxu0 0.0
    %120 = vmatprep.subr.mxu0 0.0
    %121 = vmatpush2.msra.mxu0 0.0
    %122 = vmatprep.subr.mxu0 0.0
    %123 = vmatpush2.msra.mxu0 0.0
    %124 = vmatprep.subr.mxu0 0.0
    %125 = vmatpush2.msra.mxu0 0.0
    %126 = vmatprep.subr.mxu0 0.0
    %127 = vmatpush2.msra.mxu0 0.0
    %128 = vmatprep.subr.mxu0 0.0
    %129 = vmatpush2.msra.mxu0 0.0
    %130 = vmatprep.mubr.f32.mxu0 0.0
    %131 = vmatmul.mubr.f32.gmra.mxu0 %v48
    %v132 = vpop.f32.mrf.mxu0
    %v133 = vadd.f32 0.0, %v132
    %v134 = vpop.f32.mrf.mxu0
    %135 = vmatprep.mubr.f32.mxu0 0.0
    %136 = vmatmul.mubr.f32.gmra.mxu0 %v49
    %v137 = vpop.f32.mrf.mxu0
    %v138 = vadd.f32 0.0, %v137
    %v139 = vpop.f32.mrf.mxu0
    %140 = vdwg.mxu0
    %v141 = vadd.f32 %v46, %v133
    %v142 = vadd.f32 %v47, %v138
    %143 = vst [vmem:[#allocation2] sm:$0xff] %v141
    %144 = vst [vmem:[#allocation2 + $0x8] sm:$0xff] %v142
    // Predicated region
    $region26: #{transformer_block_forward.10} parent=1 // pred_check
      %p145 = pneg %p40
    $region27: #{transformer_block_forward.10} parent=1 // pred_check_branch
      %147 = sbr.rel (%p145) target = $region29
    $region28: #{transformer_block_forward.10} parent=1 // pred_region
      %v148 = vld [vmem:[#allocation2] sm:$0xff]
      %v149 = vld [vmem:[#allocation2 + $0x8] sm:$0xff]
      %v150 = vld [vmem:[#allocation5] sm:$0x1]
      %v152 = vlaneseq
      %v153 = vshrl.u32 %v152, 7
      %v154 = vsub.s32 0, %v153
      %v155 = vrot.slane %v150, %v154
      %v157 = vadd.f32 %v148, %v155
      %v158 = vadd.f32 %v149, %v155
      %159 = vst [vmem:[%s3] sm:$0xff] %v157
      %160 = vst [vmem:[%s3 + $0x8] sm:$0xff] %v158
    $region29: #{transformer_block_forward.10} parent=1 // pred_fallthru
      _
    // Predicated region
    $region30: #{transformer_block_forward.10} parent=1 // pred_check
      _
    $region31: #{transformer_block_forward.10} parent=1 // pred_check_branch
      %162 = sbr.rel (0) target = $region33
    $region32: #{transformer_block_forward.10} parent=1 // pred_region
      _
    $region33: #{transformer_block_forward.10} parent=1 // pred_fallthru
      _
    // Predicated region
    $region34: #{transformer_block_forward.10} parent=1 // pred_check
      _
    $region35: #{transformer_block_forward.10} parent=1 // pred_check_branch
      %164 = sbr.rel (0) target = $region37
    $region36: #{transformer_block_forward.10} parent=1 // pred_region
      _
    $region37: #{transformer_block_forward.10} parent=1 // pred_fallthru
      _
    %165 = vsyncpa [#allocation4], 1
    %166 = vsyncpa [#allocation6], 1

// kernel: transformer_block_forward.9
$region0: #{transformer_block_forward.9}
  #allocation0 [shape = 'u32[]', space=smem, size = 0x4, offset = 0x4, fixed_abs, tag = 'smem constant byte address 0x4 - core index']
  #allocation1 [shape = 'u32[144,128]{1,0:T(1,128)}', space=vmem, size = 0x12000, scoped, tag = 'internal scratch']
  #allocation2 [shape = 'f32[16,256]{1,0:T(8,128)}', space=vmem, size = 0x4000, scoped, tag = 'scratch operand']
  %s0 = inlined_call_operand.vmem [shape: f32[16,128], index: 0, kind: input, shape index: {}]
  %s1 = inlined_call_operand.vmem [shape: f32[128,256], index: 1, kind: input, shape index: {}]
  %s2 = inlined_call_operand.hbm [shape: f32[1,256], index: 2, kind: input, shape index: {}]
  %s3 = inlined_call_operand.vmem [shape: f32[16,256], index: 3, kind: output, shape index: {}]
  %s4 = sld [smem:[#allocation0]]
  $region34: #{transformer_block_forward.9} parent=0
    _
  %s6 = ssub.s32 1, %s4
  %s7 = scalar_select 0, %s6, %s4
  $region1: #{transformer_block_forward.9} parent=0
    #allocation3 [shape = 'u8[1024]{0}', space=vmem, size = 0x400, scoped, tag = 'input window, operand 2, single buffered']
    #allocation4 [shape = 's32[1]{0}', space=sflag, size = 0x4, scoped, tag = 'scoped memory for transformer_block_forward.9']
    %8 = vsyncpa [#allocation4], 0
    // Predicated region
    $region2: #{transformer_block_forward.9} parent=1 // pred_check
      _
    $region3: #{transformer_block_forward.9} parent=1 // pred_check_branch
      %10 = sbr.rel (0) target = $region5
    $region4: #{transformer_block_forward.9} parent=1 // pred_region
      _
    $region5: #{transformer_block_forward.9} parent=1 // pred_fallthru
      _
    // Predicated region
    $region6: #{transformer_block_forward.9} parent=1 // pred_check
      _
    $region7: #{transformer_block_forward.9} parent=1 // pred_check_branch
      %12 = sbr.rel (0) target = $region9
    $region8: #{transformer_block_forward.9} parent=1 // pred_region
      _
    $region9: #{transformer_block_forward.9} parent=1 // pred_fallthru
      _
    // Predicated region
    $region10: #{transformer_block_forward.9} parent=1 // pred_check
      _
    $region11: #{transformer_block_forward.9} parent=1 // pred_check_branch
      %14 = sbr.rel (0) target = $region13
    $region12: #{transformer_block_forward.9} parent=1 // pred_region
      %s16 = ssub.s32 32, 32
      %17 = vsyncadd [#allocation4], %s16
      %s19 = sshll.u32 [#allocation3], 4
      %s20 = int_to_ptr.vmem [resolvable:$true] %s19
      %22 = dma.hbm_to_vmem [thread:$0]  %s2, 32, %s20, [#allocation4]
    $region13: #{transformer_block_forward.9} parent=1 // pred_fallthru
      _
    // Predicated region
    $region14: #{transformer_block_forward.9} parent=1 // pred_check
      _
    $region15: #{transformer_block_forward.9} parent=1 // pred_check_branch
      %24 = sbr.rel (0) target = $region17
    $region16: #{transformer_block_forward.9} parent=1 // pred_region
      %25 = dma.done [#allocation4], 32
    $region17: #{transformer_block_forward.9} parent=1 // pred_fallthru
      _
    %p26 = scmp.eq.s32.totalorder 0, 0
    // Predicated region
    $region18: #{transformer_block_forward.9} parent=1 // pred_check
      %p27 = pneg %p26
    $region19: #{transformer_block_forward.9} parent=1 // pred_check_branch
      %29 = sbr.rel (%p27) target = $region21
    $region20: #{transformer_block_forward.9} parent=1 // pred_region
      %30 = vst [vmem:[#allocation2] sm:$0xff] 0.0
      %31 = vst [vmem:[#allocation2 + $0x8] sm:$0xff] 0.0
      %32 = vst [vmem:[#allocation2 + $0x10] sm:$0xff] 0.0
      %33 = vst [vmem:[#allocation2 + $0x18] sm:$0xff] 0.0
    $region21: #{transformer_block_forward.9} parent=1 // pred_fallthru
      _
    %v34 = vld [vmem:[#allocation2] sm:$0xff]
    %v35 = vld [vmem:[#allocation2 + $0x8] sm:$0xff]
    %v36 = vld [vmem:[#allocation2 + $0x10] sm:$0xff]
    %v37 = vld [vmem:[#allocation2 + $0x18] sm:$0xff]
    %v38 = vld [vmem:[%s0] sm:$0xff]
    %v39 = vld [vmem:[%s0 + $0x8] sm:$0xff]
    %v40 = vld [vmem:[%s1] sm:$0xff]
    %v41 = vld [vmem:[%s1 + $0x8] sm:$0xff]
    %v42 = vld [vmem:[%s1 + $0x10] sm:$0xff]
    %v43 = vld [vmem:[%s1 + $0x18] sm:$0xff]
    %v44 = vld [vmem:[%s1 + $0x20] sm:$0xff]
    %v45 = vld [vmem:[%s1 + $0x28] sm:$0xff]
    %v46 = vld [vmem:[%s1 + $0x30] sm:$0xff]
    %v47 = vld [vmem:[%s1 + $0x38] sm:$0xff]
    %v48 = vld [vmem:[%s1 + $0x40] sm:$0xff]
    %v49 = vld [vmem:[%s1 + $0x48] sm:$0xff]
    %v50 = vld [vmem:[%s1 + $0x50] sm:$0xff]
    %v51 = vld [vmem:[%s1 + $0x58] sm:$0xff]
    %v52 = vld [vmem:[%s1 + $0x60] sm:$0xff]
    %v53 = vld [vmem:[%s1 + $0x68] sm:$0xff]
    %v54 = vld [vmem:[%s1 + $0x70] sm:$0xff]
    %v55 = vld [vmem:[%s1 + $0x78] sm:$0xff]
    %v56 = vld [vmem:[%s1 + $0x80] sm:$0xff]
    %v57 = vld [vmem:[%s1 + $0x88] sm:$0xff]
    %v58 = vld [vmem:[%s1 + $0x90] sm:$0xff]
    %v59 = vld [vmem:[%s1 + $0x98] sm:$0xff]
    %v60 = vld [vmem:[%s1 + $0xa0] sm:$0xff]
    %v61 = vld [vmem:[%s1 + $0xa8] sm:$0xff]
    %v62 = vld [vmem:[%s1 + $0xb0] sm:$0xff]
    %v63 = vld [vmem:[%s1 + $0xb8] sm:$0xff]
    %v64 = vld [vmem:[%s1 + $0xc0] sm:$0xff]
    %v65 = vld [vmem:[%s1 + $0xc8] sm:$0xff]
    %v66 = vld [vmem:[%s1 + $0xd0] sm:$0xff]
    %v67 = vld [vmem:[%s1 + $0xd8] sm:$0xff]
    %v68 = vld [vmem:[%s1 + $0xe0] sm:$0xff]
    %v69 = vld [vmem:[%s1 + $0xe8] sm:$0xff]
    %v70 = vld [vmem:[%s1 + $0xf0] sm:$0xff]
    %v71 = vld [vmem:[%s1 + $0xf8] sm:$0xff]
    %72 = vmatprep.subr.mxu0 %v71
    %73 = vmatpush1.msra.mxu0 %v70
    %74 = vmatprep.subr.mxu0 %v69
    %75 = vmatpush1.msra.mxu0 %v68
    %76 = vmatprep.subr.mxu0 %v67
    %77 = vmatpush1.msra.mxu0 %v66
    %78 = vmatprep.subr.mxu0 %v65
    %79 = vmatpush1.msra.mxu0 %v64
    %80 = vmatprep.subr.mxu0 %v63
    %81 = vmatpush1.msra.mxu0 %v62
    %82 = vmatprep.subr.mxu0 %v61
    %83 = vmatpush1.msra.mxu0 %v60
    %84 = vmatprep.subr.mxu0 %v59
    %85 = vmatpush1.msra.mxu0 %v58
    %86 = vmatprep.subr.mxu0 %v57
    %87 = vmatpush1.msra.mxu0 %v56
    %88 = vmatprep.subr.mxu0 %v55
    %89 = vmatpush1.msra.mxu0 %v54
    %90 = vmatprep.subr.mxu0 %v53
    %91 = vmatpush1.msra.mxu0 %v52
    %92 = vmatprep.subr.mxu0 %v51
    %93 = vmatpush1.msra.mxu0 %v50
    %94 = vmatprep.subr.mxu0 %v49
    %95 = vmatpush1.msra.mxu0 %v48
    %96 = vmatprep.subr.mxu0 %v47
    %97 = vmatpush1.msra.mxu0 %v46
    %98 = vmatprep.subr.mxu0 %v45
    %99 = vmatpush1.msra.mxu0 %v44
    %100 = vmatprep.subr.mxu0 %v43
    %101 = vmatpush1.msra.mxu0 %v42
    %102 = vmatprep.subr.mxu0 %v41
    %103 = vmatpush1.msra.mxu0 %v40
    %104 = vmatprep.subr.mxu0 0.0
    %105 = vmatpush2.msra.mxu0 0.0
    %106 = vmatprep.subr.mxu0 0.0
    %107 = vmatpush2.msra.mxu0 0.0
    %108 = vmatprep.subr.mxu0 0.0
    %109 = vmatpush2.msra.mxu0 0.0
    %110 = vmatprep.subr.mxu0 0.0
    %111 = vmatpush2.msra.mxu0 0.0
    %112 = vmatprep.subr.mxu0 0.0
    %113 = vmatpush2.msra.mxu0 0.0
    %114 = vmatprep.subr.mxu0 0.0
    %115 = vmatpush2.msra.mxu0 0.0
    %116 = vmatprep.subr.mxu0 0.0
    %117 = vmatpush2.msra.mxu0 0.0
    %118 = vmatprep.subr.mxu0 0.0
    %119 = vmatpush2.msra.mxu0 0.0
    %120 = vmatprep.subr.mxu0 0.0
    %121 = vmatpush2.msra.mxu0 0.0
    %122 = vmatprep.subr.mxu0 0.0
    %123 = vmatpush2.msra.mxu0 0.0
    %124 = vmatprep.subr.mxu0 0.0
    %125 = vmatpush2.msra.mxu0 0.0
    %126 = vmatprep.subr.mxu0 0.0
    %127 = vmatpush2.msra.mxu0 0.0
    %128 = vmatprep.subr.mxu0 0.0
    %129 = vmatpush2.msra.mxu0 0.0
    %130 = vmatprep.subr.mxu0 0.0
    %131 = vmatpush2.msra.mxu0 0.0
    %132 = vmatprep.subr.mxu0 0.0
    %133 = vmatpush2.msra.mxu0 0.0
    %134 = vmatprep.subr.mxu0 0.0
    %135 = vmatpush2.msra.mxu0 0.0
    %136 = vmatprep.mubr.f32.mxu0 0.0
    %137 = vmatmul.mubr.f32.gmra.mxu0 %v38
    %v138 = vpop.f32.mrf.mxu0
    %v139 = vadd.f32 0.0, %v138
    %v140 = vpop.f32.mrf.mxu0
    %v141 = vadd.f32 0.0, %v140
    %142 = vmatprep.mubr.f32.mxu0 0.0
    %143 = vmatmul.mubr.f32.gmra.mxu0 %v39
    %v144 = vpop.f32.mrf.mxu0
    %v145 = vadd.f32 0.0, %v144
    %v146 = vpop.f32.mrf.mxu0
    %v147 = vadd.f32 0.0, %v146
    %148 = vdwg.mxu0
    %v149 = vadd.f32 %v34, %v139
    %v150 = vadd.f32 %v35, %v141
    %v151 = vadd.f32 %v36, %v145
    %v152 = vadd.f32 %v37, %v147
    %153 = vst [vmem:[#allocation2] sm:$0xff] %v149
    %154 = vst [vmem:[#allocation2 + $0x8] sm:$0xff] %v150
    %155 = vst [vmem:[#allocation2 + $0x10] sm:$0xff] %v151
    %156 = vst [vmem:[#allocation2 + $0x18] sm:$0xff] %v152
    // Predicated region
    $region22: #{transformer_block_forward.9} parent=1 // pred_check
      %p157 = pneg %p26
    $region23: #{transformer_block_forward.9} parent=1 // pred_check_branch
      %159 = sbr.rel (%p157) target = $region25
    $region24: #{transformer_block_forward.9} parent=1 // pred_region
      %v160 = vld [vmem:[#allocation2] sm:$0xff]
      %v161 = vld [vmem:[#allocation2 + $0x8] sm:$0xff]
      %v162 = vld [vmem:[#allocation2 + $0x10] sm:$0xff]
      %v163 = vld [vmem:[#allocation2 + $0x18] sm:$0xff]
      %v164 = vld [vmem:[#allocation3] sm:$0x3]
      %v166 = vlaneseq
      %v167 = vshrl.u32 %v166, 7
      %v168 = vsub.s32 0, %v167
      %v169 = vrot.slane %v164, %v168
      %v170 = vlaneseq
      %v171 = vshrl.u32 %v170, 7
      %v172 = vsub.s32 1, %v171
      %v173 = vrot.slane %v164, %v172
      %v176 = vadd.f32 %v160, %v169
      %v177 = vadd.f32 %v161, %v173
      %v178 = vadd.f32 %v162, %v169
      %v179 = vadd.f32 %v163, %v173
      %180 = vst [vmem:[%s3] sm:$0xff] %v176
      %181 = vst [vmem:[%s3 + $0x8] sm:$0xff] %v177
      %182 = vst [vmem:[%s3 + $0x10] sm:$0xff] %v178
      %183 = vst [vmem:[%s3 + $0x18] sm:$0xff] %v179
    $region25: #{transformer_block_forward.9} parent=1 // pred_fallthru
      _
    // Predicated region
    $region26: #{transformer_block_forward.9} parent=1 // pred_check
      _
    $region27: #{transformer_block_forward.9} parent=1 // pred_check_branch
      %185 = sbr.rel (0) target = $region29
    $region28: #{transformer_block_forward.9} parent=1 // pred_region
      _
    $region29: #{transformer_block_forward.9} parent=1 // pred_fallthru
      _
    // Predicated region
    $region30: #{transformer_block_forward.9} parent=1 // pred_check
      _
    $region31: #{transformer_block_forward.9} parent=1 // pred_check_branch
      %187 = sbr.rel (0) target = $region33
    $region32: #{transformer_block_forward.9} parent=1 // pred_region
      _
    $region33: #{transformer_block_forward.9} parent=1 // pred_fallthru
      _
    %188 = vsyncpa [#allocation4], 1

// kernel: transformer_block_forward.14
$region0: #{transformer_block_forward.14}
  #allocation0 [shape = 'u32[]', space=smem, size = 0x4, offset = 0x4, fixed_abs, tag = 'smem constant byte address 0x4 - core index']
  #allocation1 [shape = 'u32[144,128]{1,0:T(1,128)}', space=vmem, size = 0x12000, scoped, tag = 'internal scratch']
  %s0 = inlined_call_operand.vmem [shape: f32[16,128], index: 0, kind: input, shape index: {}]
  %s1 = inlined_call_operand.vmem [shape: f32[16,128], index: 1, kind: input, shape index: {}]
  %s2 = inlined_call_operand.hbm [shape: f32[1,128], index: 2, kind: input, shape index: {}]
  %s3 = inlined_call_operand.hbm [shape: f32[1,128], index: 3, kind: input, shape index: {}]
  %s4 = inlined_call_operand.vmem [shape: f32[16,128], index: 4, kind: output, shape index: {}]
  %s5 = sld [smem:[#allocation0]]
  $region34: #{transformer_block_forward.14} parent=0
    _
  %s7 = ssub.s32 1, %s5
  %s8 = scalar_select 0, %s7, %s5
  $region1: #{transformer_block_forward.14} parent=0
    #allocation2 [shape = 'u8[512]{0}', space=vmem, size = 0x400, scoped, tag = 'input window, operand 2, single buffered']
    #allocation3 [shape = 's32[1]{0}', space=sflag, size = 0x4, scoped, tag = 'scoped memory for transformer_block_forward.14']
    #allocation4 [shape = 'u8[512]{0}', space=vmem, size = 0x400, scoped, tag = 'input window, operand 3, single buffered']
    #allocation5 [shape = 's32[1]{0}', space=sflag, size = 0x4, scoped, tag = 'scoped memory for transformer_block_forward.14']
    %9 = vsyncpa [#allocation3], 0
    %10 = vsyncpa [#allocation5], 0
    // Predicated region
    $region2: #{transformer_block_forward.14} parent=1 // pred_check
      _
    $region3: #{transformer_block_forward.14} parent=1 // pred_check_branch
      %12 = sbr.rel (0) target = $region5
    $region4: #{transformer_block_forward.14} parent=1 // pred_region
      _
    $region5: #{transformer_block_forward.14} parent=1 // pred_fallthru
      _
    // Predicated region
    $region6: #{transformer_block_forward.14} parent=1 // pred_check
      _
    $region7: #{transformer_block_forward.14} parent=1 // pred_check_branch
      %14 = sbr.rel (0) target = $region9
    $region8: #{transformer_block_forward.14} parent=1 // pred_region
      _
    $region9: #{transformer_block_forward.14} parent=1 // pred_fallthru
      _
    // Predicated region
    $region10: #{transformer_block_forward.14} parent=1 // pred_check
      _
    $region11: #{transformer_block_forward.14} parent=1 // pred_check_branch
      %16 = sbr.rel (0) target = $region13
    $region12: #{transformer_block_forward.14} parent=1 // pred_region
      %s18 = ssub.s32 16, 16
      %19 = vsyncadd [#allocation3], %s18
      %s21 = sshll.u32 [#allocation2], 4
      %s22 = int_to_ptr.vmem [resolvable:$true] %s21
      %24 = dma.hbm_to_vmem [thread:$0]  %s2, 16, %s22, [#allocation3]
    $region13: #{transformer_block_forward.14} parent=1 // pred_fallthru
      _
    // Predicated region
    $region14: #{transformer_block_forward.14} parent=1 // pred_check
      _
    $region15: #{transformer_block_forward.14} parent=1 // pred_check_branch
      %26 = sbr.rel (0) target = $region17
    $region16: #{transformer_block_forward.14} parent=1 // pred_region
      %s28 = ssub.s32 16, 16
      %29 = vsyncadd [#allocation5], %s28
      %s31 = sshll.u32 [#allocation4], 4
      %s32 = int_to_ptr.vmem [resolvable:$true] %s31
      %34 = dma.hbm_to_vmem [thread:$0]  %s3, 16, %s32, [#allocation5]
    $region17: #{transformer_block_forward.14} parent=1 // pred_fallthru
      _
    // Predicated region
    $region18: #{transformer_block_forward.14} parent=1 // pred_check
      _
    $region19: #{transformer_block_forward.14} parent=1 // pred_check_branch
      %36 = sbr.rel (0) target = $region21
    $region20: #{transformer_block_forward.14} parent=1 // pred_region
      %37 = dma.done [#allocation3], 16
    $region21: #{transformer_block_forward.14} parent=1 // pred_fallthru
      _
    // Predicated region
    $region22: #{transformer_block_forward.14} parent=1 // pred_check
      _
    $region23: #{transformer_block_forward.14} parent=1 // pred_check_branch
      %39 = sbr.rel (0) target = $region25
    $region24: #{transformer_block_forward.14} parent=1 // pred_region
      %40 = dma.done [#allocation5], 16
    $region25: #{transformer_block_forward.14} parent=1 // pred_fallthru
      _
    %v41 = vld [vmem:[%s0] sm:$0xff]
    %v42 = vld [vmem:[%s0 + $0x8] sm:$0xff]
    %v43 = vld [vmem:[%s1] sm:$0xff]
    %v44 = vld [vmem:[%s1 + $0x8] sm:$0xff]
    %v45 = vadd.f32 %v41, %v43
    %v46 = vadd.f32 %v42, %v44
    %47 = vadd.xlane.f32.xlu0 %v45
    %v48 = vpop.xlane.xlu0 %47
    %49 = vadd.xlane.f32.xlu0 %v46
    %v50 = vpop.xlane.xlu0 %49
    %v51 = vrcp.pop 128.0
    %v52 = vmul.f32 %v48, %v51
    %v53 = vmul.f32 %v50, %v51
    %v54 = vsub.f32 %v45, %v52
    %v55 = vsub.f32 %v46, %v53
    %v56 = vmul.f32 %v54, %v54
    %v57 = vmul.f32 %v55, %v55
    %58 = vadd.xlane.f32.xlu0 %v56
    %v59 = vpop.xlane.xlu0 %58
    %60 = vadd.xlane.f32.xlu0 %v57
    %v61 = vpop.xlane.xlu0 %60
    %v62 = vmul.f32 %v59, %v51
    %v63 = vmul.f32 %v61, %v51
    %v64 = vadd.f32 %v62, 1e-05
    %v65 = vadd.f32 %v63, 1e-05
    %v66 = vrsqrt.pop %v64
    %v67 = vrsqrt.pop %v65
    %v68 = vmul.f32 %v54, %v66
    %v69 = vmul.f32 %v55, %v67
    %v70 = vld [vmem:[#allocation2] sm:$0x1]
    %v72 = vlaneseq
    %v73 = vshrl.u32 %v72, 7
    %v74 = vsub.s32 0, %v73
    %v75 = vrot.slane %v70, %v74
    %v77 = vmul.f32 %v68, %v75
    %v78 = vmul.f32 %v69, %v75
    %v79 = vld [vmem:[#allocation4] sm:$0x1]
    %v81 = vlaneseq
    %v82 = vshrl.u32 %v81, 7
    %v83 = vsub.s32 0, %v82
    %v84 = vrot.slane %v79, %v83
    %v86 = vadd.f32 %v77, %v84
    %v87 = vadd.f32 %v78, %v84
    %88 = vst [vmem:[%s4] sm:$0xff] %v86
    %89 = vst [vmem:[%s4 + $0x8] sm:$0xff] %v87
    // Predicated region
    $region26: #{transformer_block_forward.14} parent=1 // pred_check
      _
    $region27: #{transformer_block_forward.14} parent=1 // pred_check_branch
      %91 = sbr.rel (0) target = $region29
    $region28: #{transformer_block_forward.14} parent=1 // pred_region
      _
    $region29: #{transformer_block_forward.14} parent=1 // pred_fallthru
      _
    // Predicated region
    $region30: #{transformer_block_forward.14} parent=1 // pred_check
      _
    $region31: #{transformer_block_forward.14} parent=1 // pred_check_branch
      %93 = sbr.rel (0) target = $region33
    $region32: #{transformer_block_forward.14} parent=1 // pred_region
      _
    $region33: #{transformer_block_forward.14} parent=1 // pred_fallthru
      _
    %94 = vsyncpa [#allocation3], 1
    %95 = vsyncpa [#allocation5], 1

// kernel: transformer_block_forward.17
$region0: #{transformer_block_forward.17}
  #allocation0 [shape = 'u32[]', space=smem, size = 0x4, offset = 0x4, fixed_abs, tag = 'smem constant byte address 0x4 - core index']
  #allocation1 [shape = 'u32[144,128]{1,0:T(1,128)}', space=vmem, size = 0x12000, scoped, tag = 'internal scratch']
  %s0 = inlined_call_operand.vmem [shape: f32[16,128], index: 0, kind: input, shape index: {}]
  %s1 = inlined_call_operand.vmem [shape: f32[16,128], index: 1, kind: input, shape index: {}]
  %s2 = inlined_call_operand.vmem [shape: f32[1,128], index: 2, kind: input, shape index: {}]
  %s3 = inlined_call_operand.vmem [shape: f32[1,128], index: 3, kind: input, shape index: {}]
  %s4 = inlined_call_operand.hbm [shape: f32[16,128], index: 4, kind: output, shape index: {}]
  %s5 = sld [smem:[#allocation0]]
  $region26: #{transformer_block_forward.17} parent=0
    _
  %s7 = ssub.s32 1, %s5
  %s8 = scalar_select 0, %s7, %s5
  $region1: #{transformer_block_forward.17} parent=0
    #allocation2 [shape = 'u8[8192]{0}', space=vmem, size = 0x2000, scoped, tag = 'output window, operand 0, single buffered']
    #allocation3 [shape = 's32[1]{0}', space=sflag, size = 0x4, scoped, tag = 'scoped memory for transformer_block_forward.17']
    %9 = vsyncpa [#allocation3], 0
    // Predicated region
    $region2: #{transformer_block_forward.17} parent=1 // pred_check
      _
    $region3: #{transformer_block_forward.17} parent=1 // pred_check_branch
      %11 = sbr.rel (0) target = $region5
    $region4: #{transformer_block_forward.17} parent=1 // pred_region
      _
    $region5: #{transformer_block_forward.17} parent=1 // pred_fallthru
      _
    // Predicated region
    $region6: #{transformer_block_forward.17} parent=1 // pred_check
      _
    $region7: #{transformer_block_forward.17} parent=1 // pred_check_branch
      %13 = sbr.rel (0) target = $region9
    $region8: #{transformer_block_forward.17} parent=1 // pred_region
      _
    $region9: #{transformer_block_forward.17} parent=1 // pred_fallthru
      _
    // Predicated region
    $region10: #{transformer_block_forward.17} parent=1 // pred_check
      _
    $region11: #{transformer_block_forward.17} parent=1 // pred_check_branch
      %15 = sbr.rel (0) target = $region13
    $region12: #{transformer_block_forward.17} parent=1 // pred_region
      _
    $region13: #{transformer_block_forward.17} parent=1 // pred_fallthru
      _
    // Predicated region
    $region14: #{transformer_block_forward.17} parent=1 // pred_check
      _
    $region15: #{transformer_block_forward.17} parent=1 // pred_check_branch
      %17 = sbr.rel (0) target = $region17
    $region16: #{transformer_block_forward.17} parent=1 // pred_region
      _
    $region17: #{transformer_block_forward.17} parent=1 // pred_fallthru
      _
    %v18 = vld [vmem:[%s0] sm:$0xff]
    %v19 = vld [vmem:[%s0 + $0x8] sm:$0xff]
    %v20 = vld [vmem:[%s1] sm:$0xff]
    %v21 = vld [vmem:[%s1 + $0x8] sm:$0xff]
    %v22 = vadd.f32 %v18, %v20
    %v23 = vadd.f32 %v19, %v21
    %24 = vadd.xlane.f32.xlu0 %v22
    %v25 = vpop.xlane.xlu0 %24
    %26 = vadd.xlane.f32.xlu0 %v23
    %v27 = vpop.xlane.xlu0 %26
    %v28 = vrcp.pop 128.0
    %v29 = vmul.f32 %v25, %v28
    %v30 = vmul.f32 %v27, %v28
    %v31 = vsub.f32 %v22, %v29
    %v32 = vsub.f32 %v23, %v30
    %v33 = vmul.f32 %v31, %v31
    %v34 = vmul.f32 %v32, %v32
    %35 = vadd.xlane.f32.xlu0 %v33
    %v36 = vpop.xlane.xlu0 %35
    %37 = vadd.xlane.f32.xlu0 %v34
    %v38 = vpop.xlane.xlu0 %37
    %v39 = vmul.f32 %v36, %v28
    %v40 = vmul.f32 %v38, %v28
    %v41 = vadd.f32 %v39, 1e-05
    %v42 = vadd.f32 %v40, 1e-05
    %v43 = vrsqrt.pop %v41
    %v44 = vrsqrt.pop %v42
    %v45 = vmul.f32 %v31, %v43
    %v46 = vmul.f32 %v32, %v44
    %v47 = vld [vmem:[%s2] sm:$0x1]
    %v49 = vlaneseq
    %v50 = vshrl.u32 %v49, 7
    %v51 = vsub.s32 0, %v50
    %v52 = vrot.slane %v47, %v51
    %v54 = vmul.f32 %v45, %v52
    %v55 = vmul.f32 %v46, %v52
    %v56 = vld [vmem:[%s3] sm:$0x1]
    %v58 = vlaneseq
    %v59 = vshrl.u32 %v58, 7
    %v60 = vsub.s32 0, %v59
    %v61 = vrot.slane %v56, %v60
    %v63 = vadd.f32 %v54, %v61
    %v64 = vadd.f32 %v55, %v61
    %65 = vst [vmem:[#allocation2] sm:$0xff] %v63
    %66 = vst [vmem:[#allocation2 + $0x8] sm:$0xff] %v64
    // Predicated region
    $region18: #{transformer_block_forward.17} parent=1 // pred_check
      _
    $region19: #{transformer_block_forward.17} parent=1 // pred_check_branch
      %68 = sbr.rel (0) target = $region21
    $region20: #{transformer_block_forward.17} parent=1 // pred_region
      %s70 = ssub.s32 256, 256
      %71 = vsyncadd [#allocation3], %s70
      %s72 = sshll.u32 [#allocation2], 4
      %s73 = int_to_ptr.vmem [resolvable:$true] %s72
      %78 = dma.vmem_to_hbm [thread:$0]  %s73, 256, %s4, [#allocation3], 128, 128, 8
    $region21: #{transformer_block_forward.17} parent=1 // pred_fallthru
      _
    // Predicated region
    $region22: #{transformer_block_forward.17} parent=1 // pred_check
      _
    $region23: #{transformer_block_forward.17} parent=1 // pred_check_branch
      %80 = sbr.rel (0) target = $region25
    $region24: #{transformer_block_forward.17} parent=1 // pred_region
      %81 = dma.done [#allocation3], 256
    $region25: #{transformer_block_forward.17} parent=1 // pred_fallthru
      _
    %82 = vsyncpa [#allocation3], 1

// kernel: transformer_block_forward.16
$region0: #{transformer_block_forward.16}
  #allocation0 [shape = 'u32[]', space=smem, size = 0x4, offset = 0x4, fixed_abs, tag = 'smem constant byte address 0x4 - core index']
  #allocation1 [shape = 'u32[144,128]{1,0:T(1,128)}', space=vmem, size = 0x12000, scoped, tag = 'internal scratch']
  #allocation2 [shape = 'f32[16,128]{1,0:T(8,128)}', space=vmem, size = 0x2000, scoped, tag = 'scratch operand']
  %s0 = inlined_call_operand.vmem [shape: f32[16,512], index: 0, kind: input, shape index: {}]
  %s1 = inlined_call_operand.vmem [shape: f32[512,128], index: 1, kind: input, shape index: {}]
  %s2 = inlined_call_operand.vmem [shape: f32[1,128], index: 2, kind: input, shape index: {}]
  %s3 = inlined_call_operand.vmem [shape: f32[16,128], index: 3, kind: output, shape index: {}]
  %s4 = sld [smem:[#allocation0]]
  $region30: #{transformer_block_forward.16} parent=0
    _
  %s6 = ssub.s32 1, %s4
  %s7 = scalar_select 0, %s6, %s4
  // Predicated region
  $region2: #{transformer_block_forward.16} parent=0 // pred_check
    _
  $region3: #{transformer_block_forward.16} parent=0 // pred_check_branch
    %9 = sbr.rel (0) target = $region5
  $region4: #{transformer_block_forward.16} parent=0 // pred_region
    _
  $region5: #{transformer_block_forward.16} parent=0 // pred_fallthru
    _
  // Predicated region
  $region6: #{transformer_block_forward.16} parent=0 // pred_check
    _
  $region7: #{transformer_block_forward.16} parent=0 // pred_check_branch
    %11 = sbr.rel (0) target = $region9
  $region8: #{transformer_block_forward.16} parent=0 // pred_region
    _
  $region9: #{transformer_block_forward.16} parent=0 // pred_fallthru
    _
  // Predicated region
  $region10: #{transformer_block_forward.16} parent=0 // pred_check
    _
  $region11: #{transformer_block_forward.16} parent=0 // pred_check_branch
    %13 = sbr.rel (0) target = $region13
  $region12: #{transformer_block_forward.16} parent=0 // pred_region
    _
  $region13: #{transformer_block_forward.16} parent=0 // pred_fallthru
    _
  %p14 = scmp.eq.s32.totalorder 0, 0
  // Predicated region
  $region14: #{transformer_block_forward.16} parent=0 // pred_check
    %p15 = pneg %p14
  $region15: #{transformer_block_forward.16} parent=0 // pred_check_branch
    %17 = sbr.rel (%p15) target = $region17
  $region16: #{transformer_block_forward.16} parent=0 // pred_region
    %18 = vst [vmem:[#allocation2] sm:$0xff] 0.0
    %19 = vst [vmem:[#allocation2 + $0x8] sm:$0xff] 0.0
  $region17: #{transformer_block_forward.16} parent=0 // pred_fallthru
    _
  %v20 = vld [vmem:[#allocation2] sm:$0xff]
  %v21 = vld [vmem:[#allocation2 + $0x8] sm:$0xff]
  %v22 = vld [vmem:[%s0] sm:$0xff]
  %v23 = vld [vmem:[%s0 + $0x8] sm:$0xff]
  %v24 = vld [vmem:[%s0 + $0x10] sm:$0xff]
  %v25 = vld [vmem:[%s0 + $0x18] sm:$0xff]
  %v26 = vld [vmem:[%s0 + $0x20] sm:$0xff]
  %v27 = vld [vmem:[%s0 + $0x28] sm:$0xff]
  %v28 = vld [vmem:[%s0 + $0x30] sm:$0xff]
  %v29 = vld [vmem:[%s0 + $0x38] sm:$0xff]
  %v30 = vld [vmem:[%s1] sm:$0xff]
  %v31 = vld [vmem:[%s1 + $0x8] sm:$0xff]
  %v32 = vld [vmem:[%s1 + $0x10] sm:$0xff]
  %v33 = vld [vmem:[%s1 + $0x18] sm:$0xff]
  %v34 = vld [vmem:[%s1 + $0x20] sm:$0xff]
  %v35 = vld [vmem:[%s1 + $0x28] sm:$0xff]
  %v36 = vld [vmem:[%s1 + $0x30] sm:$0xff]
  %v37 = vld [vmem:[%s1 + $0x38] sm:$0xff]
  %v38 = vld [vmem:[%s1 + $0x40] sm:$0xff]
  %v39 = vld [vmem:[%s1 + $0x48] sm:$0xff]
  %v40 = vld [vmem:[%s1 + $0x50] sm:$0xff]
  %v41 = vld [vmem:[%s1 + $0x58] sm:$0xff]
  %v42 = vld [vmem:[%s1 + $0x60] sm:$0xff]
  %v43 = vld [vmem:[%s1 + $0x68] sm:$0xff]
  %v44 = vld [vmem:[%s1 + $0x70] sm:$0xff]
  %v45 = vld [vmem:[%s1 + $0x78] sm:$0xff]
  %v46 = vld [vmem:[%s1 + $0x80] sm:$0xff]
  %v47 = vld [vmem:[%s1 + $0x88] sm:$0xff]
  %v48 = vld [vmem:[%s1 + $0x90] sm:$0xff]
  %v49 = vld [vmem:[%s1 + $0x98] sm:$0xff]
  %v50 = vld [vmem:[%s1 + $0xa0] sm:$0xff]
  %v51 = vld [vmem:[%s1 + $0xa8] sm:$0xff]
  %v52 = vld [vmem:[%s1 + $0xb0] sm:$0xff]
  %v53 = vld [vmem:[%s1 + $0xb8] sm:$0xff]
  %v54 = vld [vmem:[%s1 + $0xc0] sm:$0xff]
  %v55 = vld [vmem:[%s1 + $0xc8] sm:$0xff]
  %v56 = vld [vmem:[%s1 + $0xd0] sm:$0xff]
  %v57 = vld [vmem:[%s1 + $0xd8] sm:$0xff]
  %v58 = vld [vmem:[%s1 + $0xe0] sm:$0xff]
  %v59 = vld [vmem:[%s1 + $0xe8] sm:$0xff]
  %v60 = vld [vmem:[%s1 + $0xf0] sm:$0xff]
  %v61 = vld [vmem:[%s1 + $0xf8] sm:$0xff]
  %v62 = vld [vmem:[%s1 + $0x100] sm:$0xff]
  %v63 = vld [vmem:[%s1 + $0x108] sm:$0xff]
  %v64 = vld [vmem:[%s1 + $0x110] sm:$0xff]
  %v65 = vld [vmem:[%s1 + $0x118] sm:$0xff]
  %v66 = vld [vmem:[%s1 + $0x120] sm:$0xff]
  %v67 = vld [vmem:[%s1 + $0x128] sm:$0xff]
  %v68 = vld [vmem:[%s1 + $0x130] sm:$0xff]
  %v69 = vld [vmem:[%s1 + $0x138] sm:$0xff]
  %v70 = vld [vmem:[%s1 + $0x140] sm:$0xff]
  %v71 = vld [vmem:[%s1 + $0x148] sm:$0xff]
  %v72 = vld [vmem:[%s1 + $0x150] sm:$0xff]
  %v73 = vld [vmem:[%s1 + $0x158] sm:$0xff]
  %v74 = vld [vmem:[%s1 + $0x160] sm:$0xff]
  %v75 = vld [vmem:[%s1 + $0x168] sm:$0xff]
  %v76 = vld [vmem:[%s1 + $0x170] sm:$0xff]
  %v77 = vld [vmem:[%s1 + $0x178] sm:$0xff]
  %v78 = vld [vmem:[%s1 + $0x180] sm:$0xff]
  %v79 = vld [vmem:[%s1 + $0x188] sm:$0xff]
  %v80 = vld [vmem:[%s1 + $0x190] sm:$0xff]
  %v81 = vld [vmem:[%s1 + $0x198] sm:$0xff]
  %v82 = vld [vmem:[%s1 + $0x1a0] sm:$0xff]
  %v83 = vld [vmem:[%s1 + $0x1a8] sm:$0xff]
  %v84 = vld [vmem:[%s1 + $0x1b0] sm:$0xff]
  %v85 = vld [vmem:[%s1 + $0x1b8] sm:$0xff]
  %v86 = vld [vmem:[%s1 + $0x1c0] sm:$0xff]
  %v87 = vld [vmem:[%s1 + $0x1c8] sm:$0xff]
  %v88 = vld [vmem:[%s1 + $0x1d0] sm:$0xff]
  %v89 = vld [vmem:[%s1 + $0x1d8] sm:$0xff]
  %v90 = vld [vmem:[%s1 + $0x1e0] sm:$0xff]
  %v91 = vld [vmem:[%s1 + $0x1e8] sm:$0xff]
  %v92 = vld [vmem:[%s1 + $0x1f0] sm:$0xff]
  %v93 = vld [vmem:[%s1 + $0x1f8] sm:$0xff]
  %94 = vmatprep.subr.mxu0 0.0
  %95 = vmatpush1.msra.mxu0 %v45
  %96 = vmatprep.subr.mxu0 0.0
  %97 = vmatpush1.msra.mxu0 %v44
  %98 = vmatprep.subr.mxu0 0.0
  %99 = vmatpush1.msra.mxu0 %v43
  %100 = vmatprep.subr.mxu0 0.0
  %101 = vmatpush1.msra.mxu0 %v42
  %102 = vmatprep.subr.mxu0 0.0
  %103 = vmatpush1.msra.mxu0 %v41
  %104 = vmatprep.subr.mxu0 0.0
  %105 = vmatpush1.msra.mxu0 %v40
  %106 = vmatprep.subr.mxu0 0.0
  %107 = vmatpush1.msra.mxu0 %v39
  %108 = vmatprep.subr.mxu0 0.0
  %109 = vmatpush1.msra.mxu0 %v38
  %110 = vmatprep.subr.mxu0 0.0
  %111 = vmatpush1.msra.mxu0 %v37
  %112 = vmatprep.subr.mxu0 0.0
  %113 = vmatpush1.msra.mxu0 %v36
  %114 = vmatprep.subr.mxu0 0.0
  %115 = vmatpush1.msra.mxu0 %v35
  %116 = vmatprep.subr.mxu0 0.0
  %117 = vmatpush1.msra.mxu0 %v34
  %118 = vmatprep.subr.mxu0 0.0
  %119 = vmatpush1.msra.mxu0 %v33
  %120 = vmatprep.subr.mxu0 0.0
  %121 = vmatpush1.msra.mxu0 %v32
  %122 = vmatprep.subr.mxu0 0.0
  %123 = vmatpush1.msra.mxu0 %v31
  %124 = vmatprep.subr.mxu0 0.0
  %125 = vmatpush1.msra.mxu0 %v30
  %126 = vmatprep.subr.mxu0 0.0
  %127 = vmatpush2.msra.mxu0 %v61
  %128 = vmatprep.subr.mxu0 0.0
  %129 = vmatpush2.msra.mxu0 %v60
  %130 = vmatprep.subr.mxu0 0.0
  %131 = vmatpush2.msra.mxu0 %v59
  %132 = vmatprep.subr.mxu0 0.0
  %133 = vmatpush2.msra.mxu0 %v58
  %134 = vmatprep.subr.mxu0 0.0
  %135 = vmatpush2.msra.mxu0 %v57
  %136 = vmatprep.subr.mxu0 0.0
  %137 = vmatpush2.msra.mxu0 %v56
  %138 = vmatprep.subr.mxu0 0.0
  %139 = vmatpush2.msra.mxu0 %v55
  %140 = vmatprep.subr.mxu0 0.0
  %141 = vmatpush2.msra.mxu0 %v54
  %142 = vmatprep.subr.mxu0 0.0
  %143 = vmatpush2.msra.mxu0 %v53
  %144 = vmatprep.subr.mxu0 0.0
  %145 = vmatpush2.msra.mxu0 %v52
  %146 = vmatprep.subr.mxu0 0.0
  %147 = vmatpush2.msra.mxu0 %v51
  %148 = vmatprep.subr.mxu0 0.0
  %149 = vmatpush2.msra.mxu0 %v50
  %150 = vmatprep.subr.mxu0 0.0
  %151 = vmatpush2.msra.mxu0 %v49
  %152 = vmatprep.subr.mxu0 0.0
  %153 = vmatpush2.msra.mxu0 %v48
  %154 = vmatprep.subr.mxu0 0.0
  %155 = vmatpush2.msra.mxu0 %v47
  %156 = vmatprep.subr.mxu0 0.0
  %157 = vmatpush2.msra.mxu0 %v46
  %158 = vmatprep.mubr.f32.mxu0 %v23
  %159 = vmatmul.mubr.f32.gmra.mxu0 %v22
  %v160 = vpop.f32.mrf.mxu0
  %v161 = vadd.f32 0.0, %v160
  %v162 = vpop.f32.mrf.mxu0
  %163 = vmatprep.mubr.f32.mxu0 %v27
  %164 = vmatmul.mubr.f32.gmra.mxu0 %v26
  %v165 = vpop.f32.mrf.mxu0
  %v166 = vadd.f32 0.0, %v165
  %v167 = vpop.f32.mrf.mxu0
  %168 = vdwg.mxu0
  %169 = vmatprep.subr.mxu0 0.0
  %170 = vmatpush1.msra.mxu0 %v77
  %171 = vmatprep.subr.mxu0 0.0
  %172 = vmatpush1.msra.mxu0 %v76
  %173 = vmatprep.subr.mxu0 0.0
  %174 = vmatpush1.msra.mxu0 %v75
  %175 = vmatprep.subr.mxu0 0.0
  %176 = vmatpush1.msra.mxu0 %v74
  %177 = vmatprep.subr.mxu0 0.0
  %178 = vmatpush1.msra.mxu0 %v73
  %179 = vmatprep.subr.mxu0 0.0
  %180 = vmatpush1.msra.mxu0 %v72
  %181 = vmatprep.subr.mxu0 0.0
  %182 = vmatpush1.msra.mxu0 %v71
  %183 = vmatprep.subr.mxu0 0.0
  %184 = vmatpush1.msra.mxu0 %v70
  %185 = vmatprep.subr.mxu0 0.0
  %186 = vmatpush1.msra.mxu0 %v69
  %187 = vmatprep.subr.mxu0 0.0
  %188 = vmatpush1.msra.mxu0 %v68
  %189 = vmatprep.subr.mxu0 0.0
  %190 = vmatpush1.msra.mxu0 %v67
  %191 = vmatprep.subr.mxu0 0.0
  %192 = vmatpush1.msra.mxu0 %v66
  %193 = vmatprep.subr.mxu0 0.0
  %194 = vmatpush1.msra.mxu0 %v65
  %195 = vmatprep.subr.mxu0 0.0
  %196 = vmatpush1.msra.mxu0 %v64
  %197 = vmatprep.subr.mxu0 0.0
  %198 = vmatpush1.msra.mxu0 %v63
  %199 = vmatprep.subr.mxu0 0.0
  %200 = vmatpush1.msra.mxu0 %v62
  %201 = vmatprep.subr.mxu0 0.0
  %202 = vmatpush2.msra.mxu0 %v93
  %203 = vmatprep.subr.mxu0 0.0
  %204 = vmatpush2.msra.mxu0 %v92
  %205 = vmatprep.subr.mxu0 0.0
  %206 = vmatpush2.msra.mxu0 %v91
  %207 = vmatprep.subr.mxu0 0.0
  %208 = vmatpush2.msra.mxu0 %v90
  %209 = vmatprep.subr.mxu0 0.0
  %210 = vmatpush2.msra.mxu0 %v89
  %211 = vmatprep.subr.mxu0 0.0
  %212 = vmatpush2.msra.mxu0 %v88
  %213 = vmatprep.subr.mxu0 0.0
  %214 = vmatpush2.msra.mxu0 %v87
  %215 = vmatprep.subr.mxu0 0.0
  %216 = vmatpush2.msra.mxu0 %v86
  %217 = vmatprep.subr.mxu0 0.0
  %218 = vmatpush2.msra.mxu0 %v85
  %219 = vmatprep.subr.mxu0 0.0
  %220 = vmatpush2.msra.mxu0 %v84
  %221 = vmatprep.subr.mxu0 0.0
  %222 = vmatpush2.msra.mxu0 %v83
  %223 = vmatprep.subr.mxu0 0.0
  %224 = vmatpush2.msra.mxu0 %v82
  %225 = vmatprep.subr.mxu0 0.0
  %226 = vmatpush2.msra.mxu0 %v81
  %227 = vmatprep.subr.mxu0 0.0
  %228 = vmatpush2.msra.mxu0 %v80
  %229 = vmatprep.subr.mxu0 0.0
  %230 = vmatpush2.msra.mxu0 %v79
  %231 = vmatprep.subr.mxu0 0.0
  %232 = vmatpush2.msra.mxu0 %v78
  %233 = vmatprep.mubr.f32.mxu0 %v25
  %234 = vmatmul.mubr.f32.gmra.mxu0 %v24
  %v235 = vpop.f32.mrf.mxu0
  %v236 = vadd.f32 %v161, %v235
  %v237 = vpop.f32.mrf.mxu0
  %238 = vmatprep.mubr.f32.mxu0 %v29
  %239 = vmatmul.mubr.f32.gmra.mxu0 %v28
  %v240 = vpop.f32.mrf.mxu0
  %v241 = vadd.f32 %v166, %v240
  %v242 = vpop.f32.mrf.mxu0
  %243 = vdwg.mxu0
  %v244 = vadd.f32 %v20, %v236
  %v245 = vadd.f32 %v21, %v241
  %246 = vst [vmem:[#allocation2] sm:$0xff] %v244
  %247 = vst [vmem:[#allocation2 + $0x8] sm:$0xff] %v245
  // Predicated region
  $region18: #{transformer_block_forward.16} parent=0 // pred_check
    %p248 = pneg %p14
  $region19: #{transformer_block_forward.16} parent=0 // pred_check_branch
    %250 = sbr.rel (%p248) target = $region21
  $region20: #{transformer_block_forward.16} parent=0 // pred_region
    %v251 = vld [vmem:[#allocation2] sm:$0xff]
    %v252 = vld [vmem:[#allocation2 + $0x8] sm:$0xff]
    %v253 = vld [vmem:[%s2] sm:$0x1]
    %v255 = vlaneseq
    %v256 = vshrl.u32 %v255, 7
    %v257 = vsub.s32 0, %v256
    %v258 = vrot.slane %v253, %v257
    %v260 = vadd.f32 %v251, %v258
    %v261 = vadd.f32 %v252, %v258
    %262 = vst [vmem:[%s3] sm:$0xff] %v260
    %263 = vst [vmem:[%s3 + $0x8] sm:$0xff] %v261
  $region21: #{transformer_block_forward.16} parent=0 // pred_fallthru
    _
  // Predicated region
  $region22: #{transformer_block_forward.16} parent=0 // pred_check
    _
  $region23: #{transformer_block_forward.16} parent=0 // pred_check_branch
    %265 = sbr.rel (0) target = $region25
  $region24: #{transformer_block_forward.16} parent=0 // pred_region
    _
  $region25: #{transformer_block_forward.16} parent=0 // pred_fallthru
    _
  // Predicated region
  $region26: #{transformer_block_forward.16} parent=0 // pred_check
    _
  $region27: #{transformer_block_forward.16} parent=0 // pred_check_branch
    %267 = sbr.rel (0) target = $region29
  $region28: #{transformer_block_forward.16} parent=0 // pred_region
    _
  $region29: #{transformer_block_forward.16} parent=0 // pred_fallthru
    _

// kernel: transformer_block_forward.15
$region0: #{transformer_block_forward.15}
  #allocation0 [shape = 'u32[]', space=smem, size = 0x4, offset = 0x4, fixed_abs, tag = 'smem constant byte address 0x4 - core index']
  #allocation1 [shape = 'u32[144,128]{1,0:T(1,128)}', space=vmem, size = 0x12000, scoped, tag = 'internal scratch']
  #allocation2 [shape = 'f32[16,256]{1,0:T(8,128)}', space=vmem, size = 0x4000, scoped, tag = 'scratch operand']
  %s0 = inlined_call_operand.vmem [shape: f32[16,128], index: 0, kind: input, shape index: {}]
  %s1 = inlined_call_operand.vmem [shape: f32[128,512], index: 1, kind: input, shape index: {}]
  %s2 = inlined_call_operand.vmem [shape: f32[1,512], index: 2, kind: input, shape index: {}]
  %s3 = inlined_call_operand.vmem [shape: f32[16,512], index: 3, kind: output, shape index: {}]
  %s4 = sld [smem:[#allocation0]]
  $region95: #{transformer_block_forward.15} parent=0
    _
  %s6 = ssub.s32 1, %s4
  %s7 = scalar_select 0, %s6, %s4
  $region1: #{transformer_block_forward.15} parent=0
    #allocation3 [shape = 'u8[262144]{0}', space=vmem, size = 0x40000, scoped, tag = 'input window, operand 1']
    #allocation4 [shape = 'u8[32768]{0}', space=vmem, size = 0x8000, scoped, tag = 'output window, operand 0']
    loop: start=0, step=1, limit=4
    $region2: #{transformer_block_forward.15} parent=1 // loop_pre_header
      _
    $region3: #{transformer_block_forward.15} parent=1 // loop_header
      %s9 = sphi 0, %s13
      %p10 = scmp.ge.s32.totalorder %s9, 4
      %s16 = sphi 0, %s35
      %s17 = sphi 0, %s31
      %s18 = sphi 0, %s27
      %s19 = sphi 0, %s16
      %s20 = sphi 0, %s17
      %s21 = sphi 0, %s18
      %s22 = sphi 0, %s19
      %s23 = sphi 0, %s20
      %s24 = sphi 0, %s21
      %s40 = sphi 0, %s42
      %s43 = sphi 0, %s40
      %s44 = sphi 0, %s43
      %s60 = sphi 0, %s44
      %s68 = sphi 0, %s70
      %s71 = sphi 0, %s68
      %s72 = sphi 0, %s71
      %s88 = sphi 0, %s72
      %s94 = sphi 0, %s96
      %s97 = sphi 0, %s94
      %s98 = sphi 0, %s97
      %s114 = sphi 0, %s98
      %s122 = sphi 0, %s124
      %s125 = sphi 0, %s122
      %s126 = sphi 0, %s125
      %s142 = sphi 0, %s126
    $region4: #{transformer_block_forward.15} parent=1 // loop_header_branch
      %12 = sbr.rel (%p10) target = $region8
    $region5: #{transformer_block_forward.15} parent=1 // loop_body
      %s14 = ssub.s32 %s9, 1
      %s15 = ssub.s32 %s9, 2
      %s25 = sadd.s32 1, %s18
      %p26 = scmp.ge.s32.totalorder %s25, 1
      %s27 = scalar_select %p26, 0, %s25
      %s28 = sadd.s32 1, %s17
      %s29 = scalar_select %p26, %s28, %s17
      %p30 = scmp.ge.s32.totalorder %s29, 2
      %s31 = scalar_select %p30, 0, %s29
      %s32 = sadd.s32 1, %s16
      %s33 = scalar_select %p30, %s32, %s16
      %p34 = scmp.ge.s32.totalorder %s33, 1
      %s35 = scalar_select %p34, 0, %s33
      %s36 = ssub.s32 %s16, %s35
      %s37 = ssub.s32 %s18, %s27
      %s38 = sor.u32 %s36, %s37
      %p39 = scmp.eq.s32.totalorder %s38, 0
      %s41 = sadd.s32 %s40, 1
      %s42 = scalar_select %p39, %s40, %s41
      %p45 = pneg %p39
      %p46 = scmp.eq.s32.totalorder %s9, 1
      %p47 = por %p45, %p46
      %p48 = scmp.ne.s32.totalorder %s40, %s43
      %p49 = scmp.eq.s32.totalorder %s9, 0
      %p50 = por %p48, %p49
      %p51 = scmp.ne.s32.totalorder %s40, %s43
      %p52 = scmp.eq.s32.totalorder %s14, 1
      %p53 = por %p51, %p52
      %p54 = scmp.ne.s32.totalorder %s43, %s44
      %p55 = scmp.eq.s32.totalorder %s14, 0
      %p56 = por %p54, %p55
      %p57 = scmp.ne.s32.totalorder %s43, %s44
      %p58 = scmp.eq.s32.totalorder %s15, 1
      %p59 = por %p57, %p58
      %p61 = scmp.ne.s32.totalorder %s44, %s60
      %p62 = scmp.eq.s32.totalorder %s15, 0
      %p63 = por %p61, %p62
      %s64 = ssub.s32 %s18, %s27
      %s65 = ssub.s32 %s17, %s31
      %s66 = sor.u32 %s64, %s65
      %p67 = scmp.eq.s32.totalorder %s66, 0
      %s69 = sadd.s32 %s68, 1
      %s70 = scalar_select %p67, %s68, %s69
      %p73 = pneg %p67
      %p74 = scmp.eq.s32.totalorder %s9, 1
      %p75 = por %p73, %p74
      %p76 = scmp.ne.s32.totalorder %s68, %s71
      %p77 = scmp.eq.s32.totalorder %s9, 0
      %p78 = por %p76, %p77
      %p79 = scmp.ne.s32.totalorder %s68, %s71
      %p80 = scmp.eq.s32.totalorder %s14, 1
      %p81 = por %p79, %p80
      %p82 = scmp.ne.s32.totalorder %s71, %s72
      %p83 = scmp.eq.s32.totalorder %s14, 0
      %p84 = por %p82, %p83
      %p85 = scmp.ne.s32.totalorder %s71, %s72
      %p86 = scmp.eq.s32.totalorder %s15, 1
      %p87 = por %p85, %p86
      %p89 = scmp.ne.s32.totalorder %s72, %s88
      %p90 = scmp.eq.s32.totalorder %s15, 0
      %p91 = por %p89, %p90
      %s92 = ssub.s32 %s17, %s31
      %p93 = scmp.eq.s32.totalorder %s92, 0
      %s95 = sadd.s32 %s94, 1
      %s96 = scalar_select %p93, %s94, %s95
      %p99 = pneg %p93
      %p100 = scmp.eq.s32.totalorder %s9, 1
      %p101 = por %p99, %p100
      %p102 = scmp.ne.s32.totalorder %s94, %s97
      %p103 = scmp.eq.s32.totalorder %s9, 0
      %p104 = por %p102, %p103
      %p105 = scmp.ne.s32.totalorder %s94, %s97
      %p106 = scmp.eq.s32.totalorder %s14, 1
      %p107 = por %p105, %p106
      %p108 = scmp.ne.s32.totalorder %s97, %s98
      %p109 = scmp.eq.s32.totalorder %s14, 0
      %p110 = por %p108, %p109
      %p111 = scmp.ne.s32.totalorder %s97, %s98
      %p112 = scmp.eq.s32.totalorder %s15, 1
      %p113 = por %p111, %p112
      %p115 = scmp.ne.s32.totalorder %s98, %s114
      %p116 = scmp.eq.s32.totalorder %s15, 0
      %p117 = por %p115, %p116
      %s118 = ssub.s32 %s16, %s35
      %s119 = ssub.s32 %s17, %s31
      %s120 = sor.u32 %s118, %s119
      %p121 = scmp.eq.s32.totalorder %s120, 0
      %s123 = sadd.s32 %s122, 1
      %s124 = scalar_select %p121, %s122, %s123
      %p127 = pneg %p121
      %p128 = scmp.eq.s32.totalorder %s9, 1
      %p129 = por %p127, %p128
      %p130 = scmp.ne.s32.totalorder %s122, %s125
      %p131 = scmp.eq.s32.totalorder %s9, 0
      %p132 = por %p130, %p131
      %p133 = scmp.ne.s32.totalorder %s122, %s125
      %p134 = scmp.eq.s32.totalorder %s14, 1
      %p135 = por %p133, %p134
      %p136 = scmp.ne.s32.totalorder %s125, %s126
      %p137 = scmp.eq.s32.totalorder %s14, 0
      %p138 = por %p136, %p137
      %p139 = scmp.ne.s32.totalorder %s125, %s126
      %p140 = scmp.eq.s32.totalorder %s15, 1
      %p141 = por %p139, %p140
      %p143 = scmp.ne.s32.totalorder %s126, %s142
      %p144 = scmp.eq.s32.totalorder %s15, 0
      %p145 = por %p143, %p144
      %p146 = scmp.le.s32.totalorder 1, %s9
      %p147 = scmp.lt.s32.totalorder %s9, 3
      %p148 = pnand %p146, %p147
      %p149 = pneg %p148
      // Predicated region
      $region9: #{transformer_block_forward.15} parent=5 // pred_check
        _
      $region10: #{transformer_block_forward.15} parent=5 // pred_check_branch
        %151 = sbr.rel (%p148) target = $region12
      $region11: #{transformer_block_forward.15} parent=5 // pred_region
        %s152 = ssub.s32 %s9, 1
        // Predicated region
        $region13: #{transformer_block_forward.15} parent=11 // pred_check
          %p153 = pneg %p56
        $region14: #{transformer_block_forward.15} parent=11 // pred_check_branch
          %155 = sbr.rel (%p153) target = $region16
        $region15: #{transformer_block_forward.15} parent=11 // pred_region
          %s156 = smul.u32 2, %s19
          %p157 = scmp.lt.s32.totalorder %s156, 1
          %s158 = scalar_select %p157, %s156, 1
          %p159 = scmp.lt.s32.totalorder %s21, 0
          %s160 = scalar_select %p159, %s21, 0
          %s161 = sadd.s32 %s160, %s158
          %s162 = smul.addr %s161, 8
          %s163 = scalar_lea.vmem %s0, %s162
          %s164 = smul.u32 2, %s19
        $region16: #{transformer_block_forward.15} parent=11 // pred_fallthru
          _
      $region12: #{transformer_block_forward.15} parent=5 // pred_fallthru
        _
      %p165 = scmp.lt.s32.totalorder %s9, 2
      // Predicated region
      $region17: #{transformer_block_forward.15} parent=5 // pred_check
        %p166 = pneg %p165
      $region18: #{transformer_block_forward.15} parent=5 // pred_check_branch
        %168 = sbr.rel (%p166) target = $region20
      $region19: #{transformer_block_forward.15} parent=5 // pred_region
        // Predicated region
        $region21: #{transformer_block_forward.15} parent=19 // pred_check
          %p169 = pneg %p78
        $region22: #{transformer_block_forward.15} parent=19 // pred_check_branch
          %171 = sbr.rel (%p169) target = $region24
        $region23: #{transformer_block_forward.15} parent=19 // pred_region
          %s172 = sand.u32 %s68, 1
          %s173 = sand.u32 %s68, 1
          %s174 = smul.addr %s173, 256
          %s175 = scalar_lea.vmem [#allocation3], %s174
          %s176 = smul.u32 16, %s18
          %s177 = smul.u32 2, %s17
          %s178 = smul.addr %s176, 4
          %s179 = sadd.s32 %s177, %s178
          %s180 = smul.addr %s179, 8
          %s181 = scalar_lea.vmem %s1, %s180
          // Predicated region
          $region25: #{transformer_block_forward.15} parent=23 // pred_check
            _
          $region26: #{transformer_block_forward.15} parent=23 // pred_check_branch
            %183 = sbr.rel (0) target = $region28
          $region27: #{transformer_block_forward.15} parent=23 // pred_region
            // Predicated region
            $region29: #{transformer_block_forward.15} parent=27 // pred_check
              _
            $region30: #{transformer_block_forward.15} parent=27 // pred_check_branch
              %185 = sbr.rel (0) target = $region32
            $region31: #{transformer_block_forward.15} parent=27 // pred_region
              loop: start=0, step=1, limit=1
              $region33: #{transformer_block_forward.15} parent=31 // loop_pre_header
                _
              $region34: #{transformer_block_forward.15} parent=31 // loop_header
                %s187 = sphi 0, %s191
                %p188 = scmp.ge.s32.totalorder %s187, 1
                %s192 = sphi %s181, %s181
                %s193 = sphi %s175, %s175
              $region35: #{transformer_block_forward.15} parent=31 // loop_header_branch
                %190 = sbr.rel (%p188) target = $region39
              $region36: #{transformer_block_forward.15} parent=31 // loop_body
                %v194 = vld [vmem:[%s192] sm:$0xff]
                %195 = vst [vmem:[%s193] sm:$0xff] %v194
                %v196 = vld [vmem:[%s192 + $0x8] sm:$0xff]
                %197 = vst [vmem:[%s193 + $0x8] sm:$0xff] %v196
                %v198 = vld [vmem:[%s192 + $0x20] sm:$0xff]
                %199 = vst [vmem:[%s193 + $0x10] sm:$0xff] %v198
                %v200 = vld [vmem:[%s192 + $0x28] sm:$0xff]
                %201 = vst [vmem:[%s193 + $0x18] sm:$0xff] %v200
                %v202 = vld [vmem:[%s192 + $0x40] sm:$0xff]
                %203 = vst [vmem:[%s193 + $0x20] sm:$0xff] %v202
                %v204 = vld [vmem:[%s192 + $0x48] sm:$0xff]
                %205 = vst [vmem:[%s193 + $0x28] sm:$0xff] %v204
                %v206 = vld [vmem:[%s192 + $0x60] sm:$0xff]
                %207 = vst [vmem:[%s193 + $0x30] sm:$0xff] %v206
                %v208 = vld [vmem:[%s192 + $0x68] sm:$0xff]
                %209 = vst [vmem:[%s193 + $0x38] sm:$0xff] %v208
                %v210 = vld [vmem:[%s192 + $0x80] sm:$0xff]
                %211 = vst [vmem:[%s193 + $0x40] sm:$0xff] %v210
                %v212 = vld [vmem:[%s192 + $0x88] sm:$0xff]
                %213 = vst [vmem:[%s193 + $0x48] sm:$0xff] %v212
                %v214 = vld [vmem:[%s192 + $0xa0] sm:$0xff]
                %215 = vst [vmem:[%s193 + $0x50] sm:$0xff] %v214
                %v216 = vld [vmem:[%s192 + $0xa8] sm:$0xff]
                %217 = vst [vmem:[%s193 + $0x58] sm:$0xff] %v216
                %v218 = vld [vmem:[%s192 + $0xc0] sm:$0xff]
                %219 = vst [vmem:[%s193 + $0x60] sm:$0xff] %v218
                %v220 = vld [vmem:[%s192 + $0xc8] sm:$0xff]
                %221 = vst [vmem:[%s193 + $0x68] sm:$0xff] %v220
                %v222 = vld [vmem:[%s192 + $0xe0] sm:$0xff]
                %223 = vst [vmem:[%s193 + $0x70] sm:$0xff] %v222
                %v224 = vld [vmem:[%s192 + $0xe8] sm:$0xff]
                %225 = vst [vmem:[%s193 + $0x78] sm:$0xff] %v224
                %v226 = vld [vmem:[%s192 + $0x100] sm:$0xff]
                %227 = vst [vmem:[%s193 + $0x80] sm:$0xff] %v226
                %v228 = vld [vmem:[%s192 + $0x108] sm:$0xff]
                %229 = vst [vmem:[%s193 + $0x88] sm:$0xff] %v228
                %v230 = vld [vmem:[%s192 + $0x120] sm:$0xff]
                %231 = vst [vmem:[%s193 + $0x90] sm:$0xff] %v230
                %v232 = vld [vmem:[%s192 + $0x128] sm:$0xff]
                %233 = vst [vmem:[%s193 + $0x98] sm:$0xff] %v232
                %v234 = vld [vmem:[%s192 + $0x140] sm:$0xff]
                %235 = vst [vmem:[%s193 + $0xa0] sm:$0xff] %v234
                %v236 = vld [vmem:[%s192 + $0x148] sm:$0xff]
                %237 = vst [vmem:[%s193 + $0xa8] sm:$0xff] %v236
                %v238 = vld [vmem:[%s192 + $0x160] sm:$0xff]
                %239 = vst [vmem:[%s193 + $0xb0] sm:$0xff] %v238
                %v240 = vld [vmem:[%s192 + $0x168] sm:$0xff]
                %241 = vst [vmem:[%s193 + $0xb8] sm:$0xff] %v240
                %v242 = vld [vmem:[%s192 + $0x180] sm:$0xff]
                %243 = vst [vmem:[%s193 + $0xc0] sm:$0xff] %v242
                %v244 = vld [vmem:[%s192 + $0x188] sm:$0xff]
                %245 = vst [vmem:[%s193 + $0xc8] sm:$0xff] %v244
                %v246 = vld [vmem:[%s192 + $0x1a0] sm:$0xff]
                %247 = vst [vmem:[%s193 + $0xd0] sm:$0xff] %v246
                %v248 = vld [vmem:[%s192 + $0x1a8] sm:$0xff]
                %249 = vst [vmem:[%s193 + $0xd8] sm:$0xff] %v248
                %v250 = vld [vmem:[%s192 + $0x1c0] sm:$0xff]
                %251 = vst [vmem:[%s193 + $0xe0] sm:$0xff] %v250
                %v252 = vld [vmem:[%s192 + $0x1c8] sm:$0xff]
                %253 = vst [vmem:[%s193 + $0xe8] sm:$0xff] %v252
                %v254 = vld [vmem:[%s192 + $0x1e0] sm:$0xff]
                %255 = vst [vmem:[%s193 + $0xf0] sm:$0xff] %v254
                %v256 = vld [vmem:[%s192 + $0x1e8] sm:$0xff]
                %257 = vst [vmem:[%s193 + $0xf8] sm:$0xff] %v256
              $region37: #{transformer_block_forward.15} parent=31 // loop_footer
                %s191 = sadd.s32 1, %s187
              $region38: #{transformer_block_forward.15} parent=31 // loop_footer_branch
                %186 = sbr.rel target = $region34
              $region39: #{transformer_block_forward.15} parent=31 // loop_exit
                _
            $region32: #{transformer_block_forward.15} parent=27 // pred_fallthru
              _
            // Predicated region
            $region40: #{transformer_block_forward.15} parent=27 // pred_check
              _
            $region41: #{transformer_block_forward.15} parent=27 // pred_check_branch
              %259 = sbr.rel target = $region43
            $region42: #{transformer_block_forward.15} parent=27 // pred_region
              _
            $region43: #{transformer_block_forward.15} parent=27 // pred_fallthru
              _
          $region28: #{transformer_block_forward.15} parent=23 // pred_fallthru
            _
          %260 = vnop
        $region24: #{transformer_block_forward.15} parent=19 // pred_fallthru
          _
        // Predicated region
        $region44: #{transformer_block_forward.15} parent=19 // pred_check
          %p261 = pneg %p104
        $region45: #{transformer_block_forward.15} parent=19 // pred_check_branch
          %263 = sbr.rel (%p261) target = $region47
        $region46: #{transformer_block_forward.15} parent=19 // pred_region
          %s264 = smul.u32 2, %s17
          %p265 = scmp.lt.s32.totalorder %s264, 3
          %s266 = scalar_select %p265, %s264, 3
          %s267 = scalar_lea.vmem %s2, %s266
          %s268 = smul.u32 2, %s17
        $region47: #{transformer_block_forward.15} parent=19 // pred_fallthru
          _
      $region20: #{transformer_block_forward.15} parent=5 // pred_fallthru
        _
      %p269 = scmp.le.s32.totalorder 1, %s9
      %p270 = scmp.lt.s32.totalorder %s9, 3
      %p271 = pnand %p269, %p270
      %p272 = pneg %p271
      // Predicated region
      $region48: #{transformer_block_forward.15} parent=5 // pred_check
        _
      $region49: #{transformer_block_forward.15} parent=5 // pred_check_branch
        %274 = sbr.rel (%p271) target = $region51
      $region50: #{transformer_block_forward.15} parent=5 // pred_region
        %s275 = ssub.s32 %s9, 1
        %s276 = sand.u32 %s71, 1
        %s277 = sand.u32 %s71, 1
        %s278 = smul.addr %s277, 256
        %s279 = scalar_lea.vmem [#allocation3], %s278
        // Predicated region
        $region52: #{transformer_block_forward.15} parent=50 // pred_check
          %p280 = pneg %p84
        $region53: #{transformer_block_forward.15} parent=50 // pred_check_branch
          %282 = sbr.rel (%p280) target = $region55
        $region54: #{transformer_block_forward.15} parent=50 // pred_region
          _
        $region55: #{transformer_block_forward.15} parent=50 // pred_fallthru
          _
        %s283 = smul.u32 2, %s19
        %p284 = scmp.lt.s32.totalorder %s283, 1
        %s285 = scalar_select %p284, %s283, 1
        %p286 = scmp.lt.s32.totalorder %s21, 0
        %s287 = scalar_select %p286, %s21, 0
        %s288 = sadd.s32 %s287, %s285
        %s289 = smul.addr %s288, 8
        %s290 = scalar_lea.vmem %s0, %s289
        %p291 = pneg %p56
        %p292 = pneg %p53
        %s293 = sand.u32 %s71, 1
        %s294 = sand.u32 %s71, 1
        %s295 = smul.addr %s294, 256
        %s296 = scalar_lea.vmem [#allocation3], %s295
        %p297 = pneg %p84
        %p298 = pneg %p81
        %s299 = smul.u32 2, %s20
        %p300 = scmp.lt.s32.totalorder %s299, 3
        %s301 = scalar_select %p300, %s299, 3
        %s302 = scalar_lea.vmem %s2, %s301
        %p303 = pneg %p110
        %p304 = pneg %p107
        %p305 = pneg %p138
        %p306 = pneg %p135
        %s307 = sand.u32 %s125, 1
        %s308 = sand.u32 %s125, 1
        %s309 = smul.addr %s308, 32
        %s310 = scalar_lea.vmem [#allocation4], %s309
        %s311 = smul.u32 2, %s19
        %p312 = scmp.lt.s32.totalorder %s311, 1
        %s313 = scalar_select %p312, %s311, 1
        %p314 = scmp.lt.s32.totalorder %s21, 0
        %s315 = scalar_select %p314, %s21, 0
        %s316 = sadd.s32 %s315, %s313
        %s317 = smul.addr %s316, 8
        %s318 = scalar_lea.vmem %s0, %s317
        %s319 = smul.u32 2, %s19
        %s320 = smul.u32 16, %s21
        %s321 = smul.u32 2, %s20
        %s322 = smul.u32 2, %s20
        %p323 = scmp.lt.s32.totalorder %s322, 3
        %s324 = scalar_select %p323, %s322, 3
        %s325 = scalar_lea.vmem %s2, %s324
        %s326 = smul.u32 2, %s20
        %s327 = smul.u32 2, %s19
        %s328 = smul.u32 2, %s20
        %p329 = scmp.eq.s32.totalorder %s21, 0
        // Predicated region
        $region56: #{transformer_block_forward.15} parent=50 // pred_check
          %p330 = pneg %p329
        $region57: #{transformer_block_forward.15} parent=50 // pred_check_branch
          %332 = sbr.rel (%p330) target = $region59
        $region58: #{transformer_block_forward.15} parent=50 // pred_region
          %333 = vst [vmem:[#allocation2] sm:$0xff] 0.0
          %334 = vst [vmem:[#allocation2 + $0x8] sm:$0xff] 0.0
          %335 = vst [vmem:[#allocation2 + $0x10] sm:$0xff] 0.0
          %336 = vst [vmem:[#allocation2 + $0x18] sm:$0xff] 0.0
        $region59: #{transformer_block_forward.15} parent=50 // pred_fallthru
          _
        %v337 = vld [vmem:[#allocation2] sm:$0xff]
        %v338 = vld [vmem:[#allocation2 + $0x8] sm:$0xff]
        %v339 = vld [vmem:[#allocation2 + $0x10] sm:$0xff]
        %v340 = vld [vmem:[#allocation2 + $0x18] sm:$0xff]
        %v341 = vld [vmem:[%s318] sm:$0xff]
        %v342 = vld [vmem:[%s318 + $0x8] sm:$0xff]
        %v343 = vld [vmem:[%s279] sm:$0xff]
        %v344 = vld [vmem:[%s279 + $0x8] sm:$0xff]
        %v345 = vld [vmem:[%s279 + $0x10] sm:$0xff]
        %v346 = vld [vmem:[%s279 + $0x18] sm:$0xff]
        %v347 = vld [vmem:[%s279 + $0x20] sm:$0xff]
        %v348 = vld [vmem:[%s279 + $0x28] sm:$0xff]
        %v349 = vld [vmem:[%s279 + $0x30] sm:$0xff]
        %v350 = vld [vmem:[%s279 + $0x38] sm:$0xff]
        %v351 = vld [vmem:[%s279 + $0x40] sm:$0xff]
        %v352 = vld [vmem:[%s279 + $0x48] sm:$0xff]
        %v353 = vld [vmem:[%s279 + $0x50] sm:$0xff]
        %v354 = vld [vmem:[%s279 + $0x58] sm:$0xff]
        %v355 = vld [vmem:[%s279 + $0x60] sm:$0xff]
        %v356 = vld [vmem:[%s279 + $0x68] sm:$0xff]
        %v357 = vld [vmem:[%s279 + $0x70] sm:$0xff]
        %v358 = vld [vmem:[%s279 + $0x78] sm:$0xff]
        %v359 = vld [vmem:[%s279 + $0x80] sm:$0xff]
        %v360 = vld [vmem:[%s279 + $0x88] sm:$0xff]
        %v361 = vld [vmem:[%s279 + $0x90] sm:$0xff]
        %v362 = vld [vmem:[%s279 + $0x98] sm:$0xff]
        %v363 = vld [vmem:[%s279 + $0xa0] sm:$0xff]
        %v364 = vld [vmem:[%s279 + $0xa8] sm:$0xff]
        %v365 = vld [vmem:[%s279 + $0xb0] sm:$0xff]
        %v366 = vld [vmem:[%s279 + $0xb8] sm:$0xff]
        %v367 = vld [vmem:[%s279 + $0xc0] sm:$0xff]
        %v368 = vld [vmem:[%s279 + $0xc8] sm:$0xff]
        %v369 = vld [vmem:[%s279 + $0xd0] sm:$0xff]
        %v370 = vld [vmem:[%s279 + $0xd8] sm:$0xff]
        %v371 = vld [vmem:[%s279 + $0xe0] sm:$0xff]
        %v372 = vld [vmem:[%s279 + $0xe8] sm:$0xff]
        %v373 = vld [vmem:[%s279 + $0xf0] sm:$0xff]
        %v374 = vld [vmem:[%s279 + $0xf8] sm:$0xff]
        %375 = vmatprep.subr.mxu0 %v374
        %376 = vmatpush1.msra.mxu0 %v373
        %377 = vmatprep.subr.mxu0 %v372
        %378 = vmatpush1.msra.mxu0 %v371
        %379 = vmatprep.subr.mxu0 %v370
        %380 = vmatpush1.msra.mxu0 %v369
        %381 = vmatprep.subr.mxu0 %v368
        %382 = vmatpush1.msra.mxu0 %v367
        %383 = vmatprep.subr.mxu0 %v366
        %384 = vmatpush1.msra.mxu0 %v365
        %385 = vmatprep.subr.mxu0 %v364
        %386 = vmatpush1.msra.mxu0 %v363
        %387 = vmatprep.subr.mxu0 %v362
        %388 = vmatpush1.msra.mxu0 %v361
        %389 = vmatprep.subr.mxu0 %v360
        %390 = vmatpush1.msra.mxu0 %v359
        %391 = vmatprep.subr.mxu0 %v358
        %392 = vmatpush1.msra.mxu0 %v357
        %393 = vmatprep.subr.mxu0 %v356
        %394 = vmatpush1.msra.mxu0 %v355
        %395 = vmatprep.subr.mxu0 %v354
        %396 = vmatpush1.msra.mxu0 %v353
        %397 = vmatprep.subr.mxu0 %v352
        %398 = vmatpush1.msra.mxu0 %v351
        %399 = vmatprep.subr.mxu0 %v350
        %400 = vmatpush1.msra.mxu0 %v349
        %401 = vmatprep.subr.mxu0 %v348
        %402 = vmatpush1.msra.mxu0 %v347
        %403 = vmatprep.subr.mxu0 %v346
        %404 = vmatpush1.msra.mxu0 %v345
        %405 = vmatprep.subr.mxu0 %v344
        %406 = vmatpush1.msra.mxu0 %v343
        %407 = vmatprep.subr.mxu0 0.0
        %408 = vmatpush2.msra.mxu0 0.0
        %409 = vmatprep.subr.mxu0 0.0
        %410 = vmatpush2.msra.mxu0 0.0
        %411 = vmatprep.subr.mxu0 0.0
        %412 = vmatpush2.msra.mxu0 0.0
        %413 = vmatprep.subr.mxu0 0.0
        %414 = vmatpush2.msra.mxu0 0.0
        %415 = vmatprep.subr.mxu0 0.0
        %416 = vmatpush2.msra.mxu0 0.0
        %417 = vmatprep.subr.mxu0 0.0
        %418 = vmatpush2.msra.mxu0 0.0
        %419 = vmatprep.subr.mxu0 0.0
        %420 = vmatpush2.msra.mxu0 0.0
        %421 = vmatprep.subr.mxu0 0.0
        %422 = vmatpush2.msra.mxu0 0.0
        %423 = vmatprep.subr.mxu0 0.0
        %424 = vmatpush2.msra.mxu0 0.0
        %425 = vmatprep.subr.mxu0 0.0
        %426 = vmatpush2.msra.mxu0 0.0
        %427 = vmatprep.subr.mxu0 0.0
        %428 = vmatpush2.msra.mxu0 0.0
        %429 = vmatprep.subr.mxu0 0.0
        %430 = vmatpush2.msra.mxu0 0.0
        %431 = vmatprep.subr.mxu0 0.0
        %432 = vmatpush2.msra.mxu0 0.0
        %433 = vmatprep.subr.mxu0 0.0
        %434 = vmatpush2.msra.mxu0 0.0
        %435 = vmatprep.subr.mxu0 0.0
        %436 = vmatpush2.msra.mxu0 0.0
        %437 = vmatprep.subr.mxu0 0.0
        %438 = vmatpush2.msra.mxu0 0.0
        %439 = vmatprep.mubr.f32.mxu0 0.0
        %440 = vmatmul.mubr.f32.gmra.mxu0 %v341
        %v441 = vpop.f32.mrf.mxu0
        %v442 = vadd.f32 0.0, %v441
        %v443 = vpop.f32.mrf.mxu0
        %v444 = vadd.f32 0.0, %v443
        %445 = vmatprep.mubr.f32.mxu0 0.0
        %446 = vmatmul.mubr.f32.gmra.mxu0 %v342
        %v447 = vpop.f32.mrf.mxu0
        %v448 = vadd.f32 0.0, %v447
        %v449 = vpop.f32.mrf.mxu0
        %v450 = vadd.f32 0.0, %v449
        %451 = vdwg.mxu0
        %v452 = vadd.f32 %v337, %v442
        %v453 = vadd.f32 %v338, %v444
        %v454 = vadd.f32 %v339, %v448
        %v455 = vadd.f32 %v340, %v450
        %456 = vst [vmem:[#allocation2] sm:$0xff] %v452
        %457 = vst [vmem:[#allocation2 + $0x8] sm:$0xff] %v453
        %458 = vst [vmem:[#allocation2 + $0x10] sm:$0xff] %v454
        %459 = vst [vmem:[#allocation2 + $0x18] sm:$0xff] %v455
        // Predicated region
        $region60: #{transformer_block_forward.15} parent=50 // pred_check
          %p460 = pneg %p329
        $region61: #{transformer_block_forward.15} parent=50 // pred_check_branch
          %462 = sbr.rel (%p460) target = $region63
        $region62: #{transformer_block_forward.15} parent=50 // pred_region
          %v463 = vld [vmem:[#allocation2] sm:$0xff]
          %v464 = vld [vmem:[#allocation2 + $0x8] sm:$0xff]
          %v465 = vld [vmem:[#allocation2 + $0x10] sm:$0xff]
          %v466 = vld [vmem:[#allocation2 + $0x18] sm:$0xff]
          %v467 = vld [vmem:[%s325] sm:$0x3]
          %v469 = vlaneseq
          %v470 = vshrl.u32 %v469, 7
          %v471 = vsub.s32 0, %v470
          %v472 = vrot.slane %v467, %v471
          %v473 = vlaneseq
          %v474 = vshrl.u32 %v473, 7
          %v475 = vsub.s32 1, %v474
          %v476 = vrot.slane %v467, %v475
          %v479 = vadd.f32 %v463, %v472
          %v480 = vadd.f32 %v464, %v476
          %v481 = vadd.f32 %v465, %v472
          %v482 = vadd.f32 %v466, %v476
          %v483 = vmax.f32 %v479, 0.0
          %v484 = vmax.f32 %v480, 0.0
          %v485 = vmax.f32 %v481, 0.0
          %v486 = vmax.f32 %v482, 0.0
          %487 = vst [vmem:[%s310] sm:$0xff] %v483
          %488 = vst [vmem:[%s310 + $0x8] sm:$0xff] %v484
          %489 = vst [vmem:[%s310 + $0x10] sm:$0xff] %v485
          %490 = vst [vmem:[%s310 + $0x18] sm:$0xff] %v486
        $region63: #{transformer_block_forward.15} parent=50 // pred_fallthru
          _
        %s491 = sand.u32 %s125, 1
        %s492 = sand.u32 %s125, 1
        %s493 = smul.addr %s492, 32
        %s494 = scalar_lea.vmem [#allocation4], %s493
        // Predicated region
        $region64: #{transformer_block_forward.15} parent=50 // pred_check
          %p495 = pneg %p135
        $region65: #{transformer_block_forward.15} parent=50 // pred_check_branch
          %497 = sbr.rel (%p495) target = $region67
        $region66: #{transformer_block_forward.15} parent=50 // pred_region
          %s498 = smul.u32 2, %s19
          %s499 = smul.u32 2, %s20
          %s500 = smul.addr %s498, 4
          %s501 = sadd.s32 %s499, %s500
          %s502 = smul.addr %s501, 8
          %s503 = scalar_lea.vmem %s3, %s502
          // Predicated region
          $region68: #{transformer_block_forward.15} parent=66 // pred_check
            _
          $region69: #{transformer_block_forward.15} parent=66 // pred_check_branch
            %505 = sbr.rel (0) target = $region71
          $region70: #{transformer_block_forward.15} parent=66 // pred_region
            // Predicated region
            $region72: #{transformer_block_forward.15} parent=70 // pred_check
              _
            $region73: #{transformer_block_forward.15} parent=70 // pred_check_branch
              %507 = sbr.rel (0) target = $region75
            $region74: #{transformer_block_forward.15} parent=70 // pred_region
              loop: start=0, step=1, limit=1
              $region76: #{transformer_block_forward.15} parent=74 // loop_pre_header
                _
              $region77: #{transformer_block_forward.15} parent=74 // loop_header
                %s509 = sphi 0, %s513
                %p510 = scmp.ge.s32.totalorder %s509, 1
                %s514 = sphi %s494, %s494
                %s515 = sphi %s503, %s503
              $region78: #{transformer_block_forward.15} parent=74 // loop_header_branch
                %512 = sbr.rel (%p510) target = $region82
              $region79: #{transformer_block_forward.15} parent=74 // loop_body
                %v516 = vld [vmem:[%s514] sm:$0xff]
                %517 = vst [vmem:[%s515] sm:$0xff] %v516
                %v518 = vld [vmem:[%s514 + $0x8] sm:$0xff]
                %519 = vst [vmem:[%s515 + $0x8] sm:$0xff] %v518
                %v520 = vld [vmem:[%s514 + $0x10] sm:$0xff]
                %521 = vst [vmem:[%s515 + $0x20] sm:$0xff] %v520
                %v522 = vld [vmem:[%s514 + $0x18] sm:$0xff]
                %523 = vst [vmem:[%s515 + $0x28] sm:$0xff] %v522
              $region80: #{transformer_block_forward.15} parent=74 // loop_footer
                %s513 = sadd.s32 1, %s509
              $region81: #{transformer_block_forward.15} parent=74 // loop_footer_branch
                %508 = sbr.rel target = $region77
              $region82: #{transformer_block_forward.15} parent=74 // loop_exit
                _
            $region75: #{transformer_block_forward.15} parent=70 // pred_fallthru
              _
            // Predicated region
            $region83: #{transformer_block_forward.15} parent=70 // pred_check
              _
            $region84: #{transformer_block_forward.15} parent=70 // pred_check_branch
              %525 = sbr.rel target = $region86
            $region85: #{transformer_block_forward.15} parent=70 // pred_region
              _
            $region86: #{transformer_block_forward.15} parent=70 // pred_fallthru
              _
          $region71: #{transformer_block_forward.15} parent=66 // pred_fallthru
            _
          %526 = vnop
        $region67: #{transformer_block_forward.15} parent=50 // pred_fallthru
          _
      $region51: #{transformer_block_forward.15} parent=5 // pred_fallthru
        _
      %p527 = scmp.le.s32.totalorder 2, %s9
      // Predicated region
      $region87: #{transformer_block_forward.15} parent=5 // pred_check
        %p528 = pneg %p527
      $region88: #{transformer_block_forward.15} parent=5 // pred_check_branch
        %530 = sbr.rel (%p528) target = $region90
      $region89: #{transformer_block_forward.15} parent=5 // pred_region
        %s531 = ssub.s32 %s9, 2
        // Predicated region
        $region91: #{transformer_block_forward.15} parent=89 // pred_check
          %p532 = pneg %p141
        $region92: #{transformer_block_forward.15} parent=89 // pred_check_branch
          %534 = sbr.rel (%p532) target = $region94
        $region93: #{transformer_block_forward.15} parent=89 // pred_region
          %s535 = sand.u32 %s126, 1
          %s536 = sand.u32 %s126, 1
          %s537 = smul.addr %s536, 32
          %s538 = scalar_lea.vmem [#allocation4], %s537
        $region94: #{transformer_block_forward.15} parent=89 // pred_fallthru
          _
      $region90: #{transformer_block_forward.15} parent=5 // pred_fallthru
        _
    $region6: #{transformer_block_forward.15} parent=1 // loop_footer
      %s13 = sadd.s32 1, %s9
    $region7: #{transformer_block_forward.15} parent=1 // loop_footer_branch
      %8 = sbr.rel target = $region3
    $region8: #{transformer_block_forward.15} parent=1 // loop_exit
      _

</llo_original>
